<compile_context>
chip_gen: v7x
topology: tpu7x:2x2x1
jax: 0.10.0
libtpu: 0.0.40
codegen_flags: <defaults>
</compile_context>

<pallas_src>
import functools
import math

import jax
import jax.numpy as jnp
from jax import lax
from jax.experimental import pallas as pl
from jax.experimental.pallas import tpu as pltpu

LN_EPS = 1e-5  # torch.nn.LayerNorm default


def _round_up(a, b):
    return ((a + b - 1) // b) * b


# ----------------------------------------------------------------------------
# One fused kernel for an entire MLP stack (Linear -> LayerNorm -> Tanh per
# layer; Dropout(p=0.2) is identity in eval) with an optional trailing
# corner-max (Encode_Obb's torch.max(..., dim=-2)).  Weights are VMEM-resident
# (constant index_map, single-buffered); intermediates stay in registers/VMEM.
# ----------------------------------------------------------------------------
def _fused_mlp_stack_kernel(*refs, ln_act_flags, corner_group):
    n_layers = len(ln_act_flags)
    x_ref = refs[0]
    o_ref = refs[-1]
    p_refs = refs[1:-1]
    assert len(p_refs) == 2 * n_layers

    h = x_ref[...].astype(jnp.float32)                       # (tm, K0)
    for li in range(n_layers):
        w_ref, prm_ref = p_refs[2 * li], p_refs[2 * li + 1]
        k = h.shape[-1]
        prm = prm_ref[...].astype(jnp.float32)                # (3, N): bias/gamma/beta
        b = prm[0:1, :]
        if k <= 8:
            # Tiny contraction (K=3): VPU broadcast-FMAs instead of a padded
            # MXU matmul (avoids a 3/128-lane activation tile, keeps MXU free).
            w = w_ref[...].astype(jnp.float32)
            y = b
            for j in range(k):
                y = y + h[:, j:j + 1] * w[j:j + 1, :]
        else:
            # Wide layers: weights are bf16-stored in HBM on the fast path
            # (half the DMA bytes); MXU accumulates in f32 either way.
            if w_ref.dtype == jnp.bfloat16:
                y = jnp.dot(h.astype(jnp.bfloat16), w_ref[...],
                            preferred_element_type=jnp.float32) + b
            else:
                y = jnp.dot(h, w_ref[...], preferred_element_type=jnp.float32) + b
        if ln_act_flags[li]:
            # LayerNorm (+ Tanh) in f32 (v5e VPU/EUP have no bf16).
            mean = jnp.mean(y, axis=-1, keepdims=True)
            var = jnp.mean(jnp.square(y - mean), axis=-1, keepdims=True)
            y = (y - mean) * lax.rsqrt(var + LN_EPS)
            y = y * prm[1:2, :] + prm[2:3, :]
            y = jnp.tanh(y)
        h = y

    if corner_group is not None:
        r, c = h.shape
        # Max over each group of `corner_group` rows (= the 8 OBB corners).
        # The reshape only splits the sublane-major dim at a multiple of the
        # (8,128) tile, so it preserves layout; the reduction uses the XLU slot.
        h = jnp.max(h.reshape(r // corner_group, corner_group, c), axis=1)
    o_ref[...] = h.astype(o_ref.dtype)


def fused_mlp_stack(x, layers, *, corner_group=None, tm=256, use_bf16_matmul=True):
    """Run a whole MLP stack (and optional trailing corner-max) in ONE pallas_call.

    x: (M, K0) float32.  layers: list of dicts with 'w' (K,N) [f32],
    'w_bf16' (optional pre-cast copy), 'lnb' packed (3,N) [bias,gamma,beta],
    'ln_act'.  If corner_group is set, rows are reduced (max) in groups of
    `corner_group` (Encode_Obb uses 8 corners per part).
    """
    m, k0 = x.shape
    n_last = layers[-1]['w'].shape[1]

    if corner_group is not None:
        assert m % corner_group == 0
        assert 64 % corner_group == 0

    # Row tile: multiple of 64 so (tile // corner_group) stays sublane-aligned
    # and small workloads collapse to a single grid step.
    tm_eff = max(64, min(_round_up(tm, 64), _round_up(m, 64)))
    # v7x has two TensorCores: keep >= 2 grid steps on the 'parallel' row axis
    # whenever there is enough work so both TCs get a share (no-op on v5e/v6e).
    if _round_up(m, 64) >= 128:
        tm_eff = min(tm_eff, _round_up((m + 1) // 2, 64))
    m_pad = _round_up(m, tm_eff)
    if m_pad != m:
        # Pad once (whole 8-corner parts only); padded rows produce finite
        # values that are sliced off below and never mix with real parts.
        x = jnp.pad(x, ((0, m_pad - m), (0, 0)))

    weight_arrays, param_arrays, ln_act_flags = [], [], []
    flops = 0
    trans = 0
    for lyr in layers:
        k, n = lyr['w'].shape
        if use_bf16_matmul and k >= 128 and lyr.get('w_bf16') is not None:
            w = lyr['w_bf16']            # pre-cast once at init -> half the DMA bytes
        else:
            w = lyr['w']
        prm = lyr.get('lnb')
        if prm is None:                  # packed (3, N): bias / gamma / beta
            prm = jnp.stack([lyr['b'], lyr['gamma'], lyr['beta']], axis=0)
        weight_arrays.append(w)
        param_arrays.append(prm)
        ln_act_flags.append(bool(lyr['ln_act']))
        flops += 2 * m_pad * k * n
        if lyr['ln_act']:
            flops += 8 * m_pad * n
            trans += m_pad * n + m_pad   # tanh per element + rsqrt per row

    if corner_group is None:
        out_rows_pad, out_rows = m_pad, m
        out_block = (tm_eff, n_last)
    else:
        out_rows_pad, out_rows = m_pad // corner_group, m // corner_group
        out_block = (tm_eff // corner_group, n_last)

    param_bytes = sum(int(a.size) * a.dtype.itemsize
                      for a in weight_arrays + param_arrays)
    bytes_accessed = int(x.size) * 4 + param_bytes + out_rows_pad * n_last * 4
    cost = pl.CostEstimate(flops=int(flops), transcendentals=int(trans),
                           bytes_accessed=int(bytes_accessed))

    # Rough VMEM budget: resident params + double-buffered in/out tiles + a few
    # live (tm, Nmax) f32 intermediates, with headroom; clamp so it fits v7x.
    act_bytes = 4 * tm_eff * max([k0] + [l['w'].shape[1] for l in layers])
    vmem_est = (param_bytes + 2 * tm_eff * k0 * 4
                + 2 * out_block[0] * out_block[1] * 4 + 4 * act_bytes + (2 << 20))
    vmem_limit = int(min(max(vmem_est, 16 << 20), 44 << 20))

    kernel = functools.partial(
        _fused_mlp_stack_kernel,
        ln_act_flags=tuple(ln_act_flags),
        corner_group=corner_group)

    def _build(single_buffer):
        def _const_spec(shape):
            # Grid-invariant blocks (weights / LN params): VMEM-resident; a
            # single buffer halves their footprint vs the default 2-deep.
            if single_buffer:
                return pl.BlockSpec(shape, lambda i: (0, 0),
                                    pipeline_mode=pl.Buffered(1))
            return pl.BlockSpec(shape, lambda i: (0, 0))

        in_specs = [pl.BlockSpec((tm_eff, k0), lambda i: (i, 0))]
        for w, prm in zip(weight_arrays, param_arrays):
            in_specs.append(_const_spec(w.shape))
            in_specs.append(_const_spec(prm.shape))
        return pl.pallas_call(
            kernel,
            out_shape=jax.ShapeDtypeStruct((out_rows_pad, n_last), jnp.float32),
            grid_spec=pltpu.PrefetchScalarGridSpec(
                num_scalar_prefetch=0,
                grid=(m_pad // tm_eff,),
                in_specs=in_specs,
                out_specs=pl.BlockSpec(out_block, lambda i: (i, 0)),
            ),
            compiler_params=pltpu.CompilerParams(
                dimension_semantics=("parallel",),
                vmem_limit_bytes=vmem_limit),
            cost_estimate=cost,
        )

    inputs = [x]
    for w, prm in zip(weight_arrays, param_arrays):
        inputs += [w, prm]

    try:
        out = _build(single_buffer=True)(*inputs)
    except Exception:
        # Fallback for jax versions without BlockSpec(pipeline_mode=...):
        # default double-buffered resident weights (identical results).
        out = _build(single_buffer=False)(*inputs)
    return out[:out_rows]


# ----------------------------------------------------------------------------
# Parameter init (deterministic; matches the module __init__ shapes)
# ----------------------------------------------------------------------------
def init_mlp(key, input_size, channels, last_layer_act=True):
    layers = []
    in_size = input_size
    n_layers = len(channels)
    for idx, size in enumerate(channels):
        key, wk = jax.random.split(key)
        std = math.sqrt(2.0 / (in_size + size))              # xavier_normal_
        w = jax.random.normal(wk, (in_size, size), jnp.float32) * std
        b = jnp.zeros((size,), jnp.float32)
        gamma = jnp.ones((size,), jnp.float32)
        beta = jnp.zeros((size,), jnp.float32)
        layers.append(dict(
            w=w, b=b, gamma=gamma, beta=beta,
            # bf16 copy of wide (K>=128) weights: pre-cast ONCE here so the fast
            # path moves half the bytes HBM->VMEM every forward call.
            w_bf16=(w.astype(jnp.bfloat16) if in_size >= 128 else None),
            # bias / gamma / beta packed into one (3, N): 1 DMA instead of 3.
            lnb=jnp.stack([b, gamma, beta], axis=0),
            ln_act=bool(last_layer_act or idx < n_layers - 1),
        ))
        in_size = size
    return layers


def init_predictor_params(key, backbone_out_channels=(32, 64, 128, 256, 512)):
    keys = jax.random.split(key, 6)
    c_last = backbone_out_channels[-1]
    return dict(
        encode_obb=init_mlp(keys[0], 3, [256, 512, 512]),
        main_mlp=init_mlp(keys[1], 3 * c_last, [3 * c_last, 1024, 1024, 1024]),
        motion_type_mlp=init_mlp(keys[2], 1024, [512, 256, 128, 4], last_layer_act=False),
        orientation_layer_mlp=init_mlp(keys[3], 1024, [512, 256, 128, 16], last_layer_act=False),
        residual_mlp=init_mlp(keys[4], 1024, [512, 256, 128, 3], last_layer_act=False),
        rotation_point_mlp=init_mlp(keys[5], 1024, [512, 256, 128, 3], last_layer_act=False),
    )


# ----------------------------------------------------------------------------
# Module forward (MLP, Encode_Obb, Predictor_Transformer)
# ----------------------------------------------------------------------------
def mlp_forward(layers, x, *, use_bf16_matmul=True):
    # Whole stack in one pallas_call (nn.Dropout(p=0.2) is identity in eval).
    return fused_mlp_stack(x, layers, use_bf16_matmul=use_bf16_matmul)


def encode_obb_forward(layers, corners, *, use_bf16_matmul=True):
    p, nc, d = corners.shape                     # (parts, 8, 3)
    # Fully fused: 3x(Linear+LN+Tanh) + max over the 8 corners, one pallas_call.
    return fused_mlp_stack(corners.reshape(p * nc, d), layers,
                           corner_group=nc, use_bf16_matmul=use_bf16_matmul)


def predictor_forward(params, batch_dict, *, use_bf16_matmul=True):
    batch_size = batch_dict['num_parts'].shape[0]
    pc_size = 4096
    part_coord = batch_dict['part_coord'].reshape(batch_size, pc_size, 3)
    del part_coord
    # TODO(synk): backbone (get_model / PointNet++) is undefined in the provided
    # source; the original forward prints its output shape and returns None here.
    # We continue with the next defined compute in the (written) forward:
    return encode_obb_forward(params['encode_obb'], batch_dict['obb_corners'],
                              use_bf16_matmul=use_bf16_matmul)


# ----------------------------------------------------------------------------
# Pure-JAX reference (mirrors the torch module in f32) for verification.
# ----------------------------------------------------------------------------
def _mlp_ref(layers, x):
    for lyr in layers:
        y = x @ lyr['w'] + lyr['b']
        if lyr['ln_act']:
            mean = jnp.mean(y, axis=-1, keepdims=True)
            var = jnp.mean(jnp.square(y - mean), axis=-1, keepdims=True)
            y = (y - mean) / jnp.sqrt(var + LN_EPS) * lyr['gamma'] + lyr['beta']
            y = jnp.tanh(y)
        x = y
    return x


def _encode_obb_ref(layers, corners):
    p, nc, d = corners.shape
    h = _mlp_ref(layers, corners.reshape(p * nc, d))
    return jnp.max(h.reshape(p, nc, -1), axis=1)


# ----------------------------------------------------------------------------
if __name__ == "__main__":
    key = jax.random.PRNGKey(0)
    k_coord, k_obb, k_params = jax.random.split(key, 3)

    batch_size = 2
    pc_size = 4096
    num_parts = jnp.array([3, 2], dtype=jnp.int32)
    total_parts = int(jnp.sum(num_parts))

    batch_dict = dict(
        num_parts=num_parts,
        part_coord=jax.random.normal(k_coord, (batch_size * pc_size, 3), jnp.float32),
        obb_corners=jax.random.normal(k_obb, (total_parts, 8, 3), jnp.float32),
    )

    params = init_predictor_params(k_params)

    # Fast path: single fused pallas_call, bf16-stored weights + f32 accumulation.
    out = predictor_forward(params, batch_dict)
    out = jax.block_until_ready(out)
    assert out.shape == (total_parts, 512), out.shape
    assert bool(jnp.all(jnp.isfinite(out)))

    ref = _encode_obb_ref(params['encode_obb'], batch_dict['obb_corners'])
    bf16_err = float(jnp.max(jnp.abs(out - ref)))
    assert bf16_err < 1e-1, bf16_err   # documented bf16-weight speed/accuracy trade

    # f32 path: should match the pure-JAX reference tightly.
    out_f32 = predictor_forward(params, batch_dict, use_bf16_matmul=False)
    out_f32 = jax.block_until_ready(out_f32)
    f32_err = float(jnp.max(jnp.abs(out_f32 - ref)))
    assert f32_err < 5e-3, f32_err

    print("KERNEL_OK")
</pallas_src>

<mosaic_0001>
module attributes {stable_mosaic.version = 11 : i64} {
  func.func @_fused_mlp_stack_kernel(%arg0: i32, %arg1: memref<64x3xf32, #tpu.memory_space<vmem>>, %arg2: memref<3x256xf32, #tpu.memory_space<vmem>>, %arg3: memref<3x256xf32, #tpu.memory_space<vmem>>, %arg4: memref<256x512xbf16, #tpu.memory_space<vmem>>, %arg5: memref<3x512xf32, #tpu.memory_space<vmem>>, %arg6: memref<512x512xbf16, #tpu.memory_space<vmem>>, %arg7: memref<3x512xf32, #tpu.memory_space<vmem>>, %arg8: memref<8x512xf32, #tpu.memory_space<vmem>>) attributes {dimension_semantics = [#tpu.dimension_semantics<parallel>], iteration_bounds = array<i64: 1>, scalar_prefetch = 0 : i64, scratch_operands = 0 : i64, tpu.core_type = #tpu.core_type<tc>, window_params = [{transform_indices = @transform_0, window_bounds = array<i64: 64, 3>}, {pipeline_mode = #tpu.pipeline_mode<synchronous>, transform_indices = @transform_1, window_bounds = array<i64: 3, 256>}, {pipeline_mode = #tpu.pipeline_mode<synchronous>, transform_indices = @transform_2, window_bounds = array<i64: 3, 256>}, {pipeline_mode = #tpu.pipeline_mode<synchronous>, transform_indices = @transform_3, window_bounds = array<i64: 256, 512>}, {pipeline_mode = #tpu.pipeline_mode<synchronous>, transform_indices = @transform_4, window_bounds = array<i64: 3, 512>}, {pipeline_mode = #tpu.pipeline_mode<synchronous>, transform_indices = @transform_5, window_bounds = array<i64: 512, 512>}, {pipeline_mode = #tpu.pipeline_mode<synchronous>, transform_indices = @transform_6, window_bounds = array<i64: 3, 512>}, {transform_indices = @transform_7, window_bounds = array<i64: 8, 512>}]} {
    %c0 = arith.constant 0 : index
    %c0_0 = arith.constant 0 : index
    %0 = vector.load %arg1[%c0, %c0_0] : memref<64x3xf32, #tpu.memory_space<vmem>>, vector<64x3xf32>
    %c0_1 = arith.constant 0 : index
    %c0_2 = arith.constant 0 : index
    %1 = vector.load %arg3[%c0_1, %c0_2] : memref<3x256xf32, #tpu.memory_space<vmem>>, vector<3x256xf32>
    %2 = vector.extract_strided_slice %1 {offsets = [0, 0], sizes = [1, 256], strides = [1, 1]} : vector<3x256xf32> to vector<1x256xf32>
    %c0_3 = arith.constant 0 : index
    %c0_4 = arith.constant 0 : index
    %3 = vector.load %arg2[%c0_3, %c0_4] : memref<3x256xf32, #tpu.memory_space<vmem>>, vector<3x256xf32>
    %4 = vector.extract_strided_slice %0 {offsets = [0, 0], sizes = [64, 1], strides = [1, 1]} : vector<64x3xf32> to vector<64x1xf32>
    %5 = vector.extract_strided_slice %3 {offsets = [0, 0], sizes = [1, 256], strides = [1, 1]} : vector<3x256xf32> to vector<1x256xf32>
    %6 = vector.broadcast %4 : vector<64x1xf32> to vector<64x256xf32>
    %7 = vector.broadcast %5 : vector<1x256xf32> to vector<64x256xf32>
    %8 = arith.mulf %6, %7 : vector<64x256xf32>
    %9 = vector.broadcast %2 : vector<1x256xf32> to vector<64x256xf32>
    %10 = arith.addf %9, %8 : vector<64x256xf32>
    %11 = vector.extract_strided_slice %0 {offsets = [0, 1], sizes = [64, 1], strides = [1, 1]} : vector<64x3xf32> to vector<64x1xf32>
    %12 = vector.extract_strided_slice %3 {offsets = [1, 0], sizes = [1, 256], strides = [1, 1]} : vector<3x256xf32> to vector<1x256xf32>
    %13 = vector.broadcast %11 : vector<64x1xf32> to vector<64x256xf32>
    %14 = vector.broadcast %12 : vector<1x256xf32> to vector<64x256xf32>
    %15 = arith.mulf %13, %14 : vector<64x256xf32>
    %16 = arith.addf %10, %15 : vector<64x256xf32>
    %17 = vector.extract_strided_slice %0 {offsets = [0, 2], sizes = [64, 1], strides = [1, 1]} : vector<64x3xf32> to vector<64x1xf32>
    %18 = vector.extract_strided_slice %3 {offsets = [2, 0], sizes = [1, 256], strides = [1, 1]} : vector<3x256xf32> to vector<1x256xf32>
    %19 = vector.broadcast %17 : vector<64x1xf32> to vector<64x256xf32>
    %20 = vector.broadcast %18 : vector<1x256xf32> to vector<64x256xf32>
    %21 = arith.mulf %19, %20 : vector<64x256xf32>
    %22 = arith.addf %16, %21 : vector<64x256xf32>
    %cst = arith.constant dense<0.000000e+00> : vector<64xf32>
    %23 = vector.multi_reduction <add>, %22, %cst [1] : vector<64x256xf32> to vector<64xf32>
    %24 = vector.shape_cast %23 : vector<64xf32> to vector<64x1xf32>
    %cst_5 = arith.constant 2.560000e+02 : f32
    %25 = vector.broadcast %cst_5 : f32 to vector<64x1xf32>
    %26 = arith.divf %24, %25 : vector<64x1xf32>
    %27 = vector.broadcast %26 : vector<64x1xf32> to vector<64x256xf32>
    %28 = arith.subf %22, %27 : vector<64x256xf32>
    %29 = arith.mulf %28, %28 : vector<64x256xf32>
    %cst_6 = arith.constant dense<0.000000e+00> : vector<64xf32>
    %30 = vector.multi_reduction <add>, %29, %cst_6 [1] : vector<64x256xf32> to vector<64xf32>
    %31 = vector.shape_cast %30 : vector<64xf32> to vector<64x1xf32>
    %cst_7 = arith.constant 2.560000e+02 : f32
    %32 = vector.broadcast %cst_7 : f32 to vector<64x1xf32>
    %33 = arith.divf %31, %32 : vector<64x1xf32>
    %34 = vector.broadcast %26 : vector<64x1xf32> to vector<64x256xf32>
    %35 = arith.subf %22, %34 : vector<64x256xf32>
    %cst_8 = arith.constant 9.99999974E-6 : f32
    %36 = vector.broadcast %cst_8 : f32 to vector<64x1xf32>
    %37 = arith.addf %33, %36 : vector<64x1xf32>
    %38 = math.rsqrt %37 : vector<64x1xf32>
    %39 = vector.broadcast %38 : vector<64x1xf32> to vector<64x256xf32>
    %40 = arith.mulf %35, %39 : vector<64x256xf32>
    %41 = vector.extract_strided_slice %1 {offsets = [1, 0], sizes = [1, 256], strides = [1, 1]} : vector<3x256xf32> to vector<1x256xf32>
    %42 = vector.broadcast %41 : vector<1x256xf32> to vector<64x256xf32>
    %43 = arith.mulf %40, %42 : vector<64x256xf32>
    %44 = vector.extract_strided_slice %1 {offsets = [2, 0], sizes = [1, 256], strides = [1, 1]} : vector<3x256xf32> to vector<1x256xf32>
    %45 = vector.broadcast %44 : vector<1x256xf32> to vector<64x256xf32>
    %46 = arith.addf %43, %45 : vector<64x256xf32>
    %47 = math.tanh %46 : vector<64x256xf32>
    %c0_9 = arith.constant 0 : index
    %c0_10 = arith.constant 0 : index
    %48 = vector.load %arg5[%c0_9, %c0_10] : memref<3x512xf32, #tpu.memory_space<vmem>>, vector<3x512xf32>
    %49 = vector.extract_strided_slice %48 {offsets = [0, 0], sizes = [1, 512], strides = [1, 1]} : vector<3x512xf32> to vector<1x512xf32>
    %50 = arith.truncf %47 : vector<64x256xf32> to vector<64x256xbf16>
    %c0_11 = arith.constant 0 : index
    %c0_12 = arith.constant 0 : index
    %51 = vector.load %arg4[%c0_11, %c0_12] : memref<256x512xbf16, #tpu.memory_space<vmem>>, vector<256x512xbf16>
    %cst_13 = arith.constant dense<0.000000e+00> : vector<64x512xf32>
    %52 = tpu.matmul %50, %51, %cst_13 {dimension_numbers = #tpu.dot_dimension_numbers<[1], [0], [0], [1], [0, 0, 1, 1], [], []>} : vector<64x256xbf16>, vector<256x512xbf16>, vector<64x512xf32> -> vector<64x512xf32>
    %53 = vector.broadcast %49 : vector<1x512xf32> to vector<64x512xf32>
    %54 = arith.addf %52, %53 : vector<64x512xf32>
    %cst_14 = arith.constant dense<0.000000e+00> : vector<64xf32>
    %55 = vector.multi_reduction <add>, %54, %cst_14 [1] : vector<64x512xf32> to vector<64xf32>
    %56 = vector.shape_cast %55 : vector<64xf32> to vector<64x1xf32>
    %cst_15 = arith.constant 5.120000e+02 : f32
    %57 = vector.broadcast %cst_15 : f32 to vector<64x1xf32>
    %58 = arith.divf %56, %57 : vector<64x1xf32>
    %59 = vector.broadcast %58 : vector<64x1xf32> to vector<64x512xf32>
    %60 = arith.subf %54, %59 : vector<64x512xf32>
    %61 = arith.mulf %60, %60 : vector<64x512xf32>
    %cst_16 = arith.constant dense<0.000000e+00> : vector<64xf32>
    %62 = vector.multi_reduction <add>, %61, %cst_16 [1] : vector<64x512xf32> to vector<64xf32>
    %63 = vector.shape_cast %62 : vector<64xf32> to vector<64x1xf32>
    %cst_17 = arith.constant 5.120000e+02 : f32
    %64 = vector.broadcast %cst_17 : f32 to vector<64x1xf32>
    %65 = arith.divf %63, %64 : vector<64x1xf32>
    %66 = vector.broadcast %58 : vector<64x1xf32> to vector<64x512xf32>
    %67 = arith.subf %54, %66 : vector<64x512xf32>
    %cst_18 = arith.constant 9.99999974E-6 : f32
    %68 = vector.broadcast %cst_18 : f32 to vector<64x1xf32>
    %69 = arith.addf %65, %68 : vector<64x1xf32>
    %70 = math.rsqrt %69 : vector<64x1xf32>
    %71 = vector.broadcast %70 : vector<64x1xf32> to vector<64x512xf32>
    %72 = arith.mulf %67, %71 : vector<64x512xf32>
    %73 = vector.extract_strided_slice %48 {offsets = [1, 0], sizes = [1, 512], strides = [1, 1]} : vector<3x512xf32> to vector<1x512xf32>
    %74 = vector.broadcast %73 : vector<1x512xf32> to vector<64x512xf32>
    %75 = arith.mulf %72, %74 : vector<64x512xf32>
    %76 = vector.extract_strided_slice %48 {offsets = [2, 0], sizes = [1, 512], strides = [1, 1]} : vector<3x512xf32> to vector<1x512xf32>
    %77 = vector.broadcast %76 : vector<1x512xf32> to vector<64x512xf32>
    %78 = arith.addf %75, %77 : vector<64x512xf32>
    %79 = math.tanh %78 : vector<64x512xf32>
    %c0_19 = arith.constant 0 : index
    %c0_20 = arith.constant 0 : index
    %80 = vector.load %arg7[%c0_19, %c0_20] : memref<3x512xf32, #tpu.memory_space<vmem>>, vector<3x512xf32>
    %81 = vector.extract_strided_slice %80 {offsets = [0, 0], sizes = [1, 512], strides = [1, 1]} : vector<3x512xf32> to vector<1x512xf32>
    %82 = arith.truncf %79 : vector<64x512xf32> to vector<64x512xbf16>
    %c0_21 = arith.constant 0 : index
    %c0_22 = arith.constant 0 : index
    %83 = vector.load %arg6[%c0_21, %c0_22] : memref<512x512xbf16, #tpu.memory_space<vmem>>, vector<512x512xbf16>
    %cst_23 = arith.constant dense<0.000000e+00> : vector<64x512xf32>
    %84 = tpu.matmul %82, %83, %cst_23 {dimension_numbers = #tpu.dot_dimension_numbers<[1], [0], [0], [1], [0, 0, 1, 1], [], []>} : vector<64x512xbf16>, vector<512x512xbf16>, vector<64x512xf32> -> vector<64x512xf32>
    %85 = vector.broadcast %81 : vector<1x512xf32> to vector<64x512xf32>
    %86 = arith.addf %84, %85 : vector<64x512xf32>
    %cst_24 = arith.constant dense<0.000000e+00> : vector<64xf32>
    %87 = vector.multi_reduction <add>, %86, %cst_24 [1] : vector<64x512xf32> to vector<64xf32>
    %88 = vector.shape_cast %87 : vector<64xf32> to vector<64x1xf32>
    %cst_25 = arith.constant 5.120000e+02 : f32
    %89 = vector.broadcast %cst_25 : f32 to vector<64x1xf32>
    %90 = arith.divf %88, %89 : vector<64x1xf32>
    %91 = vector.broadcast %90 : vector<64x1xf32> to vector<64x512xf32>
    %92 = arith.subf %86, %91 : vector<64x512xf32>
    %93 = arith.mulf %92, %92 : vector<64x512xf32>
    %cst_26 = arith.constant dense<0.000000e+00> : vector<64xf32>
    %94 = vector.multi_reduction <add>, %93, %cst_26 [1] : vector<64x512xf32> to vector<64xf32>
    %95 = vector.shape_cast %94 : vector<64xf32> to vector<64x1xf32>
    %cst_27 = arith.constant 5.120000e+02 : f32
    %96 = vector.broadcast %cst_27 : f32 to vector<64x1xf32>
    %97 = arith.divf %95, %96 : vector<64x1xf32>
    %98 = vector.broadcast %90 : vector<64x1xf32> to vector<64x512xf32>
    %99 = arith.subf %86, %98 : vector<64x512xf32>
    %cst_28 = arith.constant 9.99999974E-6 : f32
    %100 = vector.broadcast %cst_28 : f32 to vector<64x1xf32>
    %101 = arith.addf %97, %100 : vector<64x1xf32>
    %102 = math.rsqrt %101 : vector<64x1xf32>
    %103 = vector.broadcast %102 : vector<64x1xf32> to vector<64x512xf32>
    %104 = arith.mulf %99, %103 : vector<64x512xf32>
    %105 = vector.extract_strided_slice %80 {offsets = [1, 0], sizes = [1, 512], strides = [1, 1]} : vector<3x512xf32> to vector<1x512xf32>
    %106 = vector.broadcast %105 : vector<1x512xf32> to vector<64x512xf32>
    %107 = arith.mulf %104, %106 : vector<64x512xf32>
    %108 = vector.extract_strided_slice %80 {offsets = [2, 0], sizes = [1, 512], strides = [1, 1]} : vector<3x512xf32> to vector<1x512xf32>
    %109 = vector.broadcast %108 : vector<1x512xf32> to vector<64x512xf32>
    %110 = arith.addf %107, %109 : vector<64x512xf32>
    %111 = math.tanh %110 : vector<64x512xf32>
    %112 = vector.shape_cast %111 : vector<64x512xf32> to vector<8x8x512xf32>
    %cst_29 = arith.constant dense<0xFF800000> : vector<8x512xf32>
    %113 = vector.multi_reduction <maximumf>, %112, %cst_29 [1] : vector<8x8x512xf32> to vector<8x512xf32>
    %c0_30 = arith.constant 0 : index
    %c0_31 = arith.constant 0 : index
    %114 = vector.load %arg8[%c0_30, %c0_31] : memref<8x512xf32, #tpu.memory_space<vmem>>, vector<8x512xf32>
    tpu.vector_store %arg8[%c0_30, %c0_31], %113 {strides = array<i32>} : memref<8x512xf32, #tpu.memory_space<vmem>>, vector<8x512xf32>,
    return
  }
  func.func @transform_0(%arg0: i32) -> (i32, i32) {
    %c0_i32 = arith.constant 0 : i32
    %c0_i32_0 = arith.constant 0 : i32
    return %arg0, %c0_i32 : i32, i32
  }
  func.func @transform_1(%arg0: i32) -> (i32, i32) {
    %c0_i32 = arith.constant 0 : i32
    %c0_i32_0 = arith.constant 0 : i32
    %c0_i32_1 = arith.constant 0 : i32
    return %c0_i32, %c0_i32_0 : i32, i32
  }
  func.func @transform_2(%arg0: i32) -> (i32, i32) {
    %c0_i32 = arith.constant 0 : i32
    %c0_i32_0 = arith.constant 0 : i32
    %c0_i32_1 = arith.constant 0 : i32
    return %c0_i32, %c0_i32_0 : i32, i32
  }
  func.func @transform_3(%arg0: i32) -> (i32, i32) {
    %c0_i32 = arith.constant 0 : i32
    %c0_i32_0 = arith.constant 0 : i32
    %c0_i32_1 = arith.constant 0 : i32
    return %c0_i32, %c0_i32_0 : i32, i32
  }
  func.func @transform_4(%arg0: i32) -> (i32, i32) {
    %c0_i32 = arith.constant 0 : i32
    %c0_i32_0 = arith.constant 0 : i32
    %c0_i32_1 = arith.constant 0 : i32
    return %c0_i32, %c0_i32_0 : i32, i32
  }
  func.func @transform_5(%arg0: i32) -> (i32, i32) {
    %c0_i32 = arith.constant 0 : i32
    %c0_i32_0 = arith.constant 0 : i32
    %c0_i32_1 = arith.constant 0 : i32
    return %c0_i32, %c0_i32_0 : i32, i32
  }
  func.func @transform_6(%arg0: i32) -> (i32, i32) {
    %c0_i32 = arith.constant 0 : i32
    %c0_i32_0 = arith.constant 0 : i32
    %c0_i32_1 = arith.constant 0 : i32
    return %c0_i32, %c0_i32_0 : i32, i32
  }
  func.func @transform_7(%arg0: i32) -> (i32, i32) {
    %c0_i32 = arith.constant 0 : i32
    %c0_i32_0 = arith.constant 0 : i32
    return %arg0, %c0_i32 : i32, i32
  }
}

module attributes {stable_mosaic.version = 11 : i64} {
  func.func @_fused_mlp_stack_kernel(%arg0: i32, %arg1: memref<64x3xf32, #tpu.memory_space<vmem>>, %arg2: memref<3x256xf32, #tpu.memory_space<vmem>>, %arg3: memref<3x256xf32, #tpu.memory_space<vmem>>, %arg4: memref<256x512xbf16, #tpu.memory_space<vmem>>, %arg5: memref<3x512xf32, #tpu.memory_space<vmem>>, %arg6: memref<512x512xbf16, #tpu.memory_space<vmem>>, %arg7: memref<3x512xf32, #tpu.memory_space<vmem>>, %arg8: memref<8x512xf32, #tpu.memory_space<vmem>>) attributes {dimension_semantics = [#tpu.dimension_semantics<parallel>], iteration_bounds = array<i64: 1>, scalar_prefetch = 0 : i64, scratch_operands = 0 : i64, tpu.core_type = #tpu.core_type<tc>, window_params = [{transform_indices = @transform_0, window_bounds = array<i64: 64, 3>}, {pipeline_mode = #tpu.pipeline_mode<synchronous>, transform_indices = @transform_1, window_bounds = array<i64: 3, 256>}, {pipeline_mode = #tpu.pipeline_mode<synchronous>, transform_indices = @transform_2, window_bounds = array<i64: 3, 256>}, {pipeline_mode = #tpu.pipeline_mode<synchronous>, transform_indices = @transform_3, window_bounds = array<i64: 256, 512>}, {pipeline_mode = #tpu.pipeline_mode<synchronous>, transform_indices = @transform_4, window_bounds = array<i64: 3, 512>}, {pipeline_mode = #tpu.pipeline_mode<synchronous>, transform_indices = @transform_5, window_bounds = array<i64: 512, 512>}, {pipeline_mode = #tpu.pipeline_mode<synchronous>, transform_indices = @transform_6, window_bounds = array<i64: 3, 512>}, {transform_indices = @transform_7, window_bounds = array<i64: 8, 512>}]} {
    %c0 = arith.constant 0 : index
    %c0_0 = arith.constant 0 : index
    %0 = vector.load %arg1[%c0, %c0_0] : memref<64x3xf32, #tpu.memory_space<vmem>>, vector<64x3xf32>
    %c0_1 = arith.constant 0 : index
    %c0_2 = arith.constant 0 : index
    %1 = vector.load %arg3[%c0_1, %c0_2] : memref<3x256xf32, #tpu.memory_space<vmem>>, vector<3x256xf32>
    %2 = vector.extract_strided_slice %1 {offsets = [0, 0], sizes = [1, 256], strides = [1, 1]} : vector<3x256xf32> to vector<1x256xf32>
    %c0_3 = arith.constant 0 : index
    %c0_4 = arith.constant 0 : index
    %3 = vector.load %arg2[%c0_3, %c0_4] : memref<3x256xf32, #tpu.memory_space<vmem>>, vector<3x256xf32>
    %4 = vector.extract_strided_slice %0 {offsets = [0, 0], sizes = [64, 1], strides = [1, 1]} : vector<64x3xf32> to vector<64x1xf32>
    %5 = vector.extract_strided_slice %3 {offsets = [0, 0], sizes = [1, 256], strides = [1, 1]} : vector<3x256xf32> to vector<1x256xf32>
    %6 = vector.broadcast %4 : vector<64x1xf32> to vector<64x256xf32>
    %7 = vector.broadcast %5 : vector<1x256xf32> to vector<64x256xf32>
    %8 = arith.mulf %6, %7 : vector<64x256xf32>
    %9 = vector.broadcast %2 : vector<1x256xf32> to vector<64x256xf32>
    %10 = arith.addf %9, %8 : vector<64x256xf32>
    %11 = vector.extract_strided_slice %0 {offsets = [0, 1], sizes = [64, 1], strides = [1, 1]} : vector<64x3xf32> to vector<64x1xf32>
    %12 = vector.extract_strided_slice %3 {offsets = [1, 0], sizes = [1, 256], strides = [1, 1]} : vector<3x256xf32> to vector<1x256xf32>
    %13 = vector.broadcast %11 : vector<64x1xf32> to vector<64x256xf32>
    %14 = vector.broadcast %12 : vector<1x256xf32> to vector<64x256xf32>
    %15 = arith.mulf %13, %14 : vector<64x256xf32>
    %16 = arith.addf %10, %15 : vector<64x256xf32>
    %17 = vector.extract_strided_slice %0 {offsets = [0, 2], sizes = [64, 1], strides = [1, 1]} : vector<64x3xf32> to vector<64x1xf32>
    %18 = vector.extract_strided_slice %3 {offsets = [2, 0], sizes = [1, 256], strides = [1, 1]} : vector<3x256xf32> to vector<1x256xf32>
    %19 = vector.broadcast %17 : vector<64x1xf32> to vector<64x256xf32>
    %20 = vector.broadcast %18 : vector<1x256xf32> to vector<64x256xf32>
    %21 = arith.mulf %19, %20 : vector<64x256xf32>
    %22 = arith.addf %16, %21 : vector<64x256xf32>
    %cst = arith.constant dense<0.000000e+00> : vector<64xf32>
    %23 = vector.multi_reduction <add>, %22, %cst [1] : vector<64x256xf32> to vector<64xf32>
    %24 = vector.shape_cast %23 : vector<64xf32> to vector<64x1xf32>
    %cst_5 = arith.constant 2.560000e+02 : f32
    %25 = vector.broadcast %cst_5 : f32 to vector<64x1xf32>
    %26 = arith.divf %24, %25 : vector<64x1xf32>
    %27 = vector.broadcast %26 : vector<64x1xf32> to vector<64x256xf32>
    %28 = arith.subf %22, %27 : vector<64x256xf32>
    %29 = arith.mulf %28, %28 : vector<64x256xf32>
    %cst_6 = arith.constant dense<0.000000e+00> : vector<64xf32>
    %30 = vector.multi_reduction <add>, %29, %cst_6 [1] : vector<64x256xf32> to vector<64xf32>
    %31 = vector.shape_cast %30 : vector<64xf32> to vector<64x1xf32>
    %cst_7 = arith.constant 2.560000e+02 : f32
    %32 = vector.broadcast %cst_7 : f32 to vector<64x1xf32>
    %33 = arith.divf %31, %32 : vector<64x1xf32>
    %34 = vector.broadcast %26 : vector<64x1xf32> to vector<64x256xf32>
    %35 = arith.subf %22, %34 : vector<64x256xf32>
    %cst_8 = arith.constant 9.99999974E-6 : f32
    %36 = vector.broadcast %cst_8 : f32 to vector<64x1xf32>
    %37 = arith.addf %33, %36 : vector<64x1xf32>
    %38 = math.rsqrt %37 : vector<64x1xf32>
    %39 = vector.broadcast %38 : vector<64x1xf32> to vector<64x256xf32>
    %40 = arith.mulf %35, %39 : vector<64x256xf32>
    %41 = vector.extract_strided_slice %1 {offsets = [1, 0], sizes = [1, 256], strides = [1, 1]} : vector<3x256xf32> to vector<1x256xf32>
    %42 = vector.broadcast %41 : vector<1x256xf32> to vector<64x256xf32>
    %43 = arith.mulf %40, %42 : vector<64x256xf32>
    %44 = vector.extract_strided_slice %1 {offsets = [2, 0], sizes = [1, 256], strides = [1, 1]} : vector<3x256xf32> to vector<1x256xf32>
    %45 = vector.broadcast %44 : vector<1x256xf32> to vector<64x256xf32>
    %46 = arith.addf %43, %45 : vector<64x256xf32>
    %47 = math.tanh %46 : vector<64x256xf32>
    %c0_9 = arith.constant 0 : index
    %c0_10 = arith.constant 0 : index
    %48 = vector.load %arg5[%c0_9, %c0_10] : memref<3x512xf32, #tpu.memory_space<vmem>>, vector<3x512xf32>
    %49 = vector.extract_strided_slice %48 {offsets = [0, 0], sizes = [1, 512], strides = [1, 1]} : vector<3x512xf32> to vector<1x512xf32>
    %50 = arith.truncf %47 : vector<64x256xf32> to vector<64x256xbf16>
    %c0_11 = arith.constant 0 : index
    %c0_12 = arith.constant 0 : index
    %51 = vector.load %arg4[%c0_11, %c0_12] : memref<256x512xbf16, #tpu.memory_space<vmem>>, vector<256x512xbf16>
    %cst_13 = arith.constant dense<0.000000e+00> : vector<64x512xf32>
    %52 = tpu.matmul %50, %51, %cst_13 {dimension_numbers = #tpu.dot_dimension_numbers<[1], [0], [0], [1], [0, 0, 1, 1], [], []>} : vector<64x256xbf16>, vector<256x512xbf16>, vector<64x512xf32> -> vector<64x512xf32>
    %53 = vector.broadcast %49 : vector<1x512xf32> to vector<64x512xf32>
    %54 = arith.addf %52, %53 : vector<64x512xf32>
    %cst_14 = arith.constant dense<0.000000e+00> : vector<64xf32>
    %55 = vector.multi_reduction <add>, %54, %cst_14 [1] : vector<64x512xf32> to vector<64xf32>
    %56 = vector.shape_cast %55 : vector<64xf32> to vector<64x1xf32>
    %cst_15 = arith.constant 5.120000e+02 : f32
    %57 = vector.broadcast %cst_15 : f32 to vector<64x1xf32>
    %58 = arith.divf %56, %57 : vector<64x1xf32>
    %59 = vector.broadcast %58 : vector<64x1xf32> to vector<64x512xf32>
    %60 = arith.subf %54, %59 : vector<64x512xf32>
    %61 = arith.mulf %60, %60 : vector<64x512xf32>
    %cst_16 = arith.constant dense<0.000000e+00> : vector<64xf32>
    %62 = vector.multi_reduction <add>, %61, %cst_16 [1] : vector<64x512xf32> to vector<64xf32>
    %63 = vector.shape_cast %62 : vector<64xf32> to vector<64x1xf32>
    %cst_17 = arith.constant 5.120000e+02 : f32
    %64 = vector.broadcast %cst_17 : f32 to vector<64x1xf32>
    %65 = arith.divf %63, %64 : vector<64x1xf32>
    %66 = vector.broadcast %58 : vector<64x1xf32> to vector<64x512xf32>
    %67 = arith.subf %54, %66 : vector<64x512xf32>
    %cst_18 = arith.constant 9.99999974E-6 : f32
    %68 = vector.broadcast %cst_18 : f32 to vector<64x1xf32>
    %69 = arith.addf %65, %68 : vector<64x1xf32>
    %70 = math.rsqrt %69 : vector<64x1xf32>
    %71 = vector.broadcast %70 : vector<64x1xf32> to vector<64x512xf32>
    %72 = arith.mulf %67, %71 : vector<64x512xf32>
    %73 = vector.extract_strided_slice %48 {offsets = [1, 0], sizes = [1, 512], strides = [1, 1]} : vector<3x512xf32> to vector<1x512xf32>
    %74 = vector.broadcast %73 : vector<1x512xf32> to vector<64x512xf32>
    %75 = arith.mulf %72, %74 : vector<64x512xf32>
    %76 = vector.extract_strided_slice %48 {offsets = [2, 0], sizes = [1, 512], strides = [1, 1]} : vector<3x512xf32> to vector<1x512xf32>
    %77 = vector.broadcast %76 : vector<1x512xf32> to vector<64x512xf32>
    %78 = arith.addf %75, %77 : vector<64x512xf32>
    %79 = math.tanh %78 : vector<64x512xf32>
    %c0_19 = arith.constant 0 : index
    %c0_20 = arith.constant 0 : index
    %80 = vector.load %arg7[%c0_19, %c0_20] : memref<3x512xf32, #tpu.memory_space<vmem>>, vector<3x512xf32>
    %81 = vector.extract_strided_slice %80 {offsets = [0, 0], sizes = [1, 512], strides = [1, 1]} : vector<3x512xf32> to vector<1x512xf32>
    %82 = arith.truncf %79 : vector<64x512xf32> to vector<64x512xbf16>
    %c0_21 = arith.constant 0 : index
    %c0_22 = arith.constant 0 : index
    %83 = vector.load %arg6[%c0_21, %c0_22] : memref<512x512xbf16, #tpu.memory_space<vmem>>, vector<512x512xbf16>
    %cst_23 = arith.constant dense<0.000000e+00> : vector<64x512xf32>
    %84 = tpu.matmul %82, %83, %cst_23 {dimension_numbers = #tpu.dot_dimension_numbers<[1], [0], [0], [1], [0, 0, 1, 1], [], []>} : vector<64x512xbf16>, vector<512x512xbf16>, vector<64x512xf32> -> vector<64x512xf32>
    %85 = vector.broadcast %81 : vector<1x512xf32> to vector<64x512xf32>
    %86 = arith.addf %84, %85 : vector<64x512xf32>
    %cst_24 = arith.constant dense<0.000000e+00> : vector<64xf32>
    %87 = vector.multi_reduction <add>, %86, %cst_24 [1] : vector<64x512xf32> to vector<64xf32>
    %88 = vector.shape_cast %87 : vector<64xf32> to vector<64x1xf32>
    %cst_25 = arith.constant 5.120000e+02 : f32
    %89 = vector.broadcast %cst_25 : f32 to vector<64x1xf32>
    %90 = arith.divf %88, %89 : vector<64x1xf32>
    %91 = vector.broadcast %90 : vector<64x1xf32> to vector<64x512xf32>
    %92 = arith.subf %86, %91 : vector<64x512xf32>
    %93 = arith.mulf %92, %92 : vector<64x512xf32>
    %cst_26 = arith.constant dense<0.000000e+00> : vector<64xf32>
    %94 = vector.multi_reduction <add>, %93, %cst_26 [1] : vector<64x512xf32> to vector<64xf32>
    %95 = vector.shape_cast %94 : vector<64xf32> to vector<64x1xf32>
    %cst_27 = arith.constant 5.120000e+02 : f32
    %96 = vector.broadcast %cst_27 : f32 to vector<64x1xf32>
    %97 = arith.divf %95, %96 : vector<64x1xf32>
    %98 = vector.broadcast %90 : vector<64x1xf32> to vector<64x512xf32>
    %99 = arith.subf %86, %98 : vector<64x512xf32>
    %cst_28 = arith.constant 9.99999974E-6 : f32
    %100 = vector.broadcast %cst_28 : f32 to vector<64x1xf32>
    %101 = arith.addf %97, %100 : vector<64x1xf32>
    %102 = math.rsqrt %101 : vector<64x1xf32>
    %103 = vector.broadcast %102 : vector<64x1xf32> to vector<64x512xf32>
    %104 = arith.mulf %99, %103 : vector<64x512xf32>
    %105 = vector.extract_strided_slice %80 {offsets = [1, 0], sizes = [1, 512], strides = [1, 1]} : vector<3x512xf32> to vector<1x512xf32>
    %106 = vector.broadcast %105 : vector<1x512xf32> to vector<64x512xf32>
    %107 = arith.mulf %104, %106 : vector<64x512xf32>
    %108 = vector.extract_strided_slice %80 {offsets = [2, 0], sizes = [1, 512], strides = [1, 1]} : vector<3x512xf32> to vector<1x512xf32>
    %109 = vector.broadcast %108 : vector<1x512xf32> to vector<64x512xf32>
    %110 = arith.addf %107, %109 : vector<64x512xf32>
    %111 = math.tanh %110 : vector<64x512xf32>
    %112 = vector.shape_cast %111 : vector<64x512xf32> to vector<8x8x512xf32>
    %cst_29 = arith.constant dense<0xFF800000> : vector<8x512xf32>
    %113 = vector.multi_reduction <maximumf>, %112, %cst_29 [1] : vector<8x8x512xf32> to vector<8x512xf32>
    %c0_30 = arith.constant 0 : index
    %c0_31 = arith.constant 0 : index
    %114 = vector.load %arg8[%c0_30, %c0_31] : memref<8x512xf32, #tpu.memory_space<vmem>>, vector<8x512xf32>
    tpu.vector_store %arg8[%c0_30, %c0_31], %113 {strides = array<i32>} : memref<8x512xf32, #tpu.memory_space<vmem>>, vector<8x512xf32>,
    return
  }
  func.func @transform_0(%arg0: i32) -> (i32, i32) {
    %c0_i32 = arith.constant 0 : i32
    %c0_i32_0 = arith.constant 0 : i32
    return %arg0, %c0_i32 : i32, i32
  }
  func.func @transform_1(%arg0: i32) -> (i32, i32) {
    %c0_i32 = arith.constant 0 : i32
    %c0_i32_0 = arith.constant 0 : i32
    %c0_i32_1 = arith.constant 0 : i32
    return %c0_i32, %c0_i32_0 : i32, i32
  }
  func.func @transform_2(%arg0: i32) -> (i32, i32) {
    %c0_i32 = arith.constant 0 : i32
    %c0_i32_0 = arith.constant 0 : i32
    %c0_i32_1 = arith.constant 0 : i32
    return %c0_i32, %c0_i32_0 : i32, i32
  }
  func.func @transform_3(%arg0: i32) -> (i32, i32) {
    %c0_i32 = arith.constant 0 : i32
    %c0_i32_0 = arith.constant 0 : i32
    %c0_i32_1 = arith.constant 0 : i32
    return %c0_i32, %c0_i32_0 : i32, i32
  }
  func.func @transform_4(%arg0: i32) -> (i32, i32) {
    %c0_i32 = arith.constant 0 : i32
    %c0_i32_0 = arith.constant 0 : i32
    %c0_i32_1 = arith.constant 0 : i32
    return %c0_i32, %c0_i32_0 : i32, i32
  }
  func.func @transform_5(%arg0: i32) -> (i32, i32) {
    %c0_i32 = arith.constant 0 : i32
    %c0_i32_0 = arith.constant 0 : i32
    %c0_i32_1 = arith.constant 0 : i32
    return %c0_i32, %c0_i32_0 : i32, i32
  }
  func.func @transform_6(%arg0: i32) -> (i32, i32) {
    %c0_i32 = arith.constant 0 : i32
    %c0_i32_0 = arith.constant 0 : i32
    %c0_i32_1 = arith.constant 0 : i32
    return %c0_i32, %c0_i32_0 : i32, i32
  }
  func.func @transform_7(%arg0: i32) -> (i32, i32) {
    %c0_i32 = arith.constant 0 : i32
    %c0_i32_0 = arith.constant 0 : i32
    return %arg0, %c0_i32 : i32, i32
  }
}

</mosaic_0001>

<llo_original>
// kernel: tpu_custom_call.1
$region0: #{tpu_custom_call.1}
  #allocation0 [shape = 'u32[]', space=smem, size = 0x4, offset = 0x4, fixed_abs, tag = 'smem constant byte address 0x4 - core index']
  #allocation1 [shape = 'u32[144,128]{1,0:T(1,128)}', space=vmem, size = 0x12000, scoped, tag = 'internal scratch']
  %s0 = inlined_call_operand.vmem [shape: f32[64,3], index: 0, kind: input, shape index: {}]
  %s1 = inlined_call_operand.vmem [shape: f32[3,256], index: 1, kind: input, shape index: {}]
  %s2 = inlined_call_operand.vmem [shape: f32[3,256], index: 2, kind: input, shape index: {}]
  %s3 = inlined_call_operand.hbm [shape: bf16[256,512], index: 3, kind: input, shape index: {}]
  %s4 = inlined_call_operand.vmem [shape: f32[3,512], index: 4, kind: input, shape index: {}]
  %s5 = inlined_call_operand.hbm [shape: bf16[512,512], index: 5, kind: input, shape index: {}]
  %s6 = inlined_call_operand.vmem [shape: f32[3,512], index: 6, kind: input, shape index: {}]
  %s7 = inlined_call_operand.hbm [shape: f32[8,512], index: 7, kind: output, shape index: {}]
  %s8 = sld [smem:[#allocation0]]
  $region46: #{tpu_custom_call.1} parent=0
    _
  %s10 = ssub.s32 1, %s8
  %s11 = scalar_select 0, %s10, %s8
  $region1: #{tpu_custom_call.1} parent=0
    #allocation2 [shape = 'u8[262144]{0}', space=vmem, size = 0x40000, scoped, tag = 'input window, operand 3, single buffered']
    #allocation3 [shape = 's32[1]{0}', space=sflag, size = 0x4, scoped, tag = 'scoped memory for tpu_custom_call.1']
    #allocation4 [shape = 's32[1]{0}', space=sflag, size = 0x4, scoped, tag = 'scoped memory for tpu_custom_call.1']
    #allocation5 [shape = 'u8[524288]{0}', space=vmem, size = 0x80000, scoped, tag = 'input window, operand 5, single buffered']
    #allocation6 [shape = 's32[1]{0}', space=sflag, size = 0x4, scoped, tag = 'scoped memory for tpu_custom_call.1']
    #allocation7 [shape = 'u8[16384]{0}', space=vmem, size = 0x4000, scoped, tag = 'output window, operand 0, single buffered']
    %12 = vsyncpa [#allocation3], 0
    %13 = vsyncpa [#allocation6], 0
    %14 = vsyncpa [#allocation4], 0
    // Predicated region
    $region2: #{tpu_custom_call.1} parent=1 // pred_check
      _
    $region3: #{tpu_custom_call.1} parent=1 // pred_check_branch
      %16 = sbr.rel (0) target = $region5
    $region4: #{tpu_custom_call.1} parent=1 // pred_region
      _
    $region5: #{tpu_custom_call.1} parent=1 // pred_fallthru
      _
    // Predicated region
    $region6: #{tpu_custom_call.1} parent=1 // pred_check
      _
    $region7: #{tpu_custom_call.1} parent=1 // pred_check_branch
      %18 = sbr.rel (0) target = $region9
    $region8: #{tpu_custom_call.1} parent=1 // pred_region
      _
    $region9: #{tpu_custom_call.1} parent=1 // pred_fallthru
      _
    // Predicated region
    $region10: #{tpu_custom_call.1} parent=1 // pred_check
      _
    $region11: #{tpu_custom_call.1} parent=1 // pred_check_branch
      %20 = sbr.rel (0) target = $region13
    $region12: #{tpu_custom_call.1} parent=1 // pred_region
      _
    $region13: #{tpu_custom_call.1} parent=1 // pred_fallthru
      _
    // Predicated region
    $region14: #{tpu_custom_call.1} parent=1 // pred_check
      _
    $region15: #{tpu_custom_call.1} parent=1 // pred_check_branch
      %22 = sbr.rel (0) target = $region17
    $region16: #{tpu_custom_call.1} parent=1 // pred_region
      %s24 = ssub.s32 8192, 8192
      %25 = vsyncadd [#allocation3], %s24
      %s26 = sshll.u32 [#allocation2], 4
      %s27 = int_to_ptr.vmem [resolvable:$true] %s26
      %32 = dma.hbm_to_vmem [thread:$0]  %s3, 8192, %s27, [#allocation3], 256, 256, 16
    $region17: #{tpu_custom_call.1} parent=1 // pred_fallthru
      _
    // Predicated region
    $region18: #{tpu_custom_call.1} parent=1 // pred_check
      _
    $region19: #{tpu_custom_call.1} parent=1 // pred_check_branch
      %34 = sbr.rel (0) target = $region21
    $region20: #{tpu_custom_call.1} parent=1 // pred_region
      _
    $region21: #{tpu_custom_call.1} parent=1 // pred_fallthru
      _
    // Predicated region
    $region22: #{tpu_custom_call.1} parent=1 // pred_check
      _
    $region23: #{tpu_custom_call.1} parent=1 // pred_check_branch
      %36 = sbr.rel (0) target = $region25
    $region24: #{tpu_custom_call.1} parent=1 // pred_region
      %s38 = ssub.s32 16384, 16384
      %39 = vsyncadd [#allocation6], %s38
      %s40 = sshll.u32 [#allocation5], 4
      %s41 = int_to_ptr.vmem [resolvable:$true] %s40
      %46 = dma.hbm_to_vmem [thread:$0]  %s5, 16384, %s41, [#allocation6], 256, 256, 16
    $region25: #{tpu_custom_call.1} parent=1 // pred_fallthru
      _
    // Predicated region
    $region26: #{tpu_custom_call.1} parent=1 // pred_check
      _
    $region27: #{tpu_custom_call.1} parent=1 // pred_check_branch
      %48 = sbr.rel (0) target = $region29
    $region28: #{tpu_custom_call.1} parent=1 // pred_region
      _
    $region29: #{tpu_custom_call.1} parent=1 // pred_fallthru
      _
    // Predicated region
    $region30: #{tpu_custom_call.1} parent=1 // pred_check
      _
    $region31: #{tpu_custom_call.1} parent=1 // pred_check_branch
      %50 = sbr.rel (0) target = $region33
    $region32: #{tpu_custom_call.1} parent=1 // pred_region
      %51 = dma.done [#allocation3], 8192
    $region33: #{tpu_custom_call.1} parent=1 // pred_fallthru
      _
    // Predicated region
    $region34: #{tpu_custom_call.1} parent=1 // pred_check
      _
    $region35: #{tpu_custom_call.1} parent=1 // pred_check_branch
      %53 = sbr.rel (0) target = $region37
    $region36: #{tpu_custom_call.1} parent=1 // pred_region
      %54 = dma.done [#allocation6], 16384
    $region37: #{tpu_custom_call.1} parent=1 // pred_fallthru
      _
    %v55 = vld [vmem:[%s0] sm:$0xff]
    %v56 = vld [vmem:[%s0 + $0x8] sm:$0xff]
    %v57 = vld [vmem:[%s0 + $0x10] sm:$0xff]
    %v58 = vld [vmem:[%s0 + $0x18] sm:$0xff]
    %v59 = vld [vmem:[%s0 + $0x20] sm:$0xff]
    %v60 = vld [vmem:[%s0 + $0x28] sm:$0xff]
    %v61 = vld [vmem:[%s0 + $0x30] sm:$0xff]
    %v62 = vld [vmem:[%s0 + $0x38] sm:$0xff]
    %v63 = vld [vmem:[%s2] sm:$0x77]
    %v64 = vld [vmem:[%s1] sm:$0x77]
    %66 = vset.pattern.permute.xlu0 0
    %67 = vperm.xlu0 %66, %v55
    %v68 = vpop.permute.xlu0 %67
    %71 = vset.pattern.permute.xlu0 0
    %72 = vperm.xlu0 %71, %v56
    %v73 = vpop.permute.xlu0 %72
    %76 = vset.pattern.permute.xlu0 0
    %77 = vperm.xlu0 %76, %v57
    %v78 = vpop.permute.xlu0 %77
    %81 = vset.pattern.permute.xlu0 0
    %82 = vperm.xlu0 %81, %v58
    %v83 = vpop.permute.xlu0 %82
    %86 = vset.pattern.permute.xlu0 0
    %87 = vperm.xlu0 %86, %v59
    %v88 = vpop.permute.xlu0 %87
    %91 = vset.pattern.permute.xlu0 0
    %92 = vperm.xlu0 %91, %v60
    %v93 = vpop.permute.xlu0 %92
    %96 = vset.pattern.permute.xlu0 0
    %97 = vperm.xlu0 %96, %v61
    %v98 = vpop.permute.xlu0 %97
    %101 = vset.pattern.permute.xlu0 0
    %102 = vperm.xlu0 %101, %v62
    %v103 = vpop.permute.xlu0 %102
    %v106 = vlaneseq
    %v107 = vshrl.u32 %v106, 7
    %v108 = vsub.s32 0, %v107
    %v109 = vrot.slane %v64, %v108
    %v110 = vlaneseq
    %v111 = vshrl.u32 %v110, 7
    %v112 = vsub.s32 4, %v111
    %v113 = vrot.slane %v64, %v112
    %v116 = vlaneseq
    %v117 = vshrl.u32 %v116, 7
    %v118 = vsub.s32 0, %v117
    %v119 = vrot.slane %v109, %v118
    %v120 = vlaneseq
    %v121 = vshrl.u32 %v120, 7
    %v122 = vsub.s32 0, %v121
    %v123 = vrot.slane %v113, %v122
    %v124 = vmul.f32 %v68, %v119
    %v125 = vmul.f32 %v68, %v123
    %v126 = vmul.f32 %v73, %v119
    %v127 = vmul.f32 %v73, %v123
    %v128 = vmul.f32 %v78, %v119
    %v129 = vmul.f32 %v78, %v123
    %v130 = vmul.f32 %v83, %v119
    %v131 = vmul.f32 %v83, %v123
    %v132 = vmul.f32 %v88, %v119
    %v133 = vmul.f32 %v88, %v123
    %v134 = vmul.f32 %v93, %v119
    %v135 = vmul.f32 %v93, %v123
    %v136 = vmul.f32 %v98, %v119
    %v137 = vmul.f32 %v98, %v123
    %v138 = vmul.f32 %v103, %v119
    %v139 = vmul.f32 %v103, %v123
    %v141 = vlaneseq
    %v142 = vshrl.u32 %v141, 7
    %v143 = vsub.s32 0, %v142
    %v144 = vrot.slane %v63, %v143
    %v145 = vlaneseq
    %v146 = vshrl.u32 %v145, 7
    %v147 = vsub.s32 4, %v146
    %v148 = vrot.slane %v63, %v147
    %v151 = vlaneseq
    %v152 = vshrl.u32 %v151, 7
    %v153 = vsub.s32 0, %v152
    %v154 = vrot.slane %v144, %v153
    %v155 = vlaneseq
    %v156 = vshrl.u32 %v155, 7
    %v157 = vsub.s32 0, %v156
    %v158 = vrot.slane %v148, %v157
    %v159 = vadd.f32 %v154, %v124
    %v160 = vadd.f32 %v158, %v125
    %v161 = vadd.f32 %v154, %v126
    %v162 = vadd.f32 %v158, %v127
    %v163 = vadd.f32 %v154, %v128
    %v164 = vadd.f32 %v158, %v129
    %v165 = vadd.f32 %v154, %v130
    %v166 = vadd.f32 %v158, %v131
    %v167 = vadd.f32 %v154, %v132
    %v168 = vadd.f32 %v158, %v133
    %v169 = vadd.f32 %v154, %v134
    %v170 = vadd.f32 %v158, %v135
    %v171 = vadd.f32 %v154, %v136
    %v172 = vadd.f32 %v158, %v137
    %v173 = vadd.f32 %v154, %v138
    %v174 = vadd.f32 %v158, %v139
    %175 = vset.pattern.permute.xlu0 1
    %176 = vperm.xlu0 %175, %v55
    %v177 = vpop.permute.xlu0 %176
    %179 = vset.pattern.permute.xlu0 1
    %180 = vperm.xlu0 %179, %v56
    %v181 = vpop.permute.xlu0 %180
    %183 = vset.pattern.permute.xlu0 1
    %184 = vperm.xlu0 %183, %v57
    %v185 = vpop.permute.xlu0 %184
    %187 = vset.pattern.permute.xlu0 1
    %188 = vperm.xlu0 %187, %v58
    %v189 = vpop.permute.xlu0 %188
    %191 = vset.pattern.permute.xlu0 1
    %192 = vperm.xlu0 %191, %v59
    %v193 = vpop.permute.xlu0 %192
    %195 = vset.pattern.permute.xlu0 1
    %196 = vperm.xlu0 %195, %v60
    %v197 = vpop.permute.xlu0 %196
    %199 = vset.pattern.permute.xlu0 1
    %200 = vperm.xlu0 %199, %v61
    %v201 = vpop.permute.xlu0 %200
    %203 = vset.pattern.permute.xlu0 1
    %204 = vperm.xlu0 %203, %v62
    %v205 = vpop.permute.xlu0 %204
    %v207 = vlaneseq
    %v208 = vshrl.u32 %v207, 7
    %v209 = vsub.s32 1, %v208
    %v210 = vrot.slane %v64, %v209
    %v211 = vlaneseq
    %v212 = vshrl.u32 %v211, 7
    %v213 = vsub.s32 5, %v212
    %v214 = vrot.slane %v64, %v213
    %v217 = vlaneseq
    %v218 = vshrl.u32 %v217, 7
    %v219 = vsub.s32 1, %v218
    %v220 = vrot.slane %v210, %v219
    %v221 = vlaneseq
    %v222 = vshrl.u32 %v221, 7
    %v223 = vsub.s32 1, %v222
    %v224 = vrot.slane %v214, %v223
    %v225 = vmul.f32 %v177, %v220
    %v226 = vmul.f32 %v177, %v224
    %v227 = vmul.f32 %v181, %v220
    %v228 = vmul.f32 %v181, %v224
    %v229 = vmul.f32 %v185, %v220
    %v230 = vmul.f32 %v185, %v224
    %v231 = vmul.f32 %v189, %v220
    %v232 = vmul.f32 %v189, %v224
    %v233 = vmul.f32 %v193, %v220
    %v234 = vmul.f32 %v193, %v224
    %v235 = vmul.f32 %v197, %v220
    %v236 = vmul.f32 %v197, %v224
    %v237 = vmul.f32 %v201, %v220
    %v238 = vmul.f32 %v201, %v224
    %v239 = vmul.f32 %v205, %v220
    %v240 = vmul.f32 %v205, %v224
    %v241 = vadd.f32 %v159, %v225
    %v242 = vadd.f32 %v160, %v226
    %v243 = vadd.f32 %v161, %v227
    %v244 = vadd.f32 %v162, %v228
    %v245 = vadd.f32 %v163, %v229
    %v246 = vadd.f32 %v164, %v230
    %v247 = vadd.f32 %v165, %v231
    %v248 = vadd.f32 %v166, %v232
    %v249 = vadd.f32 %v167, %v233
    %v250 = vadd.f32 %v168, %v234
    %v251 = vadd.f32 %v169, %v235
    %v252 = vadd.f32 %v170, %v236
    %v253 = vadd.f32 %v171, %v237
    %v254 = vadd.f32 %v172, %v238
    %v255 = vadd.f32 %v173, %v239
    %v256 = vadd.f32 %v174, %v240
    %257 = vset.pattern.permute.xlu0 2
    %258 = vperm.xlu0 %257, %v55
    %v259 = vpop.permute.xlu0 %258
    %261 = vset.pattern.permute.xlu0 2
    %262 = vperm.xlu0 %261, %v56
    %v263 = vpop.permute.xlu0 %262
    %265 = vset.pattern.permute.xlu0 2
    %266 = vperm.xlu0 %265, %v57
    %v267 = vpop.permute.xlu0 %266
    %269 = vset.pattern.permute.xlu0 2
    %270 = vperm.xlu0 %269, %v58
    %v271 = vpop.permute.xlu0 %270
    %273 = vset.pattern.permute.xlu0 2
    %274 = vperm.xlu0 %273, %v59
    %v275 = vpop.permute.xlu0 %274
    %277 = vset.pattern.permute.xlu0 2
    %278 = vperm.xlu0 %277, %v60
    %v279 = vpop.permute.xlu0 %278
    %281 = vset.pattern.permute.xlu0 2
    %282 = vperm.xlu0 %281, %v61
    %v283 = vpop.permute.xlu0 %282
    %285 = vset.pattern.permute.xlu0 2
    %286 = vperm.xlu0 %285, %v62
    %v287 = vpop.permute.xlu0 %286
    %v289 = vlaneseq
    %v290 = vshrl.u32 %v289, 7
    %v291 = vsub.s32 2, %v290
    %v292 = vrot.slane %v64, %v291
    %v293 = vlaneseq
    %v294 = vshrl.u32 %v293, 7
    %v295 = vsub.s32 6, %v294
    %v296 = vrot.slane %v64, %v295
    %v299 = vlaneseq
    %v300 = vshrl.u32 %v299, 7
    %v301 = vsub.s32 2, %v300
    %v302 = vrot.slane %v292, %v301
    %v303 = vlaneseq
    %v304 = vshrl.u32 %v303, 7
    %v305 = vsub.s32 2, %v304
    %v306 = vrot.slane %v296, %v305
    %v307 = vmul.f32 %v259, %v302
    %v308 = vmul.f32 %v259, %v306
    %v309 = vmul.f32 %v263, %v302
    %v310 = vmul.f32 %v263, %v306
    %v311 = vmul.f32 %v267, %v302
    %v312 = vmul.f32 %v267, %v306
    %v313 = vmul.f32 %v271, %v302
    %v314 = vmul.f32 %v271, %v306
    %v315 = vmul.f32 %v275, %v302
    %v316 = vmul.f32 %v275, %v306
    %v317 = vmul.f32 %v279, %v302
    %v318 = vmul.f32 %v279, %v306
    %v319 = vmul.f32 %v283, %v302
    %v320 = vmul.f32 %v283, %v306
    %v321 = vmul.f32 %v287, %v302
    %v322 = vmul.f32 %v287, %v306
    %v323 = vadd.f32 %v241, %v307
    %v324 = vadd.f32 %v242, %v308
    %v325 = vadd.f32 %v243, %v309
    %v326 = vadd.f32 %v244, %v310
    %v327 = vadd.f32 %v245, %v311
    %v328 = vadd.f32 %v246, %v312
    %v329 = vadd.f32 %v247, %v313
    %v330 = vadd.f32 %v248, %v314
    %v331 = vadd.f32 %v249, %v315
    %v332 = vadd.f32 %v250, %v316
    %v333 = vadd.f32 %v251, %v317
    %v334 = vadd.f32 %v252, %v318
    %v335 = vadd.f32 %v253, %v319
    %v336 = vadd.f32 %v254, %v320
    %v337 = vadd.f32 %v255, %v321
    %v338 = vadd.f32 %v256, %v322
    %v339 = vadd.f32 %v323, %v324
    %340 = vadd.xlane.f32.xlu0 %v339
    %v341 = vpop.xlane.xlu0 %340
    %v342 = vadd.f32 %v325, %v326
    %343 = vadd.xlane.f32.xlu0 %v342
    %v344 = vpop.xlane.xlu0 %343
    %v345 = vadd.f32 %v327, %v328
    %346 = vadd.xlane.f32.xlu0 %v345
    %v347 = vpop.xlane.xlu0 %346
    %v348 = vadd.f32 %v329, %v330
    %349 = vadd.xlane.f32.xlu0 %v348
    %v350 = vpop.xlane.xlu0 %349
    %v351 = vadd.f32 %v331, %v332
    %352 = vadd.xlane.f32.xlu0 %v351
    %v353 = vpop.xlane.xlu0 %352
    %v354 = vadd.f32 %v333, %v334
    %355 = vadd.xlane.f32.xlu0 %v354
    %v356 = vpop.xlane.xlu0 %355
    %v357 = vadd.f32 %v335, %v336
    %358 = vadd.xlane.f32.xlu0 %v357
    %v359 = vpop.xlane.xlu0 %358
    %v360 = vadd.f32 %v337, %v338
    %361 = vadd.xlane.f32.xlu0 %v360
    %v362 = vpop.xlane.xlu0 %361
    %v363 = vrcp.pop 256.0
    %v364 = vmul.f32 %v341, %v363
    %v365 = vmul.f32 %v344, %v363
    %v366 = vmul.f32 %v347, %v363
    %v367 = vmul.f32 %v350, %v363
    %v368 = vmul.f32 %v353, %v363
    %v369 = vmul.f32 %v356, %v363
    %v370 = vmul.f32 %v359, %v363
    %v371 = vmul.f32 %v362, %v363
    %v372 = vsub.f32 %v323, %v364
    %v373 = vsub.f32 %v324, %v364
    %v374 = vsub.f32 %v325, %v365
    %v375 = vsub.f32 %v326, %v365
    %v376 = vsub.f32 %v327, %v366
    %v377 = vsub.f32 %v328, %v366
    %v378 = vsub.f32 %v329, %v367
    %v379 = vsub.f32 %v330, %v367
    %v380 = vsub.f32 %v331, %v368
    %v381 = vsub.f32 %v332, %v368
    %v382 = vsub.f32 %v333, %v369
    %v383 = vsub.f32 %v334, %v369
    %v384 = vsub.f32 %v335, %v370
    %v385 = vsub.f32 %v336, %v370
    %v386 = vsub.f32 %v337, %v371
    %v387 = vsub.f32 %v338, %v371
    %v388 = vmul.f32 %v372, %v372
    %v389 = vmul.f32 %v373, %v373
    %v390 = vmul.f32 %v374, %v374
    %v391 = vmul.f32 %v375, %v375
    %v392 = vmul.f32 %v376, %v376
    %v393 = vmul.f32 %v377, %v377
    %v394 = vmul.f32 %v378, %v378
    %v395 = vmul.f32 %v379, %v379
    %v396 = vmul.f32 %v380, %v380
    %v397 = vmul.f32 %v381, %v381
    %v398 = vmul.f32 %v382, %v382
    %v399 = vmul.f32 %v383, %v383
    %v400 = vmul.f32 %v384, %v384
    %v401 = vmul.f32 %v385, %v385
    %v402 = vmul.f32 %v386, %v386
    %v403 = vmul.f32 %v387, %v387
    %v404 = vadd.f32 %v388, %v389
    %405 = vadd.xlane.f32.xlu0 %v404
    %v406 = vpop.xlane.xlu0 %405
    %v407 = vadd.f32 %v390, %v391
    %408 = vadd.xlane.f32.xlu0 %v407
    %v409 = vpop.xlane.xlu0 %408
    %v410 = vadd.f32 %v392, %v393
    %411 = vadd.xlane.f32.xlu0 %v410
    %v412 = vpop.xlane.xlu0 %411
    %v413 = vadd.f32 %v394, %v395
    %414 = vadd.xlane.f32.xlu0 %v413
    %v415 = vpop.xlane.xlu0 %414
    %v416 = vadd.f32 %v396, %v397
    %417 = vadd.xlane.f32.xlu0 %v416
    %v418 = vpop.xlane.xlu0 %417
    %v419 = vadd.f32 %v398, %v399
    %420 = vadd.xlane.f32.xlu0 %v419
    %v421 = vpop.xlane.xlu0 %420
    %v422 = vadd.f32 %v400, %v401
    %423 = vadd.xlane.f32.xlu0 %v422
    %v424 = vpop.xlane.xlu0 %423
    %v425 = vadd.f32 %v402, %v403
    %426 = vadd.xlane.f32.xlu0 %v425
    %v427 = vpop.xlane.xlu0 %426
    %v428 = vmul.f32 %v406, %v363
    %v429 = vmul.f32 %v409, %v363
    %v430 = vmul.f32 %v412, %v363
    %v431 = vmul.f32 %v415, %v363
    %v432 = vmul.f32 %v418, %v363
    %v433 = vmul.f32 %v421, %v363
    %v434 = vmul.f32 %v424, %v363
    %v435 = vmul.f32 %v427, %v363
    %v436 = vadd.f32 %v428, 1e-05
    %v437 = vadd.f32 %v429, 1e-05
    %v438 = vadd.f32 %v430, 1e-05
    %v439 = vadd.f32 %v431, 1e-05
    %v440 = vadd.f32 %v432, 1e-05
    %v441 = vadd.f32 %v433, 1e-05
    %v442 = vadd.f32 %v434, 1e-05
    %v443 = vadd.f32 %v435, 1e-05
    %v444 = vrsqrt.pop %v436
    %v445 = vrsqrt.pop %v437
    %v446 = vrsqrt.pop %v438
    %v447 = vrsqrt.pop %v439
    %v448 = vrsqrt.pop %v440
    %v449 = vrsqrt.pop %v441
    %v450 = vrsqrt.pop %v442
    %v451 = vrsqrt.pop %v443
    %v452 = vmul.f32 %v372, %v444
    %v453 = vmul.f32 %v373, %v444
    %v454 = vmul.f32 %v374, %v445
    %v455 = vmul.f32 %v375, %v445
    %v456 = vmul.f32 %v376, %v446
    %v457 = vmul.f32 %v377, %v446
    %v458 = vmul.f32 %v378, %v447
    %v459 = vmul.f32 %v379, %v447
    %v460 = vmul.f32 %v380, %v448
    %v461 = vmul.f32 %v381, %v448
    %v462 = vmul.f32 %v382, %v449
    %v463 = vmul.f32 %v383, %v449
    %v464 = vmul.f32 %v384, %v450
    %v465 = vmul.f32 %v385, %v450
    %v466 = vmul.f32 %v386, %v451
    %v467 = vmul.f32 %v387, %v451
    %v468 = vlaneseq
    %v469 = vshrl.u32 %v468, 7
    %v470 = vsub.s32 1, %v469
    %v471 = vrot.slane %v63, %v470
    %v472 = vlaneseq
    %v473 = vshrl.u32 %v472, 7
    %v474 = vsub.s32 5, %v473
    %v475 = vrot.slane %v63, %v474
    %v478 = vlaneseq
    %v479 = vshrl.u32 %v478, 7
    %v480 = vsub.s32 1, %v479
    %v481 = vrot.slane %v471, %v480
    %v482 = vlaneseq
    %v483 = vshrl.u32 %v482, 7
    %v484 = vsub.s32 1, %v483
    %v485 = vrot.slane %v475, %v484
    %v486 = vmul.f32 %v452, %v481
    %v487 = vmul.f32 %v453, %v485
    %v488 = vmul.f32 %v454, %v481
    %v489 = vmul.f32 %v455, %v485
    %v490 = vmul.f32 %v456, %v481
    %v491 = vmul.f32 %v457, %v485
    %v492 = vmul.f32 %v458, %v481
    %v493 = vmul.f32 %v459, %v485
    %v494 = vmul.f32 %v460, %v481
    %v495 = vmul.f32 %v461, %v485
    %v496 = vmul.f32 %v462, %v481
    %v497 = vmul.f32 %v463, %v485
    %v498 = vmul.f32 %v464, %v481
    %v499 = vmul.f32 %v465, %v485
    %v500 = vmul.f32 %v466, %v481
    %v501 = vmul.f32 %v467, %v485
    %v502 = vlaneseq
    %v503 = vshrl.u32 %v502, 7
    %v504 = vsub.s32 2, %v503
    %v505 = vrot.slane %v63, %v504
    %v506 = vlaneseq
    %v507 = vshrl.u32 %v506, 7
    %v508 = vsub.s32 6, %v507
    %v509 = vrot.slane %v63, %v508
    %v512 = vlaneseq
    %v513 = vshrl.u32 %v512, 7
    %v514 = vsub.s32 2, %v513
    %v515 = vrot.slane %v505, %v514
    %v516 = vlaneseq
    %v517 = vshrl.u32 %v516, 7
    %v518 = vsub.s32 2, %v517
    %v519 = vrot.slane %v509, %v518
    %v520 = vadd.f32 %v486, %v515
    %v521 = vadd.f32 %v487, %v519
    %v522 = vadd.f32 %v488, %v515
    %v523 = vadd.f32 %v489, %v519
    %v524 = vadd.f32 %v490, %v515
    %v525 = vadd.f32 %v491, %v519
    %v526 = vadd.f32 %v492, %v515
    %v527 = vadd.f32 %v493, %v519
    %v528 = vadd.f32 %v494, %v515
    %v529 = vadd.f32 %v495, %v519
    %v530 = vadd.f32 %v496, %v515
    %v531 = vadd.f32 %v497, %v519
    %v532 = vadd.f32 %v498, %v515
    %v533 = vadd.f32 %v499, %v519
    %v534 = vadd.f32 %v500, %v515
    %v535 = vadd.f32 %v501, %v519
    %v536 = vtanh.pop %v520
    %v537 = vtanh.pop %v521
    %v538 = vtanh.pop %v522
    %v539 = vtanh.pop %v523
    %v540 = vtanh.pop %v524
    %v541 = vtanh.pop %v525
    %v542 = vtanh.pop %v526
    %v543 = vtanh.pop %v527
    %v544 = vtanh.pop %v528
    %v545 = vtanh.pop %v529
    %v546 = vtanh.pop %v530
    %v547 = vtanh.pop %v531
    %v548 = vtanh.pop %v532
    %v549 = vtanh.pop %v533
    %v550 = vtanh.pop %v534
    %v551 = vtanh.pop %v535
    %v552 = vld [vmem:[%s4] sm:$0x77]
    %v553 = vld [vmem:[%s4 + $0x8] sm:$0x77]
    %v554 = vpack.c.bf16 %v538, %v536
    %v555 = vpack.c.bf16 %v539, %v537
    %v556 = vpack.c.bf16 %v542, %v540
    %v557 = vpack.c.bf16 %v543, %v541
    %v558 = vpack.c.bf16 %v546, %v544
    %v559 = vpack.c.bf16 %v547, %v545
    %v560 = vpack.c.bf16 %v550, %v548
    %v561 = vpack.c.bf16 %v551, %v549
    %v562 = vld [vmem:[#allocation2] sm:$0xff]
    %v563 = vld [vmem:[#allocation2 + $0x8] sm:$0xff]
    %v564 = vld [vmem:[#allocation2 + $0x10] sm:$0xff]
    %v565 = vld [vmem:[#allocation2 + $0x18] sm:$0xff]
    %v566 = vld [vmem:[#allocation2 + $0x20] sm:$0xff]
    %v567 = vld [vmem:[#allocation2 + $0x28] sm:$0xff]
    %v568 = vld [vmem:[#allocation2 + $0x30] sm:$0xff]
    %v569 = vld [vmem:[#allocation2 + $0x38] sm:$0xff]
    %v570 = vld [vmem:[#allocation2 + $0x40] sm:$0xff]
    %v571 = vld [vmem:[#allocation2 + $0x48] sm:$0xff]
    %v572 = vld [vmem:[#allocation2 + $0x50] sm:$0xff]
    %v573 = vld [vmem:[#allocation2 + $0x58] sm:$0xff]
    %v574 = vld [vmem:[#allocation2 + $0x60] sm:$0xff]
    %v575 = vld [vmem:[#allocation2 + $0x68] sm:$0xff]
    %v576 = vld [vmem:[#allocation2 + $0x70] sm:$0xff]
    %v577 = vld [vmem:[#allocation2 + $0x78] sm:$0xff]
    %v578 = vld [vmem:[#allocation2 + $0x80] sm:$0xff]
    %v579 = vld [vmem:[#allocation2 + $0x88] sm:$0xff]
    %v580 = vld [vmem:[#allocation2 + $0x90] sm:$0xff]
    %v581 = vld [vmem:[#allocation2 + $0x98] sm:$0xff]
    %v582 = vld [vmem:[#allocation2 + $0xa0] sm:$0xff]
    %v583 = vld [vmem:[#allocation2 + $0xa8] sm:$0xff]
    %v584 = vld [vmem:[#allocation2 + $0xb0] sm:$0xff]
    %v585 = vld [vmem:[#allocation2 + $0xb8] sm:$0xff]
    %v586 = vld [vmem:[#allocation2 + $0xc0] sm:$0xff]
    %v587 = vld [vmem:[#allocation2 + $0xc8] sm:$0xff]
    %v588 = vld [vmem:[#allocation2 + $0xd0] sm:$0xff]
    %v589 = vld [vmem:[#allocation2 + $0xd8] sm:$0xff]
    %v590 = vld [vmem:[#allocation2 + $0xe0] sm:$0xff]
    %v591 = vld [vmem:[#allocation2 + $0xe8] sm:$0xff]
    %v592 = vld [vmem:[#allocation2 + $0xf0] sm:$0xff]
    %v593 = vld [vmem:[#allocation2 + $0xf8] sm:$0xff]
    %v594 = vld [vmem:[#allocation2 + $0x100] sm:$0xff]
    %v595 = vld [vmem:[#allocation2 + $0x108] sm:$0xff]
    %v596 = vld [vmem:[#allocation2 + $0x110] sm:$0xff]
    %v597 = vld [vmem:[#allocation2 + $0x118] sm:$0xff]
    %v598 = vld [vmem:[#allocation2 + $0x120] sm:$0xff]
    %v599 = vld [vmem:[#allocation2 + $0x128] sm:$0xff]
    %v600 = vld [vmem:[#allocation2 + $0x130] sm:$0xff]
    %v601 = vld [vmem:[#allocation2 + $0x138] sm:$0xff]
    %v602 = vld [vmem:[#allocation2 + $0x140] sm:$0xff]
    %v603 = vld [vmem:[#allocation2 + $0x148] sm:$0xff]
    %v604 = vld [vmem:[#allocation2 + $0x150] sm:$0xff]
    %v605 = vld [vmem:[#allocation2 + $0x158] sm:$0xff]
    %v606 = vld [vmem:[#allocation2 + $0x160] sm:$0xff]
    %v607 = vld [vmem:[#allocation2 + $0x168] sm:$0xff]
    %v608 = vld [vmem:[#allocation2 + $0x170] sm:$0xff]
    %v609 = vld [vmem:[#allocation2 + $0x178] sm:$0xff]
    %v610 = vld [vmem:[#allocation2 + $0x180] sm:$0xff]
    %v611 = vld [vmem:[#allocation2 + $0x188] sm:$0xff]
    %v612 = vld [vmem:[#allocation2 + $0x190] sm:$0xff]
    %v613 = vld [vmem:[#allocation2 + $0x198] sm:$0xff]
    %v614 = vld [vmem:[#allocation2 + $0x1a0] sm:$0xff]
    %v615 = vld [vmem:[#allocation2 + $0x1a8] sm:$0xff]
    %v616 = vld [vmem:[#allocation2 + $0x1b0] sm:$0xff]
    %v617 = vld [vmem:[#allocation2 + $0x1b8] sm:$0xff]
    %v618 = vld [vmem:[#allocation2 + $0x1c0] sm:$0xff]
    %v619 = vld [vmem:[#allocation2 + $0x1c8] sm:$0xff]
    %v620 = vld [vmem:[#allocation2 + $0x1d0] sm:$0xff]
    %v621 = vld [vmem:[#allocation2 + $0x1d8] sm:$0xff]
    %v622 = vld [vmem:[#allocation2 + $0x1e0] sm:$0xff]
    %v623 = vld [vmem:[#allocation2 + $0x1e8] sm:$0xff]
    %v624 = vld [vmem:[#allocation2 + $0x1f0] sm:$0xff]
    %v625 = vld [vmem:[#allocation2 + $0x1f8] sm:$0xff]
    %v628 = vlaneseq
    %v629 = vshrl.u32 %v628, 7
    %v630 = vsub.s32 0, %v629
    %v631 = vrot.slane %v552, %v630
    %v632 = vlaneseq
    %v633 = vshrl.u32 %v632, 7
    %v634 = vsub.s32 4, %v633
    %v635 = vrot.slane %v552, %v634
    %v636 = vlaneseq
    %v637 = vshrl.u32 %v636, 7
    %v638 = vsub.s32 0, %v637
    %v639 = vrot.slane %v553, %v638
    %v640 = vlaneseq
    %v641 = vshrl.u32 %v640, 7
    %v642 = vsub.s32 4, %v641
    %v643 = vrot.slane %v553, %v642
    %v648 = vlaneseq
    %v649 = vshrl.u32 %v648, 7
    %v650 = vsub.s32 0, %v649
    %v651 = vrot.slane %v631, %v650
    %v652 = vlaneseq
    %v653 = vshrl.u32 %v652, 7
    %v654 = vsub.s32 0, %v653
    %v655 = vrot.slane %v635, %v654
    %v656 = vlaneseq
    %v657 = vshrl.u32 %v656, 7
    %v658 = vsub.s32 0, %v657
    %v659 = vrot.slane %v639, %v658
    %v660 = vlaneseq
    %v661 = vshrl.u32 %v660, 7
    %v662 = vsub.s32 0, %v661
    %v663 = vrot.slane %v643, %v662
    %v728 = vunpack.c.l.b16 %v562
    %v729 = vunpack.c.h.b16 %v562
    %v730 = vunpack.c.l.b16 %v563
    %v731 = vunpack.c.h.b16 %v563
    %v732 = vunpack.c.l.b16 %v564
    %v733 = vunpack.c.h.b16 %v564
    %v734 = vunpack.c.l.b16 %v565
    %v735 = vunpack.c.h.b16 %v565
    %v736 = vunpack.c.l.b16 %v566
    %v737 = vunpack.c.h.b16 %v566
    %v738 = vunpack.c.l.b16 %v567
    %v739 = vunpack.c.h.b16 %v567
    %v740 = vunpack.c.l.b16 %v568
    %v741 = vunpack.c.h.b16 %v568
    %v742 = vunpack.c.l.b16 %v569
    %v743 = vunpack.c.h.b16 %v569
    %v744 = vunpack.c.l.b16 %v570
    %v745 = vunpack.c.h.b16 %v570
    %v746 = vunpack.c.l.b16 %v571
    %v747 = vunpack.c.h.b16 %v571
    %v748 = vunpack.c.l.b16 %v572
    %v749 = vunpack.c.h.b16 %v572
    %v750 = vunpack.c.l.b16 %v573
    %v751 = vunpack.c.h.b16 %v573
    %v752 = vunpack.c.l.b16 %v574
    %v753 = vunpack.c.h.b16 %v574
    %v754 = vunpack.c.l.b16 %v575
    %v755 = vunpack.c.h.b16 %v575
    %v756 = vunpack.c.l.b16 %v576
    %v757 = vunpack.c.h.b16 %v576
    %v758 = vunpack.c.l.b16 %v577
    %v759 = vunpack.c.h.b16 %v577
    %v760 = vunpack.c.l.b16 %v578
    %v761 = vunpack.c.h.b16 %v578
    %v762 = vunpack.c.l.b16 %v579
    %v763 = vunpack.c.h.b16 %v579
    %v764 = vunpack.c.l.b16 %v580
    %v765 = vunpack.c.h.b16 %v580
    %v766 = vunpack.c.l.b16 %v581
    %v767 = vunpack.c.h.b16 %v581
    %v768 = vunpack.c.l.b16 %v582
    %v769 = vunpack.c.h.b16 %v582
    %v770 = vunpack.c.l.b16 %v583
    %v771 = vunpack.c.h.b16 %v583
    %v772 = vunpack.c.l.b16 %v584
    %v773 = vunpack.c.h.b16 %v584
    %v774 = vunpack.c.l.b16 %v585
    %v775 = vunpack.c.h.b16 %v585
    %v776 = vunpack.c.l.b16 %v586
    %v777 = vunpack.c.h.b16 %v586
    %v778 = vunpack.c.l.b16 %v587
    %v779 = vunpack.c.h.b16 %v587
    %v780 = vunpack.c.l.b16 %v588
    %v781 = vunpack.c.h.b16 %v588
    %v782 = vunpack.c.l.b16 %v589
    %v783 = vunpack.c.h.b16 %v589
    %v784 = vunpack.c.l.b16 %v590
    %v785 = vunpack.c.h.b16 %v590
    %v786 = vunpack.c.l.b16 %v591
    %v787 = vunpack.c.h.b16 %v591
    %v788 = vunpack.c.l.b16 %v592
    %v789 = vunpack.c.h.b16 %v592
    %v790 = vunpack.c.l.b16 %v593
    %v791 = vunpack.c.h.b16 %v593
    %v792 = vunpack.c.l.b16 %v594
    %v793 = vunpack.c.h.b16 %v594
    %v794 = vunpack.c.l.b16 %v595
    %v795 = vunpack.c.h.b16 %v595
    %v796 = vunpack.c.l.b16 %v596
    %v797 = vunpack.c.h.b16 %v596
    %v798 = vunpack.c.l.b16 %v597
    %v799 = vunpack.c.h.b16 %v597
    %v800 = vunpack.c.l.b16 %v598
    %v801 = vunpack.c.h.b16 %v598
    %v802 = vunpack.c.l.b16 %v599
    %v803 = vunpack.c.h.b16 %v599
    %v804 = vunpack.c.l.b16 %v600
    %v805 = vunpack.c.h.b16 %v600
    %v806 = vunpack.c.l.b16 %v601
    %v807 = vunpack.c.h.b16 %v601
    %v808 = vunpack.c.l.b16 %v602
    %v809 = vunpack.c.h.b16 %v602
    %v810 = vunpack.c.l.b16 %v603
    %v811 = vunpack.c.h.b16 %v603
    %v812 = vunpack.c.l.b16 %v604
    %v813 = vunpack.c.h.b16 %v604
    %v814 = vunpack.c.l.b16 %v605
    %v815 = vunpack.c.h.b16 %v605
    %v816 = vunpack.c.l.b16 %v606
    %v817 = vunpack.c.h.b16 %v606
    %v818 = vunpack.c.l.b16 %v607
    %v819 = vunpack.c.h.b16 %v607
    %v820 = vunpack.c.l.b16 %v608
    %v821 = vunpack.c.h.b16 %v608
    %v822 = vunpack.c.l.b16 %v609
    %v823 = vunpack.c.h.b16 %v609
    %v824 = vunpack.c.l.b16 %v610
    %v825 = vunpack.c.h.b16 %v610
    %v826 = vunpack.c.l.b16 %v611
    %v827 = vunpack.c.h.b16 %v611
    %v828 = vunpack.c.l.b16 %v612
    %v829 = vunpack.c.h.b16 %v612
    %v830 = vunpack.c.l.b16 %v613
    %v831 = vunpack.c.h.b16 %v613
    %v832 = vunpack.c.l.b16 %v614
    %v833 = vunpack.c.h.b16 %v614
    %v834 = vunpack.c.l.b16 %v615
    %v835 = vunpack.c.h.b16 %v615
    %v836 = vunpack.c.l.b16 %v616
    %v837 = vunpack.c.h.b16 %v616
    %v838 = vunpack.c.l.b16 %v617
    %v839 = vunpack.c.h.b16 %v617
    %v840 = vunpack.c.l.b16 %v618
    %v841 = vunpack.c.h.b16 %v618
    %v842 = vunpack.c.l.b16 %v619
    %v843 = vunpack.c.h.b16 %v619
    %v844 = vunpack.c.l.b16 %v620
    %v845 = vunpack.c.h.b16 %v620
    %v846 = vunpack.c.l.b16 %v621
    %v847 = vunpack.c.h.b16 %v621
    %v848 = vunpack.c.l.b16 %v622
    %v849 = vunpack.c.h.b16 %v622
    %v850 = vunpack.c.l.b16 %v623
    %v851 = vunpack.c.h.b16 %v623
    %v852 = vunpack.c.l.b16 %v624
    %v853 = vunpack.c.h.b16 %v624
    %v854 = vunpack.c.l.b16 %v625
    %v855 = vunpack.c.h.b16 %v625
    %v856 = vpack.c.b16 %v732, %v728
    %v857 = vpack.c.b16 %v733, %v729
    %v858 = vpack.c.b16 %v734, %v730
    %v859 = vpack.c.b16 %v735, %v731
    %v860 = vpack.c.b16 %v740, %v736
    %v861 = vpack.c.b16 %v741, %v737
    %v862 = vpack.c.b16 %v742, %v738
    %v863 = vpack.c.b16 %v743, %v739
    %v864 = vpack.c.b16 %v748, %v744
    %v865 = vpack.c.b16 %v749, %v745
    %v866 = vpack.c.b16 %v750, %v746
    %v867 = vpack.c.b16 %v751, %v747
    %v868 = vpack.c.b16 %v756, %v752
    %v869 = vpack.c.b16 %v757, %v753
    %v870 = vpack.c.b16 %v758, %v754
    %v871 = vpack.c.b16 %v759, %v755
    %v872 = vpack.c.b16 %v764, %v760
    %v873 = vpack.c.b16 %v765, %v761
    %v874 = vpack.c.b16 %v766, %v762
    %v875 = vpack.c.b16 %v767, %v763
    %v876 = vpack.c.b16 %v772, %v768
    %v877 = vpack.c.b16 %v773, %v769
    %v878 = vpack.c.b16 %v774, %v770
    %v879 = vpack.c.b16 %v775, %v771
    %v880 = vpack.c.b16 %v780, %v776
    %v881 = vpack.c.b16 %v781, %v777
    %v882 = vpack.c.b16 %v782, %v778
    %v883 = vpack.c.b16 %v783, %v779
    %v884 = vpack.c.b16 %v788, %v784
    %v885 = vpack.c.b16 %v789, %v785
    %v886 = vpack.c.b16 %v790, %v786
    %v887 = vpack.c.b16 %v791, %v787
    %v888 = vpack.c.b16 %v796, %v792
    %v889 = vpack.c.b16 %v797, %v793
    %v890 = vpack.c.b16 %v798, %v794
    %v891 = vpack.c.b16 %v799, %v795
    %v892 = vpack.c.b16 %v804, %v800
    %v893 = vpack.c.b16 %v805, %v801
    %v894 = vpack.c.b16 %v806, %v802
    %v895 = vpack.c.b16 %v807, %v803
    %v896 = vpack.c.b16 %v812, %v808
    %v897 = vpack.c.b16 %v813, %v809
    %v898 = vpack.c.b16 %v814, %v810
    %v899 = vpack.c.b16 %v815, %v811
    %v900 = vpack.c.b16 %v820, %v816
    %v901 = vpack.c.b16 %v821, %v817
    %v902 = vpack.c.b16 %v822, %v818
    %v903 = vpack.c.b16 %v823, %v819
    %v904 = vpack.c.b16 %v828, %v824
    %v905 = vpack.c.b16 %v829, %v825
    %v906 = vpack.c.b16 %v830, %v826
    %v907 = vpack.c.b16 %v831, %v827
    %v908 = vpack.c.b16 %v836, %v832
    %v909 = vpack.c.b16 %v837, %v833
    %v910 = vpack.c.b16 %v838, %v834
    %v911 = vpack.c.b16 %v839, %v835
    %v912 = vpack.c.b16 %v844, %v840
    %v913 = vpack.c.b16 %v845, %v841
    %v914 = vpack.c.b16 %v846, %v842
    %v915 = vpack.c.b16 %v847, %v843
    %v916 = vpack.c.b16 %v852, %v848
    %v917 = vpack.c.b16 %v853, %v849
    %v918 = vpack.c.b16 %v854, %v850
    %v919 = vpack.c.b16 %v855, %v851
    %984 = vmatprep.subr.bf16.mxu0 %v857
    %985 = vmatpush1.bf16.msra.mxu0 %v856
    %986 = vmatprep.subr.bf16.mxu0 %v861
    %987 = vmatpush1.bf16.msra.mxu0 %v860
    %988 = vmatprep.subr.bf16.mxu0 %v865
    %989 = vmatpush1.bf16.msra.mxu0 %v864
    %990 = vmatprep.subr.bf16.mxu0 %v869
    %991 = vmatpush1.bf16.msra.mxu0 %v868
    %992 = vmatprep.subr.bf16.mxu0 %v873
    %993 = vmatpush1.bf16.msra.mxu0 %v872
    %994 = vmatprep.subr.bf16.mxu0 %v877
    %995 = vmatpush1.bf16.msra.mxu0 %v876
    %996 = vmatprep.subr.bf16.mxu0 %v881
    %997 = vmatpush1.bf16.msra.mxu0 %v880
    %998 = vmatprep.subr.bf16.mxu0 %v885
    %999 = vmatpush1.bf16.msra.mxu0 %v884
    %1000 = vmatprep.subr.bf16.mxu0 %v889
    %1001 = vmatpush1.bf16.msra.mxu0 %v888
    %1002 = vmatprep.subr.bf16.mxu0 %v893
    %1003 = vmatpush1.bf16.msra.mxu0 %v892
    %1004 = vmatprep.subr.bf16.mxu0 %v897
    %1005 = vmatpush1.bf16.msra.mxu0 %v896
    %1006 = vmatprep.subr.bf16.mxu0 %v901
    %1007 = vmatpush1.bf16.msra.mxu0 %v900
    %1008 = vmatprep.subr.bf16.mxu0 %v905
    %1009 = vmatpush1.bf16.msra.mxu0 %v904
    %1010 = vmatprep.subr.bf16.mxu0 %v909
    %1011 = vmatpush1.bf16.msra.mxu0 %v908
    %1012 = vmatprep.subr.bf16.mxu0 %v913
    %1013 = vmatpush1.bf16.msra.mxu0 %v912
    %1014 = vmatprep.subr.bf16.mxu0 %v917
    %1015 = vmatpush1.bf16.msra.mxu0 %v916
    %1016 = vmatprep.mubr.bf16.mxu0 %v555
    %1017 = vmatmul.mubr.bf16.gmra.mrb[0].mxu0 %v554
    %v1018 = vpop.f32.mrb[0].mxu0
    %v1019 = vadd.f32 %v651, %v1018
    %v1020 = vpop.f32.mrb[0].mxu0
    %v1021 = vadd.f32 %v655, %v1020
    %v1022 = vpop.f32.mrb[0].mxu0
    %v1023 = vadd.f32 %v651, %v1022
    %v1024 = vpop.f32.mrb[0].mxu0
    %v1025 = vadd.f32 %v655, %v1024
    %1026 = vmatprep.mubr.bf16.mxu0 %v557
    %1027 = vmatmul.mubr.bf16.gmra.mrb[0].mxu0 %v556
    %v1028 = vpop.f32.mrb[0].mxu0
    %v1029 = vadd.f32 %v651, %v1028
    %v1030 = vpop.f32.mrb[0].mxu0
    %v1031 = vadd.f32 %v655, %v1030
    %v1032 = vpop.f32.mrb[0].mxu0
    %v1033 = vadd.f32 %v651, %v1032
    %v1034 = vpop.f32.mrb[0].mxu0
    %v1035 = vadd.f32 %v655, %v1034
    %1036 = vmatprep.mubr.bf16.mxu0 %v559
    %1037 = vmatmul.mubr.bf16.gmra.mrb[0].mxu0 %v558
    %v1038 = vpop.f32.mrb[0].mxu0
    %v1039 = vadd.f32 %v651, %v1038
    %v1040 = vpop.f32.mrb[0].mxu0
    %v1041 = vadd.f32 %v655, %v1040
    %v1042 = vpop.f32.mrb[0].mxu0
    %v1043 = vadd.f32 %v651, %v1042
    %v1044 = vpop.f32.mrb[0].mxu0
    %v1045 = vadd.f32 %v655, %v1044
    %1046 = vmatprep.mubr.bf16.mxu0 %v561
    %1047 = vmatmul.mubr.bf16.gmra.mrb[0].mxu0 %v560
    %v1048 = vpop.f32.mrb[0].mxu0
    %v1049 = vadd.f32 %v651, %v1048
    %v1050 = vpop.f32.mrb[0].mxu0
    %v1051 = vadd.f32 %v655, %v1050
    %v1052 = vpop.f32.mrb[0].mxu0
    %v1053 = vadd.f32 %v651, %v1052
    %v1054 = vpop.f32.mrb[0].mxu0
    %v1055 = vadd.f32 %v655, %v1054
    %1056 = vdwg.mxu0
    %1057 = vmatprep.subr.bf16.mxu0 %v859
    %1058 = vmatpush1.bf16.msra.mxu0 %v858
    %1059 = vmatprep.subr.bf16.mxu0 %v863
    %1060 = vmatpush1.bf16.msra.mxu0 %v862
    %1061 = vmatprep.subr.bf16.mxu0 %v867
    %1062 = vmatpush1.bf16.msra.mxu0 %v866
    %1063 = vmatprep.subr.bf16.mxu0 %v871
    %1064 = vmatpush1.bf16.msra.mxu0 %v870
    %1065 = vmatprep.subr.bf16.mxu0 %v875
    %1066 = vmatpush1.bf16.msra.mxu0 %v874
    %1067 = vmatprep.subr.bf16.mxu0 %v879
    %1068 = vmatpush1.bf16.msra.mxu0 %v878
    %1069 = vmatprep.subr.bf16.mxu0 %v883
    %1070 = vmatpush1.bf16.msra.mxu0 %v882
    %1071 = vmatprep.subr.bf16.mxu0 %v887
    %1072 = vmatpush1.bf16.msra.mxu0 %v886
    %1073 = vmatprep.subr.bf16.mxu0 %v891
    %1074 = vmatpush1.bf16.msra.mxu0 %v890
    %1075 = vmatprep.subr.bf16.mxu0 %v895
    %1076 = vmatpush1.bf16.msra.mxu0 %v894
    %1077 = vmatprep.subr.bf16.mxu0 %v899
    %1078 = vmatpush1.bf16.msra.mxu0 %v898
    %1079 = vmatprep.subr.bf16.mxu0 %v903
    %1080 = vmatpush1.bf16.msra.mxu0 %v902
    %1081 = vmatprep.subr.bf16.mxu0 %v907
    %1082 = vmatpush1.bf16.msra.mxu0 %v906
    %1083 = vmatprep.subr.bf16.mxu0 %v911
    %1084 = vmatpush1.bf16.msra.mxu0 %v910
    %1085 = vmatprep.subr.bf16.mxu0 %v915
    %1086 = vmatpush1.bf16.msra.mxu0 %v914
    %1087 = vmatprep.subr.bf16.mxu0 %v919
    %1088 = vmatpush1.bf16.msra.mxu0 %v918
    %1089 = vmatprep.mubr.bf16.mxu0 %v555
    %1090 = vmatmul.mubr.bf16.gmra.mrb[0].mxu0 %v554
    %v1091 = vpop.f32.mrb[0].mxu0
    %v1092 = vadd.f32 %v659, %v1091
    %v1093 = vpop.f32.mrb[0].mxu0
    %v1094 = vadd.f32 %v663, %v1093
    %v1095 = vpop.f32.mrb[0].mxu0
    %v1096 = vadd.f32 %v659, %v1095
    %v1097 = vpop.f32.mrb[0].mxu0
    %v1098 = vadd.f32 %v663, %v1097
    %1099 = vmatprep.mubr.bf16.mxu0 %v557
    %1100 = vmatmul.mubr.bf16.gmra.mrb[0].mxu0 %v556
    %v1101 = vpop.f32.mrb[0].mxu0
    %v1102 = vadd.f32 %v659, %v1101
    %v1103 = vpop.f32.mrb[0].mxu0
    %v1104 = vadd.f32 %v663, %v1103
    %v1105 = vpop.f32.mrb[0].mxu0
    %v1106 = vadd.f32 %v659, %v1105
    %v1107 = vpop.f32.mrb[0].mxu0
    %v1108 = vadd.f32 %v663, %v1107
    %1109 = vmatprep.mubr.bf16.mxu0 %v559
    %1110 = vmatmul.mubr.bf16.gmra.mrb[0].mxu0 %v558
    %v1111 = vpop.f32.mrb[0].mxu0
    %v1112 = vadd.f32 %v659, %v1111
    %v1113 = vpop.f32.mrb[0].mxu0
    %v1114 = vadd.f32 %v663, %v1113
    %v1115 = vpop.f32.mrb[0].mxu0
    %v1116 = vadd.f32 %v659, %v1115
    %v1117 = vpop.f32.mrb[0].mxu0
    %v1118 = vadd.f32 %v663, %v1117
    %1119 = vmatprep.mubr.bf16.mxu0 %v561
    %1120 = vmatmul.mubr.bf16.gmra.mrb[0].mxu0 %v560
    %v1121 = vpop.f32.mrb[0].mxu0
    %v1122 = vadd.f32 %v659, %v1121
    %v1123 = vpop.f32.mrb[0].mxu0
    %v1124 = vadd.f32 %v663, %v1123
    %v1125 = vpop.f32.mrb[0].mxu0
    %v1126 = vadd.f32 %v659, %v1125
    %v1127 = vpop.f32.mrb[0].mxu0
    %v1128 = vadd.f32 %v663, %v1127
    %1129 = vdwg.mxu0
    %v1130 = vadd.f32 %v1019, %v1021
    %v1131 = vadd.f32 %v1130, %v1092
    %v1132 = vadd.f32 %v1131, %v1094
    %1133 = vadd.xlane.f32.xlu0 %v1132
    %v1134 = vpop.xlane.xlu0 %1133
    %v1135 = vadd.f32 %v1023, %v1025
    %v1136 = vadd.f32 %v1135, %v1096
    %v1137 = vadd.f32 %v1136, %v1098
    %1138 = vadd.xlane.f32.xlu0 %v1137
    %v1139 = vpop.xlane.xlu0 %1138
    %v1140 = vadd.f32 %v1029, %v1031
    %v1141 = vadd.f32 %v1140, %v1102
    %v1142 = vadd.f32 %v1141, %v1104
    %1143 = vadd.xlane.f32.xlu0 %v1142
    %v1144 = vpop.xlane.xlu0 %1143
    %v1145 = vadd.f32 %v1033, %v1035
    %v1146 = vadd.f32 %v1145, %v1106
    %v1147 = vadd.f32 %v1146, %v1108
    %1148 = vadd.xlane.f32.xlu0 %v1147
    %v1149 = vpop.xlane.xlu0 %1148
    %v1150 = vadd.f32 %v1039, %v1041
    %v1151 = vadd.f32 %v1150, %v1112
    %v1152 = vadd.f32 %v1151, %v1114
    %1153 = vadd.xlane.f32.xlu0 %v1152
    %v1154 = vpop.xlane.xlu0 %1153
    %v1155 = vadd.f32 %v1043, %v1045
    %v1156 = vadd.f32 %v1155, %v1116
    %v1157 = vadd.f32 %v1156, %v1118
    %1158 = vadd.xlane.f32.xlu0 %v1157
    %v1159 = vpop.xlane.xlu0 %1158
    %v1160 = vadd.f32 %v1049, %v1051
    %v1161 = vadd.f32 %v1160, %v1122
    %v1162 = vadd.f32 %v1161, %v1124
    %1163 = vadd.xlane.f32.xlu0 %v1162
    %v1164 = vpop.xlane.xlu0 %1163
    %v1165 = vadd.f32 %v1053, %v1055
    %v1166 = vadd.f32 %v1165, %v1126
    %v1167 = vadd.f32 %v1166, %v1128
    %1168 = vadd.xlane.f32.xlu0 %v1167
    %v1169 = vpop.xlane.xlu0 %1168
    %v1170 = vrcp.pop 512.0
    %v1171 = vmul.f32 %v1134, %v1170
    %v1172 = vmul.f32 %v1139, %v1170
    %v1173 = vmul.f32 %v1144, %v1170
    %v1174 = vmul.f32 %v1149, %v1170
    %v1175 = vmul.f32 %v1154, %v1170
    %v1176 = vmul.f32 %v1159, %v1170
    %v1177 = vmul.f32 %v1164, %v1170
    %v1178 = vmul.f32 %v1169, %v1170
    %v1179 = vsub.f32 %v1019, %v1171
    %v1180 = vsub.f32 %v1021, %v1171
    %v1181 = vsub.f32 %v1092, %v1171
    %v1182 = vsub.f32 %v1094, %v1171
    %v1183 = vsub.f32 %v1023, %v1172
    %v1184 = vsub.f32 %v1025, %v1172
    %v1185 = vsub.f32 %v1096, %v1172
    %v1186 = vsub.f32 %v1098, %v1172
    %v1187 = vsub.f32 %v1029, %v1173
    %v1188 = vsub.f32 %v1031, %v1173
    %v1189 = vsub.f32 %v1102, %v1173
    %v1190 = vsub.f32 %v1104, %v1173
    %v1191 = vsub.f32 %v1033, %v1174
    %v1192 = vsub.f32 %v1035, %v1174
    %v1193 = vsub.f32 %v1106, %v1174
    %v1194 = vsub.f32 %v1108, %v1174
    %v1195 = vsub.f32 %v1039, %v1175
    %v1196 = vsub.f32 %v1041, %v1175
    %v1197 = vsub.f32 %v1112, %v1175
    %v1198 = vsub.f32 %v1114, %v1175
    %v1199 = vsub.f32 %v1043, %v1176
    %v1200 = vsub.f32 %v1045, %v1176
    %v1201 = vsub.f32 %v1116, %v1176
    %v1202 = vsub.f32 %v1118, %v1176
    %v1203 = vsub.f32 %v1049, %v1177
    %v1204 = vsub.f32 %v1051, %v1177
    %v1205 = vsub.f32 %v1122, %v1177
    %v1206 = vsub.f32 %v1124, %v1177
    %v1207 = vsub.f32 %v1053, %v1178
    %v1208 = vsub.f32 %v1055, %v1178
    %v1209 = vsub.f32 %v1126, %v1178
    %v1210 = vsub.f32 %v1128, %v1178
    %v1211 = vmul.f32 %v1179, %v1179
    %v1212 = vmul.f32 %v1180, %v1180
    %v1213 = vmul.f32 %v1181, %v1181
    %v1214 = vmul.f32 %v1182, %v1182
    %v1215 = vmul.f32 %v1183, %v1183
    %v1216 = vmul.f32 %v1184, %v1184
    %v1217 = vmul.f32 %v1185, %v1185
    %v1218 = vmul.f32 %v1186, %v1186
    %v1219 = vmul.f32 %v1187, %v1187
    %v1220 = vmul.f32 %v1188, %v1188
    %v1221 = vmul.f32 %v1189, %v1189
    %v1222 = vmul.f32 %v1190, %v1190
    %v1223 = vmul.f32 %v1191, %v1191
    %v1224 = vmul.f32 %v1192, %v1192
    %v1225 = vmul.f32 %v1193, %v1193
    %v1226 = vmul.f32 %v1194, %v1194
    %v1227 = vmul.f32 %v1195, %v1195
    %v1228 = vmul.f32 %v1196, %v1196
    %v1229 = vmul.f32 %v1197, %v1197
    %v1230 = vmul.f32 %v1198, %v1198
    %v1231 = vmul.f32 %v1199, %v1199
    %v1232 = vmul.f32 %v1200, %v1200
    %v1233 = vmul.f32 %v1201, %v1201
    %v1234 = vmul.f32 %v1202, %v1202
    %v1235 = vmul.f32 %v1203, %v1203
    %v1236 = vmul.f32 %v1204, %v1204
    %v1237 = vmul.f32 %v1205, %v1205
    %v1238 = vmul.f32 %v1206, %v1206
    %v1239 = vmul.f32 %v1207, %v1207
    %v1240 = vmul.f32 %v1208, %v1208
    %v1241 = vmul.f32 %v1209, %v1209
    %v1242 = vmul.f32 %v1210, %v1210
    %v1243 = vadd.f32 %v1211, %v1212
    %v1244 = vadd.f32 %v1243, %v1213
    %v1245 = vadd.f32 %v1244, %v1214
    %1246 = vadd.xlane.f32.xlu0 %v1245
    %v1247 = vpop.xlane.xlu0 %1246
    %v1248 = vadd.f32 %v1215, %v1216
    %v1249 = vadd.f32 %v1248, %v1217
    %v1250 = vadd.f32 %v1249, %v1218
    %1251 = vadd.xlane.f32.xlu0 %v1250
    %v1252 = vpop.xlane.xlu0 %1251
    %v1253 = vadd.f32 %v1219, %v1220
    %v1254 = vadd.f32 %v1253, %v1221
    %v1255 = vadd.f32 %v1254, %v1222
    %1256 = vadd.xlane.f32.xlu0 %v1255
    %v1257 = vpop.xlane.xlu0 %1256
    %v1258 = vadd.f32 %v1223, %v1224
    %v1259 = vadd.f32 %v1258, %v1225
    %v1260 = vadd.f32 %v1259, %v1226
    %1261 = vadd.xlane.f32.xlu0 %v1260
    %v1262 = vpop.xlane.xlu0 %1261
    %v1263 = vadd.f32 %v1227, %v1228
    %v1264 = vadd.f32 %v1263, %v1229
    %v1265 = vadd.f32 %v1264, %v1230
    %1266 = vadd.xlane.f32.xlu0 %v1265
    %v1267 = vpop.xlane.xlu0 %1266
    %v1268 = vadd.f32 %v1231, %v1232
    %v1269 = vadd.f32 %v1268, %v1233
    %v1270 = vadd.f32 %v1269, %v1234
    %1271 = vadd.xlane.f32.xlu0 %v1270
    %v1272 = vpop.xlane.xlu0 %1271
    %v1273 = vadd.f32 %v1235, %v1236
    %v1274 = vadd.f32 %v1273, %v1237
    %v1275 = vadd.f32 %v1274, %v1238
    %1276 = vadd.xlane.f32.xlu0 %v1275
    %v1277 = vpop.xlane.xlu0 %1276
    %v1278 = vadd.f32 %v1239, %v1240
    %v1279 = vadd.f32 %v1278, %v1241
    %v1280 = vadd.f32 %v1279, %v1242
    %1281 = vadd.xlane.f32.xlu0 %v1280
    %v1282 = vpop.xlane.xlu0 %1281
    %v1283 = vmul.f32 %v1247, %v1170
    %v1284 = vmul.f32 %v1252, %v1170
    %v1285 = vmul.f32 %v1257, %v1170
    %v1286 = vmul.f32 %v1262, %v1170
    %v1287 = vmul.f32 %v1267, %v1170
    %v1288 = vmul.f32 %v1272, %v1170
    %v1289 = vmul.f32 %v1277, %v1170
    %v1290 = vmul.f32 %v1282, %v1170
    %v1291 = vadd.f32 %v1283, 1e-05
    %v1292 = vadd.f32 %v1284, 1e-05
    %v1293 = vadd.f32 %v1285, 1e-05
    %v1294 = vadd.f32 %v1286, 1e-05
    %v1295 = vadd.f32 %v1287, 1e-05
    %v1296 = vadd.f32 %v1288, 1e-05
    %v1297 = vadd.f32 %v1289, 1e-05
    %v1298 = vadd.f32 %v1290, 1e-05
    %v1299 = vrsqrt.pop %v1291
    %v1300 = vrsqrt.pop %v1292
    %v1301 = vrsqrt.pop %v1293
    %v1302 = vrsqrt.pop %v1294
    %v1303 = vrsqrt.pop %v1295
    %v1304 = vrsqrt.pop %v1296
    %v1305 = vrsqrt.pop %v1297
    %v1306 = vrsqrt.pop %v1298
    %v1307 = vmul.f32 %v1179, %v1299
    %v1308 = vmul.f32 %v1180, %v1299
    %v1309 = vmul.f32 %v1181, %v1299
    %v1310 = vmul.f32 %v1182, %v1299
    %v1311 = vmul.f32 %v1183, %v1300
    %v1312 = vmul.f32 %v1184, %v1300
    %v1313 = vmul.f32 %v1185, %v1300
    %v1314 = vmul.f32 %v1186, %v1300
    %v1315 = vmul.f32 %v1187, %v1301
    %v1316 = vmul.f32 %v1188, %v1301
    %v1317 = vmul.f32 %v1189, %v1301
    %v1318 = vmul.f32 %v1190, %v1301
    %v1319 = vmul.f32 %v1191, %v1302
    %v1320 = vmul.f32 %v1192, %v1302
    %v1321 = vmul.f32 %v1193, %v1302
    %v1322 = vmul.f32 %v1194, %v1302
    %v1323 = vmul.f32 %v1195, %v1303
    %v1324 = vmul.f32 %v1196, %v1303
    %v1325 = vmul.f32 %v1197, %v1303
    %v1326 = vmul.f32 %v1198, %v1303
    %v1327 = vmul.f32 %v1199, %v1304
    %v1328 = vmul.f32 %v1200, %v1304
    %v1329 = vmul.f32 %v1201, %v1304
    %v1330 = vmul.f32 %v1202, %v1304
    %v1331 = vmul.f32 %v1203, %v1305
    %v1332 = vmul.f32 %v1204, %v1305
    %v1333 = vmul.f32 %v1205, %v1305
    %v1334 = vmul.f32 %v1206, %v1305
    %v1335 = vmul.f32 %v1207, %v1306
    %v1336 = vmul.f32 %v1208, %v1306
    %v1337 = vmul.f32 %v1209, %v1306
    %v1338 = vmul.f32 %v1210, %v1306
    %v1339 = vlaneseq
    %v1340 = vshrl.u32 %v1339, 7
    %v1341 = vsub.s32 1, %v1340
    %v1342 = vrot.slane %v552, %v1341
    %v1343 = vlaneseq
    %v1344 = vshrl.u32 %v1343, 7
    %v1345 = vsub.s32 5, %v1344
    %v1346 = vrot.slane %v552, %v1345
    %v1347 = vlaneseq
    %v1348 = vshrl.u32 %v1347, 7
    %v1349 = vsub.s32 1, %v1348
    %v1350 = vrot.slane %v553, %v1349
    %v1351 = vlaneseq
    %v1352 = vshrl.u32 %v1351, 7
    %v1353 = vsub.s32 5, %v1352
    %v1354 = vrot.slane %v553, %v1353
    %v1359 = vlaneseq
    %v1360 = vshrl.u32 %v1359, 7
    %v1361 = vsub.s32 1, %v1360
    %v1362 = vrot.slane %v1342, %v1361
    %v1363 = vlaneseq
    %v1364 = vshrl.u32 %v1363, 7
    %v1365 = vsub.s32 1, %v1364
    %v1366 = vrot.slane %v1346, %v1365
    %v1367 = vlaneseq
    %v1368 = vshrl.u32 %v1367, 7
    %v1369 = vsub.s32 1, %v1368
    %v1370 = vrot.slane %v1350, %v1369
    %v1371 = vlaneseq
    %v1372 = vshrl.u32 %v1371, 7
    %v1373 = vsub.s32 1, %v1372
    %v1374 = vrot.slane %v1354, %v1373
    %v1375 = vmul.f32 %v1307, %v1362
    %v1376 = vmul.f32 %v1308, %v1366
    %v1377 = vmul.f32 %v1309, %v1370
    %v1378 = vmul.f32 %v1310, %v1374
    %v1379 = vmul.f32 %v1311, %v1362
    %v1380 = vmul.f32 %v1312, %v1366
    %v1381 = vmul.f32 %v1313, %v1370
    %v1382 = vmul.f32 %v1314, %v1374
    %v1383 = vmul.f32 %v1315, %v1362
    %v1384 = vmul.f32 %v1316, %v1366
    %v1385 = vmul.f32 %v1317, %v1370
    %v1386 = vmul.f32 %v1318, %v1374
    %v1387 = vmul.f32 %v1319, %v1362
    %v1388 = vmul.f32 %v1320, %v1366
    %v1389 = vmul.f32 %v1321, %v1370
    %v1390 = vmul.f32 %v1322, %v1374
    %v1391 = vmul.f32 %v1323, %v1362
    %v1392 = vmul.f32 %v1324, %v1366
    %v1393 = vmul.f32 %v1325, %v1370
    %v1394 = vmul.f32 %v1326, %v1374
    %v1395 = vmul.f32 %v1327, %v1362
    %v1396 = vmul.f32 %v1328, %v1366
    %v1397 = vmul.f32 %v1329, %v1370
    %v1398 = vmul.f32 %v1330, %v1374
    %v1399 = vmul.f32 %v1331, %v1362
    %v1400 = vmul.f32 %v1332, %v1366
    %v1401 = vmul.f32 %v1333, %v1370
    %v1402 = vmul.f32 %v1334, %v1374
    %v1403 = vmul.f32 %v1335, %v1362
    %v1404 = vmul.f32 %v1336, %v1366
    %v1405 = vmul.f32 %v1337, %v1370
    %v1406 = vmul.f32 %v1338, %v1374
    %v1407 = vlaneseq
    %v1408 = vshrl.u32 %v1407, 7
    %v1409 = vsub.s32 2, %v1408
    %v1410 = vrot.slane %v552, %v1409
    %v1411 = vlaneseq
    %v1412 = vshrl.u32 %v1411, 7
    %v1413 = vsub.s32 6, %v1412
    %v1414 = vrot.slane %v552, %v1413
    %v1415 = vlaneseq
    %v1416 = vshrl.u32 %v1415, 7
    %v1417 = vsub.s32 2, %v1416
    %v1418 = vrot.slane %v553, %v1417
    %v1419 = vlaneseq
    %v1420 = vshrl.u32 %v1419, 7
    %v1421 = vsub.s32 6, %v1420
    %v1422 = vrot.slane %v553, %v1421
    %v1427 = vlaneseq
    %v1428 = vshrl.u32 %v1427, 7
    %v1429 = vsub.s32 2, %v1428
    %v1430 = vrot.slane %v1410, %v1429
    %v1431 = vlaneseq
    %v1432 = vshrl.u32 %v1431, 7
    %v1433 = vsub.s32 2, %v1432
    %v1434 = vrot.slane %v1414, %v1433
    %v1435 = vlaneseq
    %v1436 = vshrl.u32 %v1435, 7
    %v1437 = vsub.s32 2, %v1436
    %v1438 = vrot.slane %v1418, %v1437
    %v1439 = vlaneseq
    %v1440 = vshrl.u32 %v1439, 7
    %v1441 = vsub.s32 2, %v1440
    %v1442 = vrot.slane %v1422, %v1441
    %v1443 = vadd.f32 %v1375, %v1430
    %v1444 = vadd.f32 %v1376, %v1434
    %v1445 = vadd.f32 %v1377, %v1438
    %v1446 = vadd.f32 %v1378, %v1442
    %v1447 = vadd.f32 %v1379, %v1430
    %v1448 = vadd.f32 %v1380, %v1434
    %v1449 = vadd.f32 %v1381, %v1438
    %v1450 = vadd.f32 %v1382, %v1442
    %v1451 = vadd.f32 %v1383, %v1430
    %v1452 = vadd.f32 %v1384, %v1434
    %v1453 = vadd.f32 %v1385, %v1438
    %v1454 = vadd.f32 %v1386, %v1442
    %v1455 = vadd.f32 %v1387, %v1430
    %v1456 = vadd.f32 %v1388, %v1434
    %v1457 = vadd.f32 %v1389, %v1438
    %v1458 = vadd.f32 %v1390, %v1442
    %v1459 = vadd.f32 %v1391, %v1430
    %v1460 = vadd.f32 %v1392, %v1434
    %v1461 = vadd.f32 %v1393, %v1438
    %v1462 = vadd.f32 %v1394, %v1442
    %v1463 = vadd.f32 %v1395, %v1430
    %v1464 = vadd.f32 %v1396, %v1434
    %v1465 = vadd.f32 %v1397, %v1438
    %v1466 = vadd.f32 %v1398, %v1442
    %v1467 = vadd.f32 %v1399, %v1430
    %v1468 = vadd.f32 %v1400, %v1434
    %v1469 = vadd.f32 %v1401, %v1438
    %v1470 = vadd.f32 %v1402, %v1442
    %v1471 = vadd.f32 %v1403, %v1430
    %v1472 = vadd.f32 %v1404, %v1434
    %v1473 = vadd.f32 %v1405, %v1438
    %v1474 = vadd.f32 %v1406, %v1442
    %v1475 = vtanh.pop %v1443
    %v1476 = vtanh.pop %v1444
    %v1477 = vtanh.pop %v1445
    %v1478 = vtanh.pop %v1446
    %v1479 = vtanh.pop %v1447
    %v1480 = vtanh.pop %v1448
    %v1481 = vtanh.pop %v1449
    %v1482 = vtanh.pop %v1450
    %v1483 = vtanh.pop %v1451
    %v1484 = vtanh.pop %v1452
    %v1485 = vtanh.pop %v1453
    %v1486 = vtanh.pop %v1454
    %v1487 = vtanh.pop %v1455
    %v1488 = vtanh.pop %v1456
    %v1489 = vtanh.pop %v1457
    %v1490 = vtanh.pop %v1458
    %v1491 = vtanh.pop %v1459
    %v1492 = vtanh.pop %v1460
    %v1493 = vtanh.pop %v1461
    %v1494 = vtanh.pop %v1462
    %v1495 = vtanh.pop %v1463
    %v1496 = vtanh.pop %v1464
    %v1497 = vtanh.pop %v1465
    %v1498 = vtanh.pop %v1466
    %v1499 = vtanh.pop %v1467
    %v1500 = vtanh.pop %v1468
    %v1501 = vtanh.pop %v1469
    %v1502 = vtanh.pop %v1470
    %v1503 = vtanh.pop %v1471
    %v1504 = vtanh.pop %v1472
    %v1505 = vtanh.pop %v1473
    %v1506 = vtanh.pop %v1474
    %v1507 = vld [vmem:[%s6] sm:$0x77]
    %v1508 = vld [vmem:[%s6 + $0x8] sm:$0x77]
    %v1509 = vpack.c.bf16 %v1479, %v1475
    %v1510 = vpack.c.bf16 %v1480, %v1476
    %v1511 = vpack.c.bf16 %v1481, %v1477
    %v1512 = vpack.c.bf16 %v1482, %v1478
    %v1513 = vpack.c.bf16 %v1487, %v1483
    %v1514 = vpack.c.bf16 %v1488, %v1484
    %v1515 = vpack.c.bf16 %v1489, %v1485
    %v1516 = vpack.c.bf16 %v1490, %v1486
    %v1517 = vpack.c.bf16 %v1495, %v1491
    %v1518 = vpack.c.bf16 %v1496, %v1492
    %v1519 = vpack.c.bf16 %v1497, %v1493
    %v1520 = vpack.c.bf16 %v1498, %v1494
    %v1521 = vpack.c.bf16 %v1503, %v1499
    %v1522 = vpack.c.bf16 %v1504, %v1500
    %v1523 = vpack.c.bf16 %v1505, %v1501
    %v1524 = vpack.c.bf16 %v1506, %v1502
    %v1525 = vld [vmem:[#allocation5] sm:$0xff]
    %v1526 = vld [vmem:[#allocation5 + $0x8] sm:$0xff]
    %v1527 = vld [vmem:[#allocation5 + $0x10] sm:$0xff]
    %v1528 = vld [vmem:[#allocation5 + $0x18] sm:$0xff]
    %v1529 = vld [vmem:[#allocation5 + $0x20] sm:$0xff]
    %v1530 = vld [vmem:[#allocation5 + $0x28] sm:$0xff]
    %v1531 = vld [vmem:[#allocation5 + $0x30] sm:$0xff]
    %v1532 = vld [vmem:[#allocation5 + $0x38] sm:$0xff]
    %v1533 = vld [vmem:[#allocation5 + $0x40] sm:$0xff]
    %v1534 = vld [vmem:[#allocation5 + $0x48] sm:$0xff]
    %v1535 = vld [vmem:[#allocation5 + $0x50] sm:$0xff]
    %v1536 = vld [vmem:[#allocation5 + $0x58] sm:$0xff]
    %v1537 = vld [vmem:[#allocation5 + $0x60] sm:$0xff]
    %v1538 = vld [vmem:[#allocation5 + $0x68] sm:$0xff]
    %v1539 = vld [vmem:[#allocation5 + $0x70] sm:$0xff]
    %v1540 = vld [vmem:[#allocation5 + $0x78] sm:$0xff]
    %v1541 = vld [vmem:[#allocation5 + $0x80] sm:$0xff]
    %v1542 = vld [vmem:[#allocation5 + $0x88] sm:$0xff]
    %v1543 = vld [vmem:[#allocation5 + $0x90] sm:$0xff]
    %v1544 = vld [vmem:[#allocation5 + $0x98] sm:$0xff]
    %v1545 = vld [vmem:[#allocation5 + $0xa0] sm:$0xff]
    %v1546 = vld [vmem:[#allocation5 + $0xa8] sm:$0xff]
    %v1547 = vld [vmem:[#allocation5 + $0xb0] sm:$0xff]
    %v1548 = vld [vmem:[#allocation5 + $0xb8] sm:$0xff]
    %v1549 = vld [vmem:[#allocation5 + $0xc0] sm:$0xff]
    %v1550 = vld [vmem:[#allocation5 + $0xc8] sm:$0xff]
    %v1551 = vld [vmem:[#allocation5 + $0xd0] sm:$0xff]
    %v1552 = vld [vmem:[#allocation5 + $0xd8] sm:$0xff]
    %v1553 = vld [vmem:[#allocation5 + $0xe0] sm:$0xff]
    %v1554 = vld [vmem:[#allocation5 + $0xe8] sm:$0xff]
    %v1555 = vld [vmem:[#allocation5 + $0xf0] sm:$0xff]
    %v1556 = vld [vmem:[#allocation5 + $0xf8] sm:$0xff]
    %v1557 = vld [vmem:[#allocation5 + $0x100] sm:$0xff]
    %v1558 = vld [vmem:[#allocation5 + $0x108] sm:$0xff]
    %v1559 = vld [vmem:[#allocation5 + $0x110] sm:$0xff]
    %v1560 = vld [vmem:[#allocation5 + $0x118] sm:$0xff]
    %v1561 = vld [vmem:[#allocation5 + $0x120] sm:$0xff]
    %v1562 = vld [vmem:[#allocation5 + $0x128] sm:$0xff]
    %v1563 = vld [vmem:[#allocation5 + $0x130] sm:$0xff]
    %v1564 = vld [vmem:[#allocation5 + $0x138] sm:$0xff]
    %v1565 = vld [vmem:[#allocation5 + $0x140] sm:$0xff]
    %v1566 = vld [vmem:[#allocation5 + $0x148] sm:$0xff]
    %v1567 = vld [vmem:[#allocation5 + $0x150] sm:$0xff]
    %v1568 = vld [vmem:[#allocation5 + $0x158] sm:$0xff]
    %v1569 = vld [vmem:[#allocation5 + $0x160] sm:$0xff]
    %v1570 = vld [vmem:[#allocation5 + $0x168] sm:$0xff]
    %v1571 = vld [vmem:[#allocation5 + $0x170] sm:$0xff]
    %v1572 = vld [vmem:[#allocation5 + $0x178] sm:$0xff]
    %v1573 = vld [vmem:[#allocation5 + $0x180] sm:$0xff]
    %v1574 = vld [vmem:[#allocation5 + $0x188] sm:$0xff]
    %v1575 = vld [vmem:[#allocation5 + $0x190] sm:$0xff]
    %v1576 = vld [vmem:[#allocation5 + $0x198] sm:$0xff]
    %v1577 = vld [vmem:[#allocation5 + $0x1a0] sm:$0xff]
    %v1578 = vld [vmem:[#allocation5 + $0x1a8] sm:$0xff]
    %v1579 = vld [vmem:[#allocation5 + $0x1b0] sm:$0xff]
    %v1580 = vld [vmem:[#allocation5 + $0x1b8] sm:$0xff]
    %v1581 = vld [vmem:[#allocation5 + $0x1c0] sm:$0xff]
    %v1582 = vld [vmem:[#allocation5 + $0x1c8] sm:$0xff]
    %v1583 = vld [vmem:[#allocation5 + $0x1d0] sm:$0xff]
    %v1584 = vld [vmem:[#allocation5 + $0x1d8] sm:$0xff]
    %v1585 = vld [vmem:[#allocation5 + $0x1e0] sm:$0xff]
    %v1586 = vld [vmem:[#allocation5 + $0x1e8] sm:$0xff]
    %v1587 = vld [vmem:[#allocation5 + $0x1f0] sm:$0xff]
    %v1588 = vld [vmem:[#allocation5 + $0x1f8] sm:$0xff]
    %v1589 = vld [vmem:[#allocation5 + $0x200] sm:$0xff]
    %v1590 = vld [vmem:[#allocation5 + $0x208] sm:$0xff]
    %v1591 = vld [vmem:[#allocation5 + $0x210] sm:$0xff]
    %v1592 = vld [vmem:[#allocation5 + $0x218] sm:$0xff]
    %v1593 = vld [vmem:[#allocation5 + $0x220] sm:$0xff]
    %v1594 = vld [vmem:[#allocation5 + $0x228] sm:$0xff]
    %v1595 = vld [vmem:[#allocation5 + $0x230] sm:$0xff]
    %v1596 = vld [vmem:[#allocation5 + $0x238] sm:$0xff]
    %v1597 = vld [vmem:[#allocation5 + $0x240] sm:$0xff]
    %v1598 = vld [vmem:[#allocation5 + $0x248] sm:$0xff]
    %v1599 = vld [vmem:[#allocation5 + $0x250] sm:$0xff]
    %v1600 = vld [vmem:[#allocation5 + $0x258] sm:$0xff]
    %v1601 = vld [vmem:[#allocation5 + $0x260] sm:$0xff]
    %v1602 = vld [vmem:[#allocation5 + $0x268] sm:$0xff]
    %v1603 = vld [vmem:[#allocation5 + $0x270] sm:$0xff]
    %v1604 = vld [vmem:[#allocation5 + $0x278] sm:$0xff]
    %v1605 = vld [vmem:[#allocation5 + $0x280] sm:$0xff]
    %v1606 = vld [vmem:[#allocation5 + $0x288] sm:$0xff]
    %v1607 = vld [vmem:[#allocation5 + $0x290] sm:$0xff]
    %v1608 = vld [vmem:[#allocation5 + $0x298] sm:$0xff]
    %v1609 = vld [vmem:[#allocation5 + $0x2a0] sm:$0xff]
    %v1610 = vld [vmem:[#allocation5 + $0x2a8] sm:$0xff]
    %v1611 = vld [vmem:[#allocation5 + $0x2b0] sm:$0xff]
    %v1612 = vld [vmem:[#allocation5 + $0x2b8] sm:$0xff]
    %v1613 = vld [vmem:[#allocation5 + $0x2c0] sm:$0xff]
    %v1614 = vld [vmem:[#allocation5 + $0x2c8] sm:$0xff]
    %v1615 = vld [vmem:[#allocation5 + $0x2d0] sm:$0xff]
    %v1616 = vld [vmem:[#allocation5 + $0x2d8] sm:$0xff]
    %v1617 = vld [vmem:[#allocation5 + $0x2e0] sm:$0xff]
    %v1618 = vld [vmem:[#allocation5 + $0x2e8] sm:$0xff]
    %v1619 = vld [vmem:[#allocation5 + $0x2f0] sm:$0xff]
    %v1620 = vld [vmem:[#allocation5 + $0x2f8] sm:$0xff]
    %v1621 = vld [vmem:[#allocation5 + $0x300] sm:$0xff]
    %v1622 = vld [vmem:[#allocation5 + $0x308] sm:$0xff]
    %v1623 = vld [vmem:[#allocation5 + $0x310] sm:$0xff]
    %v1624 = vld [vmem:[#allocation5 + $0x318] sm:$0xff]
    %v1625 = vld [vmem:[#allocation5 + $0x320] sm:$0xff]
    %v1626 = vld [vmem:[#allocation5 + $0x328] sm:$0xff]
    %v1627 = vld [vmem:[#allocation5 + $0x330] sm:$0xff]
    %v1628 = vld [vmem:[#allocation5 + $0x338] sm:$0xff]
    %v1629 = vld [vmem:[#allocation5 + $0x340] sm:$0xff]
    %v1630 = vld [vmem:[#allocation5 + $0x348] sm:$0xff]
    %v1631 = vld [vmem:[#allocation5 + $0x350] sm:$0xff]
    %v1632 = vld [vmem:[#allocation5 + $0x358] sm:$0xff]
    %v1633 = vld [vmem:[#allocation5 + $0x360] sm:$0xff]
    %v1634 = vld [vmem:[#allocation5 + $0x368] sm:$0xff]
    %v1635 = vld [vmem:[#allocation5 + $0x370] sm:$0xff]
    %v1636 = vld [vmem:[#allocation5 + $0x378] sm:$0xff]
    %v1637 = vld [vmem:[#allocation5 + $0x380] sm:$0xff]
    %v1638 = vld [vmem:[#allocation5 + $0x388] sm:$0xff]
    %v1639 = vld [vmem:[#allocation5 + $0x390] sm:$0xff]
    %v1640 = vld [vmem:[#allocation5 + $0x398] sm:$0xff]
    %v1641 = vld [vmem:[#allocation5 + $0x3a0] sm:$0xff]
    %v1642 = vld [vmem:[#allocation5 + $0x3a8] sm:$0xff]
    %v1643 = vld [vmem:[#allocation5 + $0x3b0] sm:$0xff]
    %v1644 = vld [vmem:[#allocation5 + $0x3b8] sm:$0xff]
    %v1645 = vld [vmem:[#allocation5 + $0x3c0] sm:$0xff]
    %v1646 = vld [vmem:[#allocation5 + $0x3c8] sm:$0xff]
    %v1647 = vld [vmem:[#allocation5 + $0x3d0] sm:$0xff]
    %v1648 = vld [vmem:[#allocation5 + $0x3d8] sm:$0xff]
    %v1649 = vld [vmem:[#allocation5 + $0x3e0] sm:$0xff]
    %v1650 = vld [vmem:[#allocation5 + $0x3e8] sm:$0xff]
    %v1651 = vld [vmem:[#allocation5 + $0x3f0] sm:$0xff]
    %v1652 = vld [vmem:[#allocation5 + $0x3f8] sm:$0xff]
    %v1655 = vlaneseq
    %v1656 = vshrl.u32 %v1655, 7
    %v1657 = vsub.s32 0, %v1656
    %v1658 = vrot.slane %v1507, %v1657
    %v1659 = vlaneseq
    %v1660 = vshrl.u32 %v1659, 7
    %v1661 = vsub.s32 4, %v1660
    %v1662 = vrot.slane %v1507, %v1661
    %v1663 = vlaneseq
    %v1664 = vshrl.u32 %v1663, 7
    %v1665 = vsub.s32 0, %v1664
    %v1666 = vrot.slane %v1508, %v1665
    %v1667 = vlaneseq
    %v1668 = vshrl.u32 %v1667, 7
    %v1669 = vsub.s32 4, %v1668
    %v1670 = vrot.slane %v1508, %v1669
    %v1675 = vlaneseq
    %v1676 = vshrl.u32 %v1675, 7
    %v1677 = vsub.s32 0, %v1676
    %v1678 = vrot.slane %v1658, %v1677
    %v1679 = vlaneseq
    %v1680 = vshrl.u32 %v1679, 7
    %v1681 = vsub.s32 0, %v1680
    %v1682 = vrot.slane %v1662, %v1681
    %v1683 = vlaneseq
    %v1684 = vshrl.u32 %v1683, 7
    %v1685 = vsub.s32 0, %v1684
    %v1686 = vrot.slane %v1666, %v1685
    %v1687 = vlaneseq
    %v1688 = vshrl.u32 %v1687, 7
    %v1689 = vsub.s32 0, %v1688
    %v1690 = vrot.slane %v1670, %v1689
    %v1819 = vunpack.c.l.b16 %v1525
    %v1820 = vunpack.c.h.b16 %v1525
    %v1821 = vunpack.c.l.b16 %v1526
    %v1822 = vunpack.c.h.b16 %v1526
    %v1823 = vunpack.c.l.b16 %v1527
    %v1824 = vunpack.c.h.b16 %v1527
    %v1825 = vunpack.c.l.b16 %v1528
    %v1826 = vunpack.c.h.b16 %v1528
    %v1827 = vunpack.c.l.b16 %v1529
    %v1828 = vunpack.c.h.b16 %v1529
    %v1829 = vunpack.c.l.b16 %v1530
    %v1830 = vunpack.c.h.b16 %v1530
    %v1831 = vunpack.c.l.b16 %v1531
    %v1832 = vunpack.c.h.b16 %v1531
    %v1833 = vunpack.c.l.b16 %v1532
    %v1834 = vunpack.c.h.b16 %v1532
    %v1835 = vunpack.c.l.b16 %v1533
    %v1836 = vunpack.c.h.b16 %v1533
    %v1837 = vunpack.c.l.b16 %v1534
    %v1838 = vunpack.c.h.b16 %v1534
    %v1839 = vunpack.c.l.b16 %v1535
    %v1840 = vunpack.c.h.b16 %v1535
    %v1841 = vunpack.c.l.b16 %v1536
    %v1842 = vunpack.c.h.b16 %v1536
    %v1843 = vunpack.c.l.b16 %v1537
    %v1844 = vunpack.c.h.b16 %v1537
    %v1845 = vunpack.c.l.b16 %v1538
    %v1846 = vunpack.c.h.b16 %v1538
    %v1847 = vunpack.c.l.b16 %v1539
    %v1848 = vunpack.c.h.b16 %v1539
    %v1849 = vunpack.c.l.b16 %v1540
    %v1850 = vunpack.c.h.b16 %v1540
    %v1851 = vunpack.c.l.b16 %v1541
    %v1852 = vunpack.c.h.b16 %v1541
    %v1853 = vunpack.c.l.b16 %v1542
    %v1854 = vunpack.c.h.b16 %v1542
    %v1855 = vunpack.c.l.b16 %v1543
    %v1856 = vunpack.c.h.b16 %v1543
    %v1857 = vunpack.c.l.b16 %v1544
    %v1858 = vunpack.c.h.b16 %v1544
    %v1859 = vunpack.c.l.b16 %v1545
    %v1860 = vunpack.c.h.b16 %v1545
    %v1861 = vunpack.c.l.b16 %v1546
    %v1862 = vunpack.c.h.b16 %v1546
    %v1863 = vunpack.c.l.b16 %v1547
    %v1864 = vunpack.c.h.b16 %v1547
    %v1865 = vunpack.c.l.b16 %v1548
    %v1866 = vunpack.c.h.b16 %v1548
    %v1867 = vunpack.c.l.b16 %v1549
    %v1868 = vunpack.c.h.b16 %v1549
    %v1869 = vunpack.c.l.b16 %v1550
    %v1870 = vunpack.c.h.b16 %v1550
    %v1871 = vunpack.c.l.b16 %v1551
    %v1872 = vunpack.c.h.b16 %v1551
    %v1873 = vunpack.c.l.b16 %v1552
    %v1874 = vunpack.c.h.b16 %v1552
    %v1875 = vunpack.c.l.b16 %v1553
    %v1876 = vunpack.c.h.b16 %v1553
    %v1877 = vunpack.c.l.b16 %v1554
    %v1878 = vunpack.c.h.b16 %v1554
    %v1879 = vunpack.c.l.b16 %v1555
    %v1880 = vunpack.c.h.b16 %v1555
    %v1881 = vunpack.c.l.b16 %v1556
    %v1882 = vunpack.c.h.b16 %v1556
    %v1883 = vunpack.c.l.b16 %v1557
    %v1884 = vunpack.c.h.b16 %v1557
    %v1885 = vunpack.c.l.b16 %v1558
    %v1886 = vunpack.c.h.b16 %v1558
    %v1887 = vunpack.c.l.b16 %v1559
    %v1888 = vunpack.c.h.b16 %v1559
    %v1889 = vunpack.c.l.b16 %v1560
    %v1890 = vunpack.c.h.b16 %v1560
    %v1891 = vunpack.c.l.b16 %v1561
    %v1892 = vunpack.c.h.b16 %v1561
    %v1893 = vunpack.c.l.b16 %v1562
    %v1894 = vunpack.c.h.b16 %v1562
    %v1895 = vunpack.c.l.b16 %v1563
    %v1896 = vunpack.c.h.b16 %v1563
    %v1897 = vunpack.c.l.b16 %v1564
    %v1898 = vunpack.c.h.b16 %v1564
    %v1899 = vunpack.c.l.b16 %v1565
    %v1900 = vunpack.c.h.b16 %v1565
    %v1901 = vunpack.c.l.b16 %v1566
    %v1902 = vunpack.c.h.b16 %v1566
    %v1903 = vunpack.c.l.b16 %v1567
    %v1904 = vunpack.c.h.b16 %v1567
    %v1905 = vunpack.c.l.b16 %v1568
    %v1906 = vunpack.c.h.b16 %v1568
    %v1907 = vunpack.c.l.b16 %v1569
    %v1908 = vunpack.c.h.b16 %v1569
    %v1909 = vunpack.c.l.b16 %v1570
    %v1910 = vunpack.c.h.b16 %v1570
    %v1911 = vunpack.c.l.b16 %v1571
    %v1912 = vunpack.c.h.b16 %v1571
    %v1913 = vunpack.c.l.b16 %v1572
    %v1914 = vunpack.c.h.b16 %v1572
    %v1915 = vunpack.c.l.b16 %v1573
    %v1916 = vunpack.c.h.b16 %v1573
    %v1917 = vunpack.c.l.b16 %v1574
    %v1918 = vunpack.c.h.b16 %v1574
    %v1919 = vunpack.c.l.b16 %v1575
    %v1920 = vunpack.c.h.b16 %v1575
    %v1921 = vunpack.c.l.b16 %v1576
    %v1922 = vunpack.c.h.b16 %v1576
    %v1923 = vunpack.c.l.b16 %v1577
    %v1924 = vunpack.c.h.b16 %v1577
    %v1925 = vunpack.c.l.b16 %v1578
    %v1926 = vunpack.c.h.b16 %v1578
    %v1927 = vunpack.c.l.b16 %v1579
    %v1928 = vunpack.c.h.b16 %v1579
    %v1929 = vunpack.c.l.b16 %v1580
    %v1930 = vunpack.c.h.b16 %v1580
    %v1931 = vunpack.c.l.b16 %v1581
    %v1932 = vunpack.c.h.b16 %v1581
    %v1933 = vunpack.c.l.b16 %v1582
    %v1934 = vunpack.c.h.b16 %v1582
    %v1935 = vunpack.c.l.b16 %v1583
    %v1936 = vunpack.c.h.b16 %v1583
    %v1937 = vunpack.c.l.b16 %v1584
    %v1938 = vunpack.c.h.b16 %v1584
    %v1939 = vunpack.c.l.b16 %v1585
    %v1940 = vunpack.c.h.b16 %v1585
    %v1941 = vunpack.c.l.b16 %v1586
    %v1942 = vunpack.c.h.b16 %v1586
    %v1943 = vunpack.c.l.b16 %v1587
    %v1944 = vunpack.c.h.b16 %v1587
    %v1945 = vunpack.c.l.b16 %v1588
    %v1946 = vunpack.c.h.b16 %v1588
    %v1947 = vunpack.c.l.b16 %v1589
    %v1948 = vunpack.c.h.b16 %v1589
    %v1949 = vunpack.c.l.b16 %v1590
    %v1950 = vunpack.c.h.b16 %v1590
    %v1951 = vunpack.c.l.b16 %v1591
    %v1952 = vunpack.c.h.b16 %v1591
    %v1953 = vunpack.c.l.b16 %v1592
    %v1954 = vunpack.c.h.b16 %v1592
    %v1955 = vunpack.c.l.b16 %v1593
    %v1956 = vunpack.c.h.b16 %v1593
    %v1957 = vunpack.c.l.b16 %v1594
    %v1958 = vunpack.c.h.b16 %v1594
    %v1959 = vunpack.c.l.b16 %v1595
    %v1960 = vunpack.c.h.b16 %v1595
    %v1961 = vunpack.c.l.b16 %v1596
    %v1962 = vunpack.c.h.b16 %v1596
    %v1963 = vunpack.c.l.b16 %v1597
    %v1964 = vunpack.c.h.b16 %v1597
    %v1965 = vunpack.c.l.b16 %v1598
    %v1966 = vunpack.c.h.b16 %v1598
    %v1967 = vunpack.c.l.b16 %v1599
    %v1968 = vunpack.c.h.b16 %v1599
    %v1969 = vunpack.c.l.b16 %v1600
    %v1970 = vunpack.c.h.b16 %v1600
    %v1971 = vunpack.c.l.b16 %v1601
    %v1972 = vunpack.c.h.b16 %v1601
    %v1973 = vunpack.c.l.b16 %v1602
    %v1974 = vunpack.c.h.b16 %v1602
    %v1975 = vunpack.c.l.b16 %v1603
    %v1976 = vunpack.c.h.b16 %v1603
    %v1977 = vunpack.c.l.b16 %v1604
    %v1978 = vunpack.c.h.b16 %v1604
    %v1979 = vunpack.c.l.b16 %v1605
    %v1980 = vunpack.c.h.b16 %v1605
    %v1981 = vunpack.c.l.b16 %v1606
    %v1982 = vunpack.c.h.b16 %v1606
    %v1983 = vunpack.c.l.b16 %v1607
    %v1984 = vunpack.c.h.b16 %v1607
    %v1985 = vunpack.c.l.b16 %v1608
    %v1986 = vunpack.c.h.b16 %v1608
    %v1987 = vunpack.c.l.b16 %v1609
    %v1988 = vunpack.c.h.b16 %v1609
    %v1989 = vunpack.c.l.b16 %v1610
    %v1990 = vunpack.c.h.b16 %v1610
    %v1991 = vunpack.c.l.b16 %v1611
    %v1992 = vunpack.c.h.b16 %v1611
    %v1993 = vunpack.c.l.b16 %v1612
    %v1994 = vunpack.c.h.b16 %v1612
    %v1995 = vunpack.c.l.b16 %v1613
    %v1996 = vunpack.c.h.b16 %v1613
    %v1997 = vunpack.c.l.b16 %v1614
    %v1998 = vunpack.c.h.b16 %v1614
    %v1999 = vunpack.c.l.b16 %v1615
    %v2000 = vunpack.c.h.b16 %v1615
    %v2001 = vunpack.c.l.b16 %v1616
    %v2002 = vunpack.c.h.b16 %v1616
    %v2003 = vunpack.c.l.b16 %v1617
    %v2004 = vunpack.c.h.b16 %v1617
    %v2005 = vunpack.c.l.b16 %v1618
    %v2006 = vunpack.c.h.b16 %v1618
    %v2007 = vunpack.c.l.b16 %v1619
    %v2008 = vunpack.c.h.b16 %v1619
    %v2009 = vunpack.c.l.b16 %v1620
    %v2010 = vunpack.c.h.b16 %v1620
    %v2011 = vunpack.c.l.b16 %v1621
    %v2012 = vunpack.c.h.b16 %v1621
    %v2013 = vunpack.c.l.b16 %v1622
    %v2014 = vunpack.c.h.b16 %v1622
    %v2015 = vunpack.c.l.b16 %v1623
    %v2016 = vunpack.c.h.b16 %v1623
    %v2017 = vunpack.c.l.b16 %v1624
    %v2018 = vunpack.c.h.b16 %v1624
    %v2019 = vunpack.c.l.b16 %v1625
    %v2020 = vunpack.c.h.b16 %v1625
    %v2021 = vunpack.c.l.b16 %v1626
    %v2022 = vunpack.c.h.b16 %v1626
    %v2023 = vunpack.c.l.b16 %v1627
    %v2024 = vunpack.c.h.b16 %v1627
    %v2025 = vunpack.c.l.b16 %v1628
    %v2026 = vunpack.c.h.b16 %v1628
    %v2027 = vunpack.c.l.b16 %v1629
    %v2028 = vunpack.c.h.b16 %v1629
    %v2029 = vunpack.c.l.b16 %v1630
    %v2030 = vunpack.c.h.b16 %v1630
    %v2031 = vunpack.c.l.b16 %v1631
    %v2032 = vunpack.c.h.b16 %v1631
    %v2033 = vunpack.c.l.b16 %v1632
    %v2034 = vunpack.c.h.b16 %v1632
    %v2035 = vunpack.c.l.b16 %v1633
    %v2036 = vunpack.c.h.b16 %v1633
    %v2037 = vunpack.c.l.b16 %v1634
    %v2038 = vunpack.c.h.b16 %v1634
    %v2039 = vunpack.c.l.b16 %v1635
    %v2040 = vunpack.c.h.b16 %v1635
    %v2041 = vunpack.c.l.b16 %v1636
    %v2042 = vunpack.c.h.b16 %v1636
    %v2043 = vunpack.c.l.b16 %v1637
    %v2044 = vunpack.c.h.b16 %v1637
    %v2045 = vunpack.c.l.b16 %v1638
    %v2046 = vunpack.c.h.b16 %v1638
    %v2047 = vunpack.c.l.b16 %v1639
    %v2048 = vunpack.c.h.b16 %v1639
    %v2049 = vunpack.c.l.b16 %v1640
    %v2050 = vunpack.c.h.b16 %v1640
    %v2051 = vunpack.c.l.b16 %v1641
    %v2052 = vunpack.c.h.b16 %v1641
    %v2053 = vunpack.c.l.b16 %v1642
    %v2054 = vunpack.c.h.b16 %v1642
    %v2055 = vunpack.c.l.b16 %v1643
    %v2056 = vunpack.c.h.b16 %v1643
    %v2057 = vunpack.c.l.b16 %v1644
    %v2058 = vunpack.c.h.b16 %v1644
    %v2059 = vunpack.c.l.b16 %v1645
    %v2060 = vunpack.c.h.b16 %v1645
    %v2061 = vunpack.c.l.b16 %v1646
    %v2062 = vunpack.c.h.b16 %v1646
    %v2063 = vunpack.c.l.b16 %v1647
    %v2064 = vunpack.c.h.b16 %v1647
    %v2065 = vunpack.c.l.b16 %v1648
    %v2066 = vunpack.c.h.b16 %v1648
    %v2067 = vunpack.c.l.b16 %v1649
    %v2068 = vunpack.c.h.b16 %v1649
    %v2069 = vunpack.c.l.b16 %v1650
    %v2070 = vunpack.c.h.b16 %v1650
    %v2071 = vunpack.c.l.b16 %v1651
    %v2072 = vunpack.c.h.b16 %v1651
    %v2073 = vunpack.c.l.b16 %v1652
    %v2074 = vunpack.c.h.b16 %v1652
    %v2075 = vpack.c.b16 %v1823, %v1819
    %v2076 = vpack.c.b16 %v1824, %v1820
    %v2077 = vpack.c.b16 %v1825, %v1821
    %v2078 = vpack.c.b16 %v1826, %v1822
    %v2079 = vpack.c.b16 %v1831, %v1827
    %v2080 = vpack.c.b16 %v1832, %v1828
    %v2081 = vpack.c.b16 %v1833, %v1829
    %v2082 = vpack.c.b16 %v1834, %v1830
    %v2083 = vpack.c.b16 %v1839, %v1835
    %v2084 = vpack.c.b16 %v1840, %v1836
    %v2085 = vpack.c.b16 %v1841, %v1837
    %v2086 = vpack.c.b16 %v1842, %v1838
    %v2087 = vpack.c.b16 %v1847, %v1843
    %v2088 = vpack.c.b16 %v1848, %v1844
    %v2089 = vpack.c.b16 %v1849, %v1845
    %v2090 = vpack.c.b16 %v1850, %v1846
    %v2091 = vpack.c.b16 %v1855, %v1851
    %v2092 = vpack.c.b16 %v1856, %v1852
    %v2093 = vpack.c.b16 %v1857, %v1853
    %v2094 = vpack.c.b16 %v1858, %v1854
    %v2095 = vpack.c.b16 %v1863, %v1859
    %v2096 = vpack.c.b16 %v1864, %v1860
    %v2097 = vpack.c.b16 %v1865, %v1861
    %v2098 = vpack.c.b16 %v1866, %v1862
    %v2099 = vpack.c.b16 %v1871, %v1867
    %v2100 = vpack.c.b16 %v1872, %v1868
    %v2101 = vpack.c.b16 %v1873, %v1869
    %v2102 = vpack.c.b16 %v1874, %v1870
    %v2103 = vpack.c.b16 %v1879, %v1875
    %v2104 = vpack.c.b16 %v1880, %v1876
    %v2105 = vpack.c.b16 %v1881, %v1877
    %v2106 = vpack.c.b16 %v1882, %v1878
    %v2107 = vpack.c.b16 %v1887, %v1883
    %v2108 = vpack.c.b16 %v1888, %v1884
    %v2109 = vpack.c.b16 %v1889, %v1885
    %v2110 = vpack.c.b16 %v1890, %v1886
    %v2111 = vpack.c.b16 %v1895, %v1891
    %v2112 = vpack.c.b16 %v1896, %v1892
    %v2113 = vpack.c.b16 %v1897, %v1893
    %v2114 = vpack.c.b16 %v1898, %v1894
    %v2115 = vpack.c.b16 %v1903, %v1899
    %v2116 = vpack.c.b16 %v1904, %v1900
    %v2117 = vpack.c.b16 %v1905, %v1901
    %v2118 = vpack.c.b16 %v1906, %v1902
    %v2119 = vpack.c.b16 %v1911, %v1907
    %v2120 = vpack.c.b16 %v1912, %v1908
    %v2121 = vpack.c.b16 %v1913, %v1909
    %v2122 = vpack.c.b16 %v1914, %v1910
    %v2123 = vpack.c.b16 %v1919, %v1915
    %v2124 = vpack.c.b16 %v1920, %v1916
    %v2125 = vpack.c.b16 %v1921, %v1917
    %v2126 = vpack.c.b16 %v1922, %v1918
    %v2127 = vpack.c.b16 %v1927, %v1923
    %v2128 = vpack.c.b16 %v1928, %v1924
    %v2129 = vpack.c.b16 %v1929, %v1925
    %v2130 = vpack.c.b16 %v1930, %v1926
    %v2131 = vpack.c.b16 %v1935, %v1931
    %v2132 = vpack.c.b16 %v1936, %v1932
    %v2133 = vpack.c.b16 %v1937, %v1933
    %v2134 = vpack.c.b16 %v1938, %v1934
    %v2135 = vpack.c.b16 %v1943, %v1939
    %v2136 = vpack.c.b16 %v1944, %v1940
    %v2137 = vpack.c.b16 %v1945, %v1941
    %v2138 = vpack.c.b16 %v1946, %v1942
    %v2139 = vpack.c.b16 %v1951, %v1947
    %v2140 = vpack.c.b16 %v1952, %v1948
    %v2141 = vpack.c.b16 %v1953, %v1949
    %v2142 = vpack.c.b16 %v1954, %v1950
    %v2143 = vpack.c.b16 %v1959, %v1955
    %v2144 = vpack.c.b16 %v1960, %v1956
    %v2145 = vpack.c.b16 %v1961, %v1957
    %v2146 = vpack.c.b16 %v1962, %v1958
    %v2147 = vpack.c.b16 %v1967, %v1963
    %v2148 = vpack.c.b16 %v1968, %v1964
    %v2149 = vpack.c.b16 %v1969, %v1965
    %v2150 = vpack.c.b16 %v1970, %v1966
    %v2151 = vpack.c.b16 %v1975, %v1971
    %v2152 = vpack.c.b16 %v1976, %v1972
    %v2153 = vpack.c.b16 %v1977, %v1973
    %v2154 = vpack.c.b16 %v1978, %v1974
    %v2155 = vpack.c.b16 %v1983, %v1979
    %v2156 = vpack.c.b16 %v1984, %v1980
    %v2157 = vpack.c.b16 %v1985, %v1981
    %v2158 = vpack.c.b16 %v1986, %v1982
    %v2159 = vpack.c.b16 %v1991, %v1987
    %v2160 = vpack.c.b16 %v1992, %v1988
    %v2161 = vpack.c.b16 %v1993, %v1989
    %v2162 = vpack.c.b16 %v1994, %v1990
    %v2163 = vpack.c.b16 %v1999, %v1995
    %v2164 = vpack.c.b16 %v2000, %v1996
    %v2165 = vpack.c.b16 %v2001, %v1997
    %v2166 = vpack.c.b16 %v2002, %v1998
    %v2167 = vpack.c.b16 %v2007, %v2003
    %v2168 = vpack.c.b16 %v2008, %v2004
    %v2169 = vpack.c.b16 %v2009, %v2005
    %v2170 = vpack.c.b16 %v2010, %v2006
    %v2171 = vpack.c.b16 %v2015, %v2011
    %v2172 = vpack.c.b16 %v2016, %v2012
    %v2173 = vpack.c.b16 %v2017, %v2013
    %v2174 = vpack.c.b16 %v2018, %v2014
    %v2175 = vpack.c.b16 %v2023, %v2019
    %v2176 = vpack.c.b16 %v2024, %v2020
    %v2177 = vpack.c.b16 %v2025, %v2021
    %v2178 = vpack.c.b16 %v2026, %v2022
    %v2179 = vpack.c.b16 %v2031, %v2027
    %v2180 = vpack.c.b16 %v2032, %v2028
    %v2181 = vpack.c.b16 %v2033, %v2029
    %v2182 = vpack.c.b16 %v2034, %v2030
    %v2183 = vpack.c.b16 %v2039, %v2035
    %v2184 = vpack.c.b16 %v2040, %v2036
    %v2185 = vpack.c.b16 %v2041, %v2037
    %v2186 = vpack.c.b16 %v2042, %v2038
    %v2187 = vpack.c.b16 %v2047, %v2043
    %v2188 = vpack.c.b16 %v2048, %v2044
    %v2189 = vpack.c.b16 %v2049, %v2045
    %v2190 = vpack.c.b16 %v2050, %v2046
    %v2191 = vpack.c.b16 %v2055, %v2051
    %v2192 = vpack.c.b16 %v2056, %v2052
    %v2193 = vpack.c.b16 %v2057, %v2053
    %v2194 = vpack.c.b16 %v2058, %v2054
    %v2195 = vpack.c.b16 %v2063, %v2059
    %v2196 = vpack.c.b16 %v2064, %v2060
    %v2197 = vpack.c.b16 %v2065, %v2061
    %v2198 = vpack.c.b16 %v2066, %v2062
    %v2199 = vpack.c.b16 %v2071, %v2067
    %v2200 = vpack.c.b16 %v2072, %v2068
    %v2201 = vpack.c.b16 %v2073, %v2069
    %v2202 = vpack.c.b16 %v2074, %v2070
    %2331 = vmatprep.subr.bf16.mxu0 %v2076
    %2332 = vmatpush1.bf16.msra.mxu0 %v2075
    %2333 = vmatprep.subr.bf16.mxu0 %v2080
    %2334 = vmatpush1.bf16.msra.mxu0 %v2079
    %2335 = vmatprep.subr.bf16.mxu0 %v2084
    %2336 = vmatpush1.bf16.msra.mxu0 %v2083
    %2337 = vmatprep.subr.bf16.mxu0 %v2088
    %2338 = vmatpush1.bf16.msra.mxu0 %v2087
    %2339 = vmatprep.subr.bf16.mxu0 %v2092
    %2340 = vmatpush1.bf16.msra.mxu0 %v2091
    %2341 = vmatprep.subr.bf16.mxu0 %v2096
    %2342 = vmatpush1.bf16.msra.mxu0 %v2095
    %2343 = vmatprep.subr.bf16.mxu0 %v2100
    %2344 = vmatpush1.bf16.msra.mxu0 %v2099
    %2345 = vmatprep.subr.bf16.mxu0 %v2104
    %2346 = vmatpush1.bf16.msra.mxu0 %v2103
    %2347 = vmatprep.subr.bf16.mxu0 %v2108
    %2348 = vmatpush1.bf16.msra.mxu0 %v2107
    %2349 = vmatprep.subr.bf16.mxu0 %v2112
    %2350 = vmatpush1.bf16.msra.mxu0 %v2111
    %2351 = vmatprep.subr.bf16.mxu0 %v2116
    %2352 = vmatpush1.bf16.msra.mxu0 %v2115
    %2353 = vmatprep.subr.bf16.mxu0 %v2120
    %2354 = vmatpush1.bf16.msra.mxu0 %v2119
    %2355 = vmatprep.subr.bf16.mxu0 %v2124
    %2356 = vmatpush1.bf16.msra.mxu0 %v2123
    %2357 = vmatprep.subr.bf16.mxu0 %v2128
    %2358 = vmatpush1.bf16.msra.mxu0 %v2127
    %2359 = vmatprep.subr.bf16.mxu0 %v2132
    %2360 = vmatpush1.bf16.msra.mxu0 %v2131
    %2361 = vmatprep.subr.bf16.mxu0 %v2136
    %2362 = vmatpush1.bf16.msra.mxu0 %v2135
    %2363 = vmatprep.mubr.bf16.mxu0 %v1510
    %2364 = vmatmul.mubr.bf16.gmra.mrb[0].mxu0 %v1509
    %v2365 = vpop.f32.mrb[0].mxu0
    %v2366 = vadd.f32 %v1678, %v2365
    %v2367 = vpop.f32.mrb[0].mxu0
    %v2368 = vadd.f32 %v1682, %v2367
    %v2369 = vpop.f32.mrb[0].mxu0
    %v2370 = vadd.f32 %v1678, %v2369
    %v2371 = vpop.f32.mrb[0].mxu0
    %v2372 = vadd.f32 %v1682, %v2371
    %2373 = vmatprep.mubr.bf16.mxu0 %v1514
    %2374 = vmatmul.mubr.bf16.gmra.mrb[0].mxu0 %v1513
    %v2375 = vpop.f32.mrb[0].mxu0
    %v2376 = vadd.f32 %v1678, %v2375
    %v2377 = vpop.f32.mrb[0].mxu0
    %v2378 = vadd.f32 %v1682, %v2377
    %v2379 = vpop.f32.mrb[0].mxu0
    %v2380 = vadd.f32 %v1678, %v2379
    %v2381 = vpop.f32.mrb[0].mxu0
    %v2382 = vadd.f32 %v1682, %v2381
    %2383 = vmatprep.mubr.bf16.mxu0 %v1518
    %2384 = vmatmul.mubr.bf16.gmra.mrb[0].mxu0 %v1517
    %v2385 = vpop.f32.mrb[0].mxu0
    %v2386 = vadd.f32 %v1678, %v2385
    %v2387 = vpop.f32.mrb[0].mxu0
    %v2388 = vadd.f32 %v1682, %v2387
    %v2389 = vpop.f32.mrb[0].mxu0
    %v2390 = vadd.f32 %v1678, %v2389
    %v2391 = vpop.f32.mrb[0].mxu0
    %v2392 = vadd.f32 %v1682, %v2391
    %2393 = vmatprep.mubr.bf16.mxu0 %v1522
    %2394 = vmatmul.mubr.bf16.gmra.mrb[0].mxu0 %v1521
    %v2395 = vpop.f32.mrb[0].mxu0
    %v2396 = vadd.f32 %v1678, %v2395
    %v2397 = vpop.f32.mrb[0].mxu0
    %v2398 = vadd.f32 %v1682, %v2397
    %v2399 = vpop.f32.mrb[0].mxu0
    %v2400 = vadd.f32 %v1678, %v2399
    %v2401 = vpop.f32.mrb[0].mxu0
    %v2402 = vadd.f32 %v1682, %v2401
    %2403 = vdwg.mxu0
    %2404 = vmatprep.subr.bf16.mxu0 %v2140
    %2405 = vmatpush1.bf16.msra.mxu0 %v2139
    %2406 = vmatprep.subr.bf16.mxu0 %v2144
    %2407 = vmatpush1.bf16.msra.mxu0 %v2143
    %2408 = vmatprep.subr.bf16.mxu0 %v2148
    %2409 = vmatpush1.bf16.msra.mxu0 %v2147
    %2410 = vmatprep.subr.bf16.mxu0 %v2152
    %2411 = vmatpush1.bf16.msra.mxu0 %v2151
    %2412 = vmatprep.subr.bf16.mxu0 %v2156
    %2413 = vmatpush1.bf16.msra.mxu0 %v2155
    %2414 = vmatprep.subr.bf16.mxu0 %v2160
    %2415 = vmatpush1.bf16.msra.mxu0 %v2159
    %2416 = vmatprep.subr.bf16.mxu0 %v2164
    %2417 = vmatpush1.bf16.msra.mxu0 %v2163
    %2418 = vmatprep.subr.bf16.mxu0 %v2168
    %2419 = vmatpush1.bf16.msra.mxu0 %v2167
    %2420 = vmatprep.subr.bf16.mxu0 %v2172
    %2421 = vmatpush1.bf16.msra.mxu0 %v2171
    %2422 = vmatprep.subr.bf16.mxu0 %v2176
    %2423 = vmatpush1.bf16.msra.mxu0 %v2175
    %2424 = vmatprep.subr.bf16.mxu0 %v2180
    %2425 = vmatpush1.bf16.msra.mxu0 %v2179
    %2426 = vmatprep.subr.bf16.mxu0 %v2184
    %2427 = vmatpush1.bf16.msra.mxu0 %v2183
    %2428 = vmatprep.subr.bf16.mxu0 %v2188
    %2429 = vmatpush1.bf16.msra.mxu0 %v2187
    %2430 = vmatprep.subr.bf16.mxu0 %v2192
    %2431 = vmatpush1.bf16.msra.mxu0 %v2191
    %2432 = vmatprep.subr.bf16.mxu0 %v2196
    %2433 = vmatpush1.bf16.msra.mxu0 %v2195
    %2434 = vmatprep.subr.bf16.mxu0 %v2200
    %2435 = vmatpush1.bf16.msra.mxu0 %v2199
    %2436 = vmatprep.mubr.bf16.mxu0 %v1512
    %2437 = vmatmul.mubr.bf16.gmra.mrb[0].mxu0 %v1511
    %v2438 = vpop.f32.mrb[0].mxu0
    %v2439 = vadd.f32 %v2366, %v2438
    %v2440 = vpop.f32.mrb[0].mxu0
    %v2441 = vadd.f32 %v2368, %v2440
    %v2442 = vpop.f32.mrb[0].mxu0
    %v2443 = vadd.f32 %v2370, %v2442
    %v2444 = vpop.f32.mrb[0].mxu0
    %v2445 = vadd.f32 %v2372, %v2444
    %2446 = vmatprep.mubr.bf16.mxu0 %v1516
    %2447 = vmatmul.mubr.bf16.gmra.mrb[0].mxu0 %v1515
    %v2448 = vpop.f32.mrb[0].mxu0
    %v2449 = vadd.f32 %v2376, %v2448
    %v2450 = vpop.f32.mrb[0].mxu0
    %v2451 = vadd.f32 %v2378, %v2450
    %v2452 = vpop.f32.mrb[0].mxu0
    %v2453 = vadd.f32 %v2380, %v2452
    %v2454 = vpop.f32.mrb[0].mxu0
    %v2455 = vadd.f32 %v2382, %v2454
    %2456 = vmatprep.mubr.bf16.mxu0 %v1520
    %2457 = vmatmul.mubr.bf16.gmra.mrb[0].mxu0 %v1519
    %v2458 = vpop.f32.mrb[0].mxu0
    %v2459 = vadd.f32 %v2386, %v2458
    %v2460 = vpop.f32.mrb[0].mxu0
    %v2461 = vadd.f32 %v2388, %v2460
    %v2462 = vpop.f32.mrb[0].mxu0
    %v2463 = vadd.f32 %v2390, %v2462
    %v2464 = vpop.f32.mrb[0].mxu0
    %v2465 = vadd.f32 %v2392, %v2464
    %2466 = vmatprep.mubr.bf16.mxu0 %v1524
    %2467 = vmatmul.mubr.bf16.gmra.mrb[0].mxu0 %v1523
    %v2468 = vpop.f32.mrb[0].mxu0
    %v2469 = vadd.f32 %v2396, %v2468
    %v2470 = vpop.f32.mrb[0].mxu0
    %v2471 = vadd.f32 %v2398, %v2470
    %v2472 = vpop.f32.mrb[0].mxu0
    %v2473 = vadd.f32 %v2400, %v2472
    %v2474 = vpop.f32.mrb[0].mxu0
    %v2475 = vadd.f32 %v2402, %v2474
    %2476 = vdwg.mxu0
    %2477 = vmatprep.subr.bf16.mxu0 %v2078
    %2478 = vmatpush1.bf16.msra.mxu0 %v2077
    %2479 = vmatprep.subr.bf16.mxu0 %v2082
    %2480 = vmatpush1.bf16.msra.mxu0 %v2081
    %2481 = vmatprep.subr.bf16.mxu0 %v2086
    %2482 = vmatpush1.bf16.msra.mxu0 %v2085
    %2483 = vmatprep.subr.bf16.mxu0 %v2090
    %2484 = vmatpush1.bf16.msra.mxu0 %v2089
    %2485 = vmatprep.subr.bf16.mxu0 %v2094
    %2486 = vmatpush1.bf16.msra.mxu0 %v2093
    %2487 = vmatprep.subr.bf16.mxu0 %v2098
    %2488 = vmatpush1.bf16.msra.mxu0 %v2097
    %2489 = vmatprep.subr.bf16.mxu0 %v2102
    %2490 = vmatpush1.bf16.msra.mxu0 %v2101
    %2491 = vmatprep.subr.bf16.mxu0 %v2106
    %2492 = vmatpush1.bf16.msra.mxu0 %v2105
    %2493 = vmatprep.subr.bf16.mxu0 %v2110
    %2494 = vmatpush1.bf16.msra.mxu0 %v2109
    %2495 = vmatprep.subr.bf16.mxu0 %v2114
    %2496 = vmatpush1.bf16.msra.mxu0 %v2113
    %2497 = vmatprep.subr.bf16.mxu0 %v2118
    %2498 = vmatpush1.bf16.msra.mxu0 %v2117
    %2499 = vmatprep.subr.bf16.mxu0 %v2122
    %2500 = vmatpush1.bf16.msra.mxu0 %v2121
    %2501 = vmatprep.subr.bf16.mxu0 %v2126
    %2502 = vmatpush1.bf16.msra.mxu0 %v2125
    %2503 = vmatprep.subr.bf16.mxu0 %v2130
    %2504 = vmatpush1.bf16.msra.mxu0 %v2129
    %2505 = vmatprep.subr.bf16.mxu0 %v2134
    %2506 = vmatpush1.bf16.msra.mxu0 %v2133
    %2507 = vmatprep.subr.bf16.mxu0 %v2138
    %2508 = vmatpush1.bf16.msra.mxu0 %v2137
    %2509 = vmatprep.mubr.bf16.mxu0 %v1510
    %2510 = vmatmul.mubr.bf16.gmra.mrb[0].mxu0 %v1509
    %v2511 = vpop.f32.mrb[0].mxu0
    %v2512 = vadd.f32 %v1686, %v2511
    %v2513 = vpop.f32.mrb[0].mxu0
    %v2514 = vadd.f32 %v1690, %v2513
    %v2515 = vpop.f32.mrb[0].mxu0
    %v2516 = vadd.f32 %v1686, %v2515
    %v2517 = vpop.f32.mrb[0].mxu0
    %v2518 = vadd.f32 %v1690, %v2517
    %2519 = vmatprep.mubr.bf16.mxu0 %v1514
    %2520 = vmatmul.mubr.bf16.gmra.mrb[0].mxu0 %v1513
    %v2521 = vpop.f32.mrb[0].mxu0
    %v2522 = vadd.f32 %v1686, %v2521
    %v2523 = vpop.f32.mrb[0].mxu0
    %v2524 = vadd.f32 %v1690, %v2523
    %v2525 = vpop.f32.mrb[0].mxu0
    %v2526 = vadd.f32 %v1686, %v2525
    %v2527 = vpop.f32.mrb[0].mxu0
    %v2528 = vadd.f32 %v1690, %v2527
    %2529 = vmatprep.mubr.bf16.mxu0 %v1518
    %2530 = vmatmul.mubr.bf16.gmra.mrb[0].mxu0 %v1517
    %v2531 = vpop.f32.mrb[0].mxu0
    %v2532 = vadd.f32 %v1686, %v2531
    %v2533 = vpop.f32.mrb[0].mxu0
    %v2534 = vadd.f32 %v1690, %v2533
    %v2535 = vpop.f32.mrb[0].mxu0
    %v2536 = vadd.f32 %v1686, %v2535
    %v2537 = vpop.f32.mrb[0].mxu0
    %v2538 = vadd.f32 %v1690, %v2537
    %2539 = vmatprep.mubr.bf16.mxu0 %v1522
    %2540 = vmatmul.mubr.bf16.gmra.mrb[0].mxu0 %v1521
    %v2541 = vpop.f32.mrb[0].mxu0
    %v2542 = vadd.f32 %v1686, %v2541
    %v2543 = vpop.f32.mrb[0].mxu0
    %v2544 = vadd.f32 %v1690, %v2543
    %v2545 = vpop.f32.mrb[0].mxu0
    %v2546 = vadd.f32 %v1686, %v2545
    %v2547 = vpop.f32.mrb[0].mxu0
    %v2548 = vadd.f32 %v1690, %v2547
    %2549 = vdwg.mxu0
    %2550 = vmatprep.subr.bf16.mxu0 %v2142
    %2551 = vmatpush1.bf16.msra.mxu0 %v2141
    %2552 = vmatprep.subr.bf16.mxu0 %v2146
    %2553 = vmatpush1.bf16.msra.mxu0 %v2145
    %2554 = vmatprep.subr.bf16.mxu0 %v2150
    %2555 = vmatpush1.bf16.msra.mxu0 %v2149
    %2556 = vmatprep.subr.bf16.mxu0 %v2154
    %2557 = vmatpush1.bf16.msra.mxu0 %v2153
    %2558 = vmatprep.subr.bf16.mxu0 %v2158
    %2559 = vmatpush1.bf16.msra.mxu0 %v2157
    %2560 = vmatprep.subr.bf16.mxu0 %v2162
    %2561 = vmatpush1.bf16.msra.mxu0 %v2161
    %2562 = vmatprep.subr.bf16.mxu0 %v2166
    %2563 = vmatpush1.bf16.msra.mxu0 %v2165
    %2564 = vmatprep.subr.bf16.mxu0 %v2170
    %2565 = vmatpush1.bf16.msra.mxu0 %v2169
    %2566 = vmatprep.subr.bf16.mxu0 %v2174
    %2567 = vmatpush1.bf16.msra.mxu0 %v2173
    %2568 = vmatprep.subr.bf16.mxu0 %v2178
    %2569 = vmatpush1.bf16.msra.mxu0 %v2177
    %2570 = vmatprep.subr.bf16.mxu0 %v2182
    %2571 = vmatpush1.bf16.msra.mxu0 %v2181
    %2572 = vmatprep.subr.bf16.mxu0 %v2186
    %2573 = vmatpush1.bf16.msra.mxu0 %v2185
    %2574 = vmatprep.subr.bf16.mxu0 %v2190
    %2575 = vmatpush1.bf16.msra.mxu0 %v2189
    %2576 = vmatprep.subr.bf16.mxu0 %v2194
    %2577 = vmatpush1.bf16.msra.mxu0 %v2193
    %2578 = vmatprep.subr.bf16.mxu0 %v2198
    %2579 = vmatpush1.bf16.msra.mxu0 %v2197
    %2580 = vmatprep.subr.bf16.mxu0 %v2202
    %2581 = vmatpush1.bf16.msra.mxu0 %v2201
    %2582 = vmatprep.mubr.bf16.mxu0 %v1512
    %2583 = vmatmul.mubr.bf16.gmra.mrb[0].mxu0 %v1511
    %v2584 = vpop.f32.mrb[0].mxu0
    %v2585 = vadd.f32 %v2512, %v2584
    %v2586 = vpop.f32.mrb[0].mxu0
    %v2587 = vadd.f32 %v2514, %v2586
    %v2588 = vpop.f32.mrb[0].mxu0
    %v2589 = vadd.f32 %v2516, %v2588
    %v2590 = vpop.f32.mrb[0].mxu0
    %v2591 = vadd.f32 %v2518, %v2590
    %2592 = vmatprep.mubr.bf16.mxu0 %v1516
    %2593 = vmatmul.mubr.bf16.gmra.mrb[0].mxu0 %v1515
    %v2594 = vpop.f32.mrb[0].mxu0
    %v2595 = vadd.f32 %v2522, %v2594
    %v2596 = vpop.f32.mrb[0].mxu0
    %v2597 = vadd.f32 %v2524, %v2596
    %v2598 = vpop.f32.mrb[0].mxu0
    %v2599 = vadd.f32 %v2526, %v2598
    %v2600 = vpop.f32.mrb[0].mxu0
    %v2601 = vadd.f32 %v2528, %v2600
    %2602 = vmatprep.mubr.bf16.mxu0 %v1520
    %2603 = vmatmul.mubr.bf16.gmra.mrb[0].mxu0 %v1519
    %v2604 = vpop.f32.mrb[0].mxu0
    %v2605 = vadd.f32 %v2532, %v2604
    %v2606 = vpop.f32.mrb[0].mxu0
    %v2607 = vadd.f32 %v2534, %v2606
    %v2608 = vpop.f32.mrb[0].mxu0
    %v2609 = vadd.f32 %v2536, %v2608
    %v2610 = vpop.f32.mrb[0].mxu0
    %v2611 = vadd.f32 %v2538, %v2610
    %2612 = vmatprep.mubr.bf16.mxu0 %v1524
    %2613 = vmatmul.mubr.bf16.gmra.mrb[0].mxu0 %v1523
    %v2614 = vpop.f32.mrb[0].mxu0
    %v2615 = vadd.f32 %v2542, %v2614
    %v2616 = vpop.f32.mrb[0].mxu0
    %v2617 = vadd.f32 %v2544, %v2616
    %v2618 = vpop.f32.mrb[0].mxu0
    %v2619 = vadd.f32 %v2546, %v2618
    %v2620 = vpop.f32.mrb[0].mxu0
    %v2621 = vadd.f32 %v2548, %v2620
    %2622 = vdwg.mxu0
    %v2623 = vadd.f32 %v2439, %v2441
    %v2624 = vadd.f32 %v2623, %v2585
    %v2625 = vadd.f32 %v2624, %v2587
    %2626 = vadd.xlane.f32.xlu0 %v2625
    %v2627 = vpop.xlane.xlu0 %2626
    %v2628 = vadd.f32 %v2443, %v2445
    %v2629 = vadd.f32 %v2628, %v2589
    %v2630 = vadd.f32 %v2629, %v2591
    %2631 = vadd.xlane.f32.xlu0 %v2630
    %v2632 = vpop.xlane.xlu0 %2631
    %v2633 = vadd.f32 %v2449, %v2451
    %v2634 = vadd.f32 %v2633, %v2595
    %v2635 = vadd.f32 %v2634, %v2597
    %2636 = vadd.xlane.f32.xlu0 %v2635
    %v2637 = vpop.xlane.xlu0 %2636
    %v2638 = vadd.f32 %v2453, %v2455
    %v2639 = vadd.f32 %v2638, %v2599
    %v2640 = vadd.f32 %v2639, %v2601
    %2641 = vadd.xlane.f32.xlu0 %v2640
    %v2642 = vpop.xlane.xlu0 %2641
    %v2643 = vadd.f32 %v2459, %v2461
    %v2644 = vadd.f32 %v2643, %v2605
    %v2645 = vadd.f32 %v2644, %v2607
    %2646 = vadd.xlane.f32.xlu0 %v2645
    %v2647 = vpop.xlane.xlu0 %2646
    %v2648 = vadd.f32 %v2463, %v2465
    %v2649 = vadd.f32 %v2648, %v2609
    %v2650 = vadd.f32 %v2649, %v2611
    %2651 = vadd.xlane.f32.xlu0 %v2650
    %v2652 = vpop.xlane.xlu0 %2651
    %v2653 = vadd.f32 %v2469, %v2471
    %v2654 = vadd.f32 %v2653, %v2615
    %v2655 = vadd.f32 %v2654, %v2617
    %2656 = vadd.xlane.f32.xlu0 %v2655
    %v2657 = vpop.xlane.xlu0 %2656
    %v2658 = vadd.f32 %v2473, %v2475
    %v2659 = vadd.f32 %v2658, %v2619
    %v2660 = vadd.f32 %v2659, %v2621
    %2661 = vadd.xlane.f32.xlu0 %v2660
    %v2662 = vpop.xlane.xlu0 %2661
    %v2663 = vmul.f32 %v2627, %v1170
    %v2664 = vmul.f32 %v2632, %v1170
    %v2665 = vmul.f32 %v2637, %v1170
    %v2666 = vmul.f32 %v2642, %v1170
    %v2667 = vmul.f32 %v2647, %v1170
    %v2668 = vmul.f32 %v2652, %v1170
    %v2669 = vmul.f32 %v2657, %v1170
    %v2670 = vmul.f32 %v2662, %v1170
    %v2671 = vsub.f32 %v2439, %v2663
    %v2672 = vsub.f32 %v2441, %v2663
    %v2673 = vsub.f32 %v2585, %v2663
    %v2674 = vsub.f32 %v2587, %v2663
    %v2675 = vsub.f32 %v2443, %v2664
    %v2676 = vsub.f32 %v2445, %v2664
    %v2677 = vsub.f32 %v2589, %v2664
    %v2678 = vsub.f32 %v2591, %v2664
    %v2679 = vsub.f32 %v2449, %v2665
    %v2680 = vsub.f32 %v2451, %v2665
    %v2681 = vsub.f32 %v2595, %v2665
    %v2682 = vsub.f32 %v2597, %v2665
    %v2683 = vsub.f32 %v2453, %v2666
    %v2684 = vsub.f32 %v2455, %v2666
    %v2685 = vsub.f32 %v2599, %v2666
    %v2686 = vsub.f32 %v2601, %v2666
    %v2687 = vsub.f32 %v2459, %v2667
    %v2688 = vsub.f32 %v2461, %v2667
    %v2689 = vsub.f32 %v2605, %v2667
    %v2690 = vsub.f32 %v2607, %v2667
    %v2691 = vsub.f32 %v2463, %v2668
    %v2692 = vsub.f32 %v2465, %v2668
    %v2693 = vsub.f32 %v2609, %v2668
    %v2694 = vsub.f32 %v2611, %v2668
    %v2695 = vsub.f32 %v2469, %v2669
    %v2696 = vsub.f32 %v2471, %v2669
    %v2697 = vsub.f32 %v2615, %v2669
    %v2698 = vsub.f32 %v2617, %v2669
    %v2699 = vsub.f32 %v2473, %v2670
    %v2700 = vsub.f32 %v2475, %v2670
    %v2701 = vsub.f32 %v2619, %v2670
    %v2702 = vsub.f32 %v2621, %v2670
    %v2703 = vmul.f32 %v2671, %v2671
    %v2704 = vmul.f32 %v2672, %v2672
    %v2705 = vmul.f32 %v2673, %v2673
    %v2706 = vmul.f32 %v2674, %v2674
    %v2707 = vmul.f32 %v2675, %v2675
    %v2708 = vmul.f32 %v2676, %v2676
    %v2709 = vmul.f32 %v2677, %v2677
    %v2710 = vmul.f32 %v2678, %v2678
    %v2711 = vmul.f32 %v2679, %v2679
    %v2712 = vmul.f32 %v2680, %v2680
    %v2713 = vmul.f32 %v2681, %v2681
    %v2714 = vmul.f32 %v2682, %v2682
    %v2715 = vmul.f32 %v2683, %v2683
    %v2716 = vmul.f32 %v2684, %v2684
    %v2717 = vmul.f32 %v2685, %v2685
    %v2718 = vmul.f32 %v2686, %v2686
    %v2719 = vmul.f32 %v2687, %v2687
    %v2720 = vmul.f32 %v2688, %v2688
    %v2721 = vmul.f32 %v2689, %v2689
    %v2722 = vmul.f32 %v2690, %v2690
    %v2723 = vmul.f32 %v2691, %v2691
    %v2724 = vmul.f32 %v2692, %v2692
    %v2725 = vmul.f32 %v2693, %v2693
    %v2726 = vmul.f32 %v2694, %v2694
    %v2727 = vmul.f32 %v2695, %v2695
    %v2728 = vmul.f32 %v2696, %v2696
    %v2729 = vmul.f32 %v2697, %v2697
    %v2730 = vmul.f32 %v2698, %v2698
    %v2731 = vmul.f32 %v2699, %v2699
    %v2732 = vmul.f32 %v2700, %v2700
    %v2733 = vmul.f32 %v2701, %v2701
    %v2734 = vmul.f32 %v2702, %v2702
    %v2735 = vadd.f32 %v2703, %v2704
    %v2736 = vadd.f32 %v2735, %v2705
    %v2737 = vadd.f32 %v2736, %v2706
    %2738 = vadd.xlane.f32.xlu0 %v2737
    %v2739 = vpop.xlane.xlu0 %2738
    %v2740 = vadd.f32 %v2707, %v2708
    %v2741 = vadd.f32 %v2740, %v2709
    %v2742 = vadd.f32 %v2741, %v2710
    %2743 = vadd.xlane.f32.xlu0 %v2742
    %v2744 = vpop.xlane.xlu0 %2743
    %v2745 = vadd.f32 %v2711, %v2712
    %v2746 = vadd.f32 %v2745, %v2713
    %v2747 = vadd.f32 %v2746, %v2714
    %2748 = vadd.xlane.f32.xlu0 %v2747
    %v2749 = vpop.xlane.xlu0 %2748
    %v2750 = vadd.f32 %v2715, %v2716
    %v2751 = vadd.f32 %v2750, %v2717
    %v2752 = vadd.f32 %v2751, %v2718
    %2753 = vadd.xlane.f32.xlu0 %v2752
    %v2754 = vpop.xlane.xlu0 %2753
    %v2755 = vadd.f32 %v2719, %v2720
    %v2756 = vadd.f32 %v2755, %v2721
    %v2757 = vadd.f32 %v2756, %v2722
    %2758 = vadd.xlane.f32.xlu0 %v2757
    %v2759 = vpop.xlane.xlu0 %2758
    %v2760 = vadd.f32 %v2723, %v2724
    %v2761 = vadd.f32 %v2760, %v2725
    %v2762 = vadd.f32 %v2761, %v2726
    %2763 = vadd.xlane.f32.xlu0 %v2762
    %v2764 = vpop.xlane.xlu0 %2763
    %v2765 = vadd.f32 %v2727, %v2728
    %v2766 = vadd.f32 %v2765, %v2729
    %v2767 = vadd.f32 %v2766, %v2730
    %2768 = vadd.xlane.f32.xlu0 %v2767
    %v2769 = vpop.xlane.xlu0 %2768
    %v2770 = vadd.f32 %v2731, %v2732
    %v2771 = vadd.f32 %v2770, %v2733
    %v2772 = vadd.f32 %v2771, %v2734
    %2773 = vadd.xlane.f32.xlu0 %v2772
    %v2774 = vpop.xlane.xlu0 %2773
    %v2775 = vmul.f32 %v2739, %v1170
    %v2776 = vmul.f32 %v2744, %v1170
    %v2777 = vmul.f32 %v2749, %v1170
    %v2778 = vmul.f32 %v2754, %v1170
    %v2779 = vmul.f32 %v2759, %v1170
    %v2780 = vmul.f32 %v2764, %v1170
    %v2781 = vmul.f32 %v2769, %v1170
    %v2782 = vmul.f32 %v2774, %v1170
    %v2783 = vadd.f32 %v2775, 1e-05
    %v2784 = vadd.f32 %v2776, 1e-05
    %v2785 = vadd.f32 %v2777, 1e-05
    %v2786 = vadd.f32 %v2778, 1e-05
    %v2787 = vadd.f32 %v2779, 1e-05
    %v2788 = vadd.f32 %v2780, 1e-05
    %v2789 = vadd.f32 %v2781, 1e-05
    %v2790 = vadd.f32 %v2782, 1e-05
    %v2791 = vrsqrt.pop %v2783
    %v2792 = vrsqrt.pop %v2784
    %v2793 = vrsqrt.pop %v2785
    %v2794 = vrsqrt.pop %v2786
    %v2795 = vrsqrt.pop %v2787
    %v2796 = vrsqrt.pop %v2788
    %v2797 = vrsqrt.pop %v2789
    %v2798 = vrsqrt.pop %v2790
    %v2799 = vmul.f32 %v2671, %v2791
    %v2800 = vmul.f32 %v2672, %v2791
    %v2801 = vmul.f32 %v2673, %v2791
    %v2802 = vmul.f32 %v2674, %v2791
    %v2803 = vmul.f32 %v2675, %v2792
    %v2804 = vmul.f32 %v2676, %v2792
    %v2805 = vmul.f32 %v2677, %v2792
    %v2806 = vmul.f32 %v2678, %v2792
    %v2807 = vmul.f32 %v2679, %v2793
    %v2808 = vmul.f32 %v2680, %v2793
    %v2809 = vmul.f32 %v2681, %v2793
    %v2810 = vmul.f32 %v2682, %v2793
    %v2811 = vmul.f32 %v2683, %v2794
    %v2812 = vmul.f32 %v2684, %v2794
    %v2813 = vmul.f32 %v2685, %v2794
    %v2814 = vmul.f32 %v2686, %v2794
    %v2815 = vmul.f32 %v2687, %v2795
    %v2816 = vmul.f32 %v2688, %v2795
    %v2817 = vmul.f32 %v2689, %v2795
    %v2818 = vmul.f32 %v2690, %v2795
    %v2819 = vmul.f32 %v2691, %v2796
    %v2820 = vmul.f32 %v2692, %v2796
    %v2821 = vmul.f32 %v2693, %v2796
    %v2822 = vmul.f32 %v2694, %v2796
    %v2823 = vmul.f32 %v2695, %v2797
    %v2824 = vmul.f32 %v2696, %v2797
    %v2825 = vmul.f32 %v2697, %v2797
    %v2826 = vmul.f32 %v2698, %v2797
    %v2827 = vmul.f32 %v2699, %v2798
    %v2828 = vmul.f32 %v2700, %v2798
    %v2829 = vmul.f32 %v2701, %v2798
    %v2830 = vmul.f32 %v2702, %v2798
    %v2831 = vlaneseq
    %v2832 = vshrl.u32 %v2831, 7
    %v2833 = vsub.s32 1, %v2832
    %v2834 = vrot.slane %v1507, %v2833
    %v2835 = vlaneseq
    %v2836 = vshrl.u32 %v2835, 7
    %v2837 = vsub.s32 5, %v2836
    %v2838 = vrot.slane %v1507, %v2837
    %v2839 = vlaneseq
    %v2840 = vshrl.u32 %v2839, 7
    %v2841 = vsub.s32 1, %v2840
    %v2842 = vrot.slane %v1508, %v2841
    %v2843 = vlaneseq
    %v2844 = vshrl.u32 %v2843, 7
    %v2845 = vsub.s32 5, %v2844
    %v2846 = vrot.slane %v1508, %v2845
    %v2851 = vlaneseq
    %v2852 = vshrl.u32 %v2851, 7
    %v2853 = vsub.s32 1, %v2852
    %v2854 = vrot.slane %v2834, %v2853
    %v2855 = vlaneseq
    %v2856 = vshrl.u32 %v2855, 7
    %v2857 = vsub.s32 1, %v2856
    %v2858 = vrot.slane %v2838, %v2857
    %v2859 = vlaneseq
    %v2860 = vshrl.u32 %v2859, 7
    %v2861 = vsub.s32 1, %v2860
    %v2862 = vrot.slane %v2842, %v2861
    %v2863 = vlaneseq
    %v2864 = vshrl.u32 %v2863, 7
    %v2865 = vsub.s32 1, %v2864
    %v2866 = vrot.slane %v2846, %v2865
    %v2867 = vmul.f32 %v2799, %v2854
    %v2868 = vmul.f32 %v2800, %v2858
    %v2869 = vmul.f32 %v2801, %v2862
    %v2870 = vmul.f32 %v2802, %v2866
    %v2871 = vmul.f32 %v2803, %v2854
    %v2872 = vmul.f32 %v2804, %v2858
    %v2873 = vmul.f32 %v2805, %v2862
    %v2874 = vmul.f32 %v2806, %v2866
    %v2875 = vmul.f32 %v2807, %v2854
    %v2876 = vmul.f32 %v2808, %v2858
    %v2877 = vmul.f32 %v2809, %v2862
    %v2878 = vmul.f32 %v2810, %v2866
    %v2879 = vmul.f32 %v2811, %v2854
    %v2880 = vmul.f32 %v2812, %v2858
    %v2881 = vmul.f32 %v2813, %v2862
    %v2882 = vmul.f32 %v2814, %v2866
    %v2883 = vmul.f32 %v2815, %v2854
    %v2884 = vmul.f32 %v2816, %v2858
    %v2885 = vmul.f32 %v2817, %v2862
    %v2886 = vmul.f32 %v2818, %v2866
    %v2887 = vmul.f32 %v2819, %v2854
    %v2888 = vmul.f32 %v2820, %v2858
    %v2889 = vmul.f32 %v2821, %v2862
    %v2890 = vmul.f32 %v2822, %v2866
    %v2891 = vmul.f32 %v2823, %v2854
    %v2892 = vmul.f32 %v2824, %v2858
    %v2893 = vmul.f32 %v2825, %v2862
    %v2894 = vmul.f32 %v2826, %v2866
    %v2895 = vmul.f32 %v2827, %v2854
    %v2896 = vmul.f32 %v2828, %v2858
    %v2897 = vmul.f32 %v2829, %v2862
    %v2898 = vmul.f32 %v2830, %v2866
    %v2899 = vlaneseq
    %v2900 = vshrl.u32 %v2899, 7
    %v2901 = vsub.s32 2, %v2900
    %v2902 = vrot.slane %v1507, %v2901
    %v2903 = vlaneseq
    %v2904 = vshrl.u32 %v2903, 7
    %v2905 = vsub.s32 6, %v2904
    %v2906 = vrot.slane %v1507, %v2905
    %v2907 = vlaneseq
    %v2908 = vshrl.u32 %v2907, 7
    %v2909 = vsub.s32 2, %v2908
    %v2910 = vrot.slane %v1508, %v2909
    %v2911 = vlaneseq
    %v2912 = vshrl.u32 %v2911, 7
    %v2913 = vsub.s32 6, %v2912
    %v2914 = vrot.slane %v1508, %v2913
    %v2919 = vlaneseq
    %v2920 = vshrl.u32 %v2919, 7
    %v2921 = vsub.s32 2, %v2920
    %v2922 = vrot.slane %v2902, %v2921
    %v2923 = vlaneseq
    %v2924 = vshrl.u32 %v2923, 7
    %v2925 = vsub.s32 2, %v2924
    %v2926 = vrot.slane %v2906, %v2925
    %v2927 = vlaneseq
    %v2928 = vshrl.u32 %v2927, 7
    %v2929 = vsub.s32 2, %v2928
    %v2930 = vrot.slane %v2910, %v2929
    %v2931 = vlaneseq
    %v2932 = vshrl.u32 %v2931, 7
    %v2933 = vsub.s32 2, %v2932
    %v2934 = vrot.slane %v2914, %v2933
    %v2935 = vadd.f32 %v2867, %v2922
    %v2936 = vadd.f32 %v2868, %v2926
    %v2937 = vadd.f32 %v2869, %v2930
    %v2938 = vadd.f32 %v2870, %v2934
    %v2939 = vadd.f32 %v2871, %v2922
    %v2940 = vadd.f32 %v2872, %v2926
    %v2941 = vadd.f32 %v2873, %v2930
    %v2942 = vadd.f32 %v2874, %v2934
    %v2943 = vadd.f32 %v2875, %v2922
    %v2944 = vadd.f32 %v2876, %v2926
    %v2945 = vadd.f32 %v2877, %v2930
    %v2946 = vadd.f32 %v2878, %v2934
    %v2947 = vadd.f32 %v2879, %v2922
    %v2948 = vadd.f32 %v2880, %v2926
    %v2949 = vadd.f32 %v2881, %v2930
    %v2950 = vadd.f32 %v2882, %v2934
    %v2951 = vadd.f32 %v2883, %v2922
    %v2952 = vadd.f32 %v2884, %v2926
    %v2953 = vadd.f32 %v2885, %v2930
    %v2954 = vadd.f32 %v2886, %v2934
    %v2955 = vadd.f32 %v2887, %v2922
    %v2956 = vadd.f32 %v2888, %v2926
    %v2957 = vadd.f32 %v2889, %v2930
    %v2958 = vadd.f32 %v2890, %v2934
    %v2959 = vadd.f32 %v2891, %v2922
    %v2960 = vadd.f32 %v2892, %v2926
    %v2961 = vadd.f32 %v2893, %v2930
    %v2962 = vadd.f32 %v2894, %v2934
    %v2963 = vadd.f32 %v2895, %v2922
    %v2964 = vadd.f32 %v2896, %v2926
    %v2965 = vadd.f32 %v2897, %v2930
    %v2966 = vadd.f32 %v2898, %v2934
    %v2967 = vtanh.pop %v2935
    %v2968 = vtanh.pop %v2936
    %v2969 = vtanh.pop %v2937
    %v2970 = vtanh.pop %v2938
    %v2971 = vtanh.pop %v2939
    %v2972 = vtanh.pop %v2940
    %v2973 = vtanh.pop %v2941
    %v2974 = vtanh.pop %v2942
    %v2975 = vtanh.pop %v2943
    %v2976 = vtanh.pop %v2944
    %v2977 = vtanh.pop %v2945
    %v2978 = vtanh.pop %v2946
    %v2979 = vtanh.pop %v2947
    %v2980 = vtanh.pop %v2948
    %v2981 = vtanh.pop %v2949
    %v2982 = vtanh.pop %v2950
    %v2983 = vtanh.pop %v2951
    %v2984 = vtanh.pop %v2952
    %v2985 = vtanh.pop %v2953
    %v2986 = vtanh.pop %v2954
    %v2987 = vtanh.pop %v2955
    %v2988 = vtanh.pop %v2956
    %v2989 = vtanh.pop %v2957
    %v2990 = vtanh.pop %v2958
    %v2991 = vtanh.pop %v2959
    %v2992 = vtanh.pop %v2960
    %v2993 = vtanh.pop %v2961
    %v2994 = vtanh.pop %v2962
    %v2995 = vtanh.pop %v2963
    %v2996 = vtanh.pop %v2964
    %v2997 = vtanh.pop %v2965
    %v2998 = vtanh.pop %v2966
    %v2999 = vrot.slane %v2967, 4
    %v3000 = vmax.f32 %v2967, %v2999
    %v3001 = vrot.slane %v3000, 2
    %v3002 = vmax.f32 %v3000, %v3001
    %v3003 = vrot.slane %v3002, 1
    %v3004 = vmax.f32 %v3002, %v3003
    %v3005 = vrot.slane %v2968, 4
    %v3006 = vmax.f32 %v2968, %v3005
    %v3007 = vrot.slane %v3006, 2
    %v3008 = vmax.f32 %v3006, %v3007
    %v3009 = vrot.slane %v3008, 1
    %v3010 = vmax.f32 %v3008, %v3009
    %v3011 = vrot.slane %v2969, 4
    %v3012 = vmax.f32 %v2969, %v3011
    %v3013 = vrot.slane %v3012, 2
    %v3014 = vmax.f32 %v3012, %v3013
    %v3015 = vrot.slane %v3014, 1
    %v3016 = vmax.f32 %v3014, %v3015
    %v3017 = vrot.slane %v2970, 4
    %v3018 = vmax.f32 %v2970, %v3017
    %v3019 = vrot.slane %v3018, 2
    %v3020 = vmax.f32 %v3018, %v3019
    %v3021 = vrot.slane %v3020, 1
    %v3022 = vmax.f32 %v3020, %v3021
    %v3023 = vrot.slane %v2971, 4
    %v3024 = vmax.f32 %v2971, %v3023
    %v3025 = vrot.slane %v3024, 2
    %v3026 = vmax.f32 %v3024, %v3025
    %v3027 = vrot.slane %v3026, 1
    %v3028 = vmax.f32 %v3026, %v3027
    %v3029 = vrot.slane %v2972, 4
    %v3030 = vmax.f32 %v2972, %v3029
    %v3031 = vrot.slane %v3030, 2
    %v3032 = vmax.f32 %v3030, %v3031
    %v3033 = vrot.slane %v3032, 1
    %v3034 = vmax.f32 %v3032, %v3033
    %v3035 = vrot.slane %v2973, 4
    %v3036 = vmax.f32 %v2973, %v3035
    %v3037 = vrot.slane %v3036, 2
    %v3038 = vmax.f32 %v3036, %v3037
    %v3039 = vrot.slane %v3038, 1
    %v3040 = vmax.f32 %v3038, %v3039
    %v3041 = vrot.slane %v2974, 4
    %v3042 = vmax.f32 %v2974, %v3041
    %v3043 = vrot.slane %v3042, 2
    %v3044 = vmax.f32 %v3042, %v3043
    %v3045 = vrot.slane %v3044, 1
    %v3046 = vmax.f32 %v3044, %v3045
    %v3047 = vrot.slane %v2975, 4
    %v3048 = vmax.f32 %v2975, %v3047
    %v3049 = vrot.slane %v3048, 2
    %v3050 = vmax.f32 %v3048, %v3049
    %v3051 = vrot.slane %v3050, 1
    %v3052 = vmax.f32 %v3050, %v3051
    %v3053 = vrot.slane %v2976, 4
    %v3054 = vmax.f32 %v2976, %v3053
    %v3055 = vrot.slane %v3054, 2
    %v3056 = vmax.f32 %v3054, %v3055
    %v3057 = vrot.slane %v3056, 1
    %v3058 = vmax.f32 %v3056, %v3057
    %v3059 = vrot.slane %v2977, 4
    %v3060 = vmax.f32 %v2977, %v3059
    %v3061 = vrot.slane %v3060, 2
    %v3062 = vmax.f32 %v3060, %v3061
    %v3063 = vrot.slane %v3062, 1
    %v3064 = vmax.f32 %v3062, %v3063
    %v3065 = vrot.slane %v2978, 4
    %v3066 = vmax.f32 %v2978, %v3065
    %v3067 = vrot.slane %v3066, 2
    %v3068 = vmax.f32 %v3066, %v3067
    %v3069 = vrot.slane %v3068, 1
    %v3070 = vmax.f32 %v3068, %v3069
    %v3071 = vrot.slane %v2979, 4
    %v3072 = vmax.f32 %v2979, %v3071
    %v3073 = vrot.slane %v3072, 2
    %v3074 = vmax.f32 %v3072, %v3073
    %v3075 = vrot.slane %v3074, 1
    %v3076 = vmax.f32 %v3074, %v3075
    %v3077 = vrot.slane %v2980, 4
    %v3078 = vmax.f32 %v2980, %v3077
    %v3079 = vrot.slane %v3078, 2
    %v3080 = vmax.f32 %v3078, %v3079
    %v3081 = vrot.slane %v3080, 1
    %v3082 = vmax.f32 %v3080, %v3081
    %v3083 = vrot.slane %v2981, 4
    %v3084 = vmax.f32 %v2981, %v3083
    %v3085 = vrot.slane %v3084, 2
    %v3086 = vmax.f32 %v3084, %v3085
    %v3087 = vrot.slane %v3086, 1
    %v3088 = vmax.f32 %v3086, %v3087
    %v3089 = vrot.slane %v2982, 4
    %v3090 = vmax.f32 %v2982, %v3089
    %v3091 = vrot.slane %v3090, 2
    %v3092 = vmax.f32 %v3090, %v3091
    %v3093 = vrot.slane %v3092, 1
    %v3094 = vmax.f32 %v3092, %v3093
    %v3095 = vrot.slane %v2983, 4
    %v3096 = vmax.f32 %v2983, %v3095
    %v3097 = vrot.slane %v3096, 2
    %v3098 = vmax.f32 %v3096, %v3097
    %v3099 = vrot.slane %v3098, 1
    %v3100 = vmax.f32 %v3098, %v3099
    %v3101 = vrot.slane %v2984, 4
    %v3102 = vmax.f32 %v2984, %v3101
    %v3103 = vrot.slane %v3102, 2
    %v3104 = vmax.f32 %v3102, %v3103
    %v3105 = vrot.slane %v3104, 1
    %v3106 = vmax.f32 %v3104, %v3105
    %v3107 = vrot.slane %v2985, 4
    %v3108 = vmax.f32 %v2985, %v3107
    %v3109 = vrot.slane %v3108, 2
    %v3110 = vmax.f32 %v3108, %v3109
    %v3111 = vrot.slane %v3110, 1
    %v3112 = vmax.f32 %v3110, %v3111
    %v3113 = vrot.slane %v2986, 4
    %v3114 = vmax.f32 %v2986, %v3113
    %v3115 = vrot.slane %v3114, 2
    %v3116 = vmax.f32 %v3114, %v3115
    %v3117 = vrot.slane %v3116, 1
    %v3118 = vmax.f32 %v3116, %v3117
    %v3119 = vrot.slane %v2987, 4
    %v3120 = vmax.f32 %v2987, %v3119
    %v3121 = vrot.slane %v3120, 2
    %v3122 = vmax.f32 %v3120, %v3121
    %v3123 = vrot.slane %v3122, 1
    %v3124 = vmax.f32 %v3122, %v3123
    %v3125 = vrot.slane %v2988, 4
    %v3126 = vmax.f32 %v2988, %v3125
    %v3127 = vrot.slane %v3126, 2
    %v3128 = vmax.f32 %v3126, %v3127
    %v3129 = vrot.slane %v3128, 1
    %v3130 = vmax.f32 %v3128, %v3129
    %v3131 = vrot.slane %v2989, 4
    %v3132 = vmax.f32 %v2989, %v3131
    %v3133 = vrot.slane %v3132, 2
    %v3134 = vmax.f32 %v3132, %v3133
    %v3135 = vrot.slane %v3134, 1
    %v3136 = vmax.f32 %v3134, %v3135
    %v3137 = vrot.slane %v2990, 4
    %v3138 = vmax.f32 %v2990, %v3137
    %v3139 = vrot.slane %v3138, 2
    %v3140 = vmax.f32 %v3138, %v3139
    %v3141 = vrot.slane %v3140, 1
    %v3142 = vmax.f32 %v3140, %v3141
    %v3143 = vrot.slane %v2991, 4
    %v3144 = vmax.f32 %v2991, %v3143
    %v3145 = vrot.slane %v3144, 2
    %v3146 = vmax.f32 %v3144, %v3145
    %v3147 = vrot.slane %v3146, 1
    %v3148 = vmax.f32 %v3146, %v3147
    %v3149 = vrot.slane %v2992, 4
    %v3150 = vmax.f32 %v2992, %v3149
    %v3151 = vrot.slane %v3150, 2
    %v3152 = vmax.f32 %v3150, %v3151
    %v3153 = vrot.slane %v3152, 1
    %v3154 = vmax.f32 %v3152, %v3153
    %v3155 = vrot.slane %v2993, 4
    %v3156 = vmax.f32 %v2993, %v3155
    %v3157 = vrot.slane %v3156, 2
    %v3158 = vmax.f32 %v3156, %v3157
    %v3159 = vrot.slane %v3158, 1
    %v3160 = vmax.f32 %v3158, %v3159
    %v3161 = vrot.slane %v2994, 4
    %v3162 = vmax.f32 %v2994, %v3161
    %v3163 = vrot.slane %v3162, 2
    %v3164 = vmax.f32 %v3162, %v3163
    %v3165 = vrot.slane %v3164, 1
    %v3166 = vmax.f32 %v3164, %v3165
    %v3167 = vrot.slane %v2995, 4
    %v3168 = vmax.f32 %v2995, %v3167
    %v3169 = vrot.slane %v3168, 2
    %v3170 = vmax.f32 %v3168, %v3169
    %v3171 = vrot.slane %v3170, 1
    %v3172 = vmax.f32 %v3170, %v3171
    %v3173 = vrot.slane %v2996, 4
    %v3174 = vmax.f32 %v2996, %v3173
    %v3175 = vrot.slane %v3174, 2
    %v3176 = vmax.f32 %v3174, %v3175
    %v3177 = vrot.slane %v3176, 1
    %v3178 = vmax.f32 %v3176, %v3177
    %v3179 = vrot.slane %v2997, 4
    %v3180 = vmax.f32 %v2997, %v3179
    %v3181 = vrot.slane %v3180, 2
    %v3182 = vmax.f32 %v3180, %v3181
    %v3183 = vrot.slane %v3182, 1
    %v3184 = vmax.f32 %v3182, %v3183
    %v3185 = vrot.slane %v2998, 4
    %v3186 = vmax.f32 %v2998, %v3185
    %v3187 = vrot.slane %v3186, 2
    %v3188 = vmax.f32 %v3186, %v3187
    %v3189 = vrot.slane %v3188, 1
    %v3190 = vmax.f32 %v3188, %v3189
    %vm3223 = vcmask 1041409
    %v3224 = vsel %vm3223, %v3028, %v3004
    %vm3225 = vcmask 1042434
    %v3226 = vsel %vm3225, %v3052, %v3224
    %vm3227 = vcmask 1043459
    %v3228 = vsel %vm3227, %v3076, %v3226
    %vm3229 = vcmask 1044484
    %v3230 = vsel %vm3229, %v3100, %v3228
    %vm3231 = vcmask 1045509
    %v3232 = vsel %vm3231, %v3124, %v3230
    %vm3233 = vcmask 1046534
    %v3234 = vsel %vm3233, %v3148, %v3232
    %vm3235 = vcmask 1047559
    %v3236 = vsel %vm3235, %v3172, %v3234
    %v3237 = vsel %vm3223, %v3034, %v3010
    %v3238 = vsel %vm3225, %v3058, %v3237
    %v3239 = vsel %vm3227, %v3082, %v3238
    %v3240 = vsel %vm3229, %v3106, %v3239
    %v3241 = vsel %vm3231, %v3130, %v3240
    %v3242 = vsel %vm3233, %v3154, %v3241
    %v3243 = vsel %vm3235, %v3178, %v3242
    %v3244 = vsel %vm3223, %v3040, %v3016
    %v3245 = vsel %vm3225, %v3064, %v3244
    %v3246 = vsel %vm3227, %v3088, %v3245
    %v3247 = vsel %vm3229, %v3112, %v3246
    %v3248 = vsel %vm3231, %v3136, %v3247
    %v3249 = vsel %vm3233, %v3160, %v3248
    %v3250 = vsel %vm3235, %v3184, %v3249
    %v3251 = vsel %vm3223, %v3046, %v3022
    %v3252 = vsel %vm3225, %v3070, %v3251
    %v3253 = vsel %vm3227, %v3094, %v3252
    %v3254 = vsel %vm3229, %v3118, %v3253
    %v3255 = vsel %vm3231, %v3142, %v3254
    %v3256 = vsel %vm3233, %v3166, %v3255
    %v3257 = vsel %vm3235, %v3190, %v3256
    %3262 = vst [vmem:[#allocation7] sm:$0xff] %v3236
    %3263 = vst [vmem:[#allocation7 + $0x8] sm:$0xff] %v3243
    %3264 = vst [vmem:[#allocation7 + $0x10] sm:$0xff] %v3250
    %3265 = vst [vmem:[#allocation7 + $0x18] sm:$0xff] %v3257
    // Predicated region
    $region38: #{tpu_custom_call.1} parent=1 // pred_check
      _
    $region39: #{tpu_custom_call.1} parent=1 // pred_check_branch
      %3267 = sbr.rel (0) target = $region41
    $region40: #{tpu_custom_call.1} parent=1 // pred_region
      %s3269 = ssub.s32 512, 512
      %3270 = vsyncadd [#allocation4], %s3269
      %s3272 = sshll.u32 [#allocation7], 4
      %s3273 = int_to_ptr.vmem [resolvable:$true] %s3272
      %3275 = dma.vmem_to_hbm [thread:$0]  %s3273, 512, %s7, [#allocation4]
    $region41: #{tpu_custom_call.1} parent=1 // pred_fallthru
      _
    // Predicated region
    $region42: #{tpu_custom_call.1} parent=1 // pred_check
      _
    $region43: #{tpu_custom_call.1} parent=1 // pred_check_branch
      %3277 = sbr.rel (0) target = $region45
    $region44: #{tpu_custom_call.1} parent=1 // pred_region
      %3278 = dma.done [#allocation4], 512
    $region45: #{tpu_custom_call.1} parent=1 // pred_fallthru
      _
    %3279 = vsyncpa [#allocation3], 1
    %3280 = vsyncpa [#allocation6], 1
    %3281 = vsyncpa [#allocation4], 1

// kernel: tpu_custom_call.1
$region0: #{tpu_custom_call.1}
  #allocation0 [shape = 'u32[]', space=smem, size = 0x4, offset = 0x4, fixed_abs, tag = 'smem constant byte address 0x4 - core index']
  #allocation1 [shape = 'u32[144,128]{1,0:T(1,128)}', space=vmem, size = 0x12000, scoped, tag = 'internal scratch']
  %s0 = inlined_call_operand.vmem [shape: f32[64,3], index: 0, kind: input, shape index: {}]
  %s1 = inlined_call_operand.vmem [shape: f32[3,256], index: 1, kind: input, shape index: {}]
  %s2 = inlined_call_operand.vmem [shape: f32[3,256], index: 2, kind: input, shape index: {}]
  %s3 = inlined_call_operand.hbm [shape: bf16[256,512], index: 3, kind: input, shape index: {}]
  %s4 = inlined_call_operand.vmem [shape: f32[3,512], index: 4, kind: input, shape index: {}]
  %s5 = inlined_call_operand.hbm [shape: bf16[512,512], index: 5, kind: input, shape index: {}]
  %s6 = inlined_call_operand.vmem [shape: f32[3,512], index: 6, kind: input, shape index: {}]
  %s7 = inlined_call_operand.hbm [shape: f32[8,512], index: 7, kind: output, shape index: {}]
  %s8 = sld [smem:[#allocation0]]
  $region46: #{tpu_custom_call.1} parent=0
    _
  %s10 = ssub.s32 1, %s8
  %s11 = scalar_select 0, %s10, %s8
  $region1: #{tpu_custom_call.1} parent=0
    #allocation2 [shape = 'u8[262144]{0}', space=vmem, size = 0x40000, scoped, tag = 'input window, operand 3, single buffered']
    #allocation3 [shape = 's32[1]{0}', space=sflag, size = 0x4, scoped, tag = 'scoped memory for tpu_custom_call.1']
    #allocation4 [shape = 's32[1]{0}', space=sflag, size = 0x4, scoped, tag = 'scoped memory for tpu_custom_call.1']
    #allocation5 [shape = 'u8[524288]{0}', space=vmem, size = 0x80000, scoped, tag = 'input window, operand 5, single buffered']
    #allocation6 [shape = 's32[1]{0}', space=sflag, size = 0x4, scoped, tag = 'scoped memory for tpu_custom_call.1']
    #allocation7 [shape = 'u8[16384]{0}', space=vmem, size = 0x4000, scoped, tag = 'output window, operand 0, single buffered']
    %12 = vsyncpa [#allocation3], 0
    %13 = vsyncpa [#allocation6], 0
    %14 = vsyncpa [#allocation4], 0
    // Predicated region
    $region2: #{tpu_custom_call.1} parent=1 // pred_check
      _
    $region3: #{tpu_custom_call.1} parent=1 // pred_check_branch
      %16 = sbr.rel (0) target = $region5
    $region4: #{tpu_custom_call.1} parent=1 // pred_region
      _
    $region5: #{tpu_custom_call.1} parent=1 // pred_fallthru
      _
    // Predicated region
    $region6: #{tpu_custom_call.1} parent=1 // pred_check
      _
    $region7: #{tpu_custom_call.1} parent=1 // pred_check_branch
      %18 = sbr.rel (0) target = $region9
    $region8: #{tpu_custom_call.1} parent=1 // pred_region
      _
    $region9: #{tpu_custom_call.1} parent=1 // pred_fallthru
      _
    // Predicated region
    $region10: #{tpu_custom_call.1} parent=1 // pred_check
      _
    $region11: #{tpu_custom_call.1} parent=1 // pred_check_branch
      %20 = sbr.rel (0) target = $region13
    $region12: #{tpu_custom_call.1} parent=1 // pred_region
      _
    $region13: #{tpu_custom_call.1} parent=1 // pred_fallthru
      _
    // Predicated region
    $region14: #{tpu_custom_call.1} parent=1 // pred_check
      _
    $region15: #{tpu_custom_call.1} parent=1 // pred_check_branch
      %22 = sbr.rel (0) target = $region17
    $region16: #{tpu_custom_call.1} parent=1 // pred_region
      %s24 = ssub.s32 8192, 8192
      %25 = vsyncadd [#allocation3], %s24
      %s26 = sshll.u32 [#allocation2], 4
      %s27 = int_to_ptr.vmem [resolvable:$true] %s26
      %32 = dma.hbm_to_vmem [thread:$0]  %s3, 8192, %s27, [#allocation3], 256, 256, 16
    $region17: #{tpu_custom_call.1} parent=1 // pred_fallthru
      _
    // Predicated region
    $region18: #{tpu_custom_call.1} parent=1 // pred_check
      _
    $region19: #{tpu_custom_call.1} parent=1 // pred_check_branch
      %34 = sbr.rel (0) target = $region21
    $region20: #{tpu_custom_call.1} parent=1 // pred_region
      _
    $region21: #{tpu_custom_call.1} parent=1 // pred_fallthru
      _
    // Predicated region
    $region22: #{tpu_custom_call.1} parent=1 // pred_check
      _
    $region23: #{tpu_custom_call.1} parent=1 // pred_check_branch
      %36 = sbr.rel (0) target = $region25
    $region24: #{tpu_custom_call.1} parent=1 // pred_region
      %s38 = ssub.s32 16384, 16384
      %39 = vsyncadd [#allocation6], %s38
      %s40 = sshll.u32 [#allocation5], 4
      %s41 = int_to_ptr.vmem [resolvable:$true] %s40
      %46 = dma.hbm_to_vmem [thread:$0]  %s5, 16384, %s41, [#allocation6], 256, 256, 16
    $region25: #{tpu_custom_call.1} parent=1 // pred_fallthru
      _
    // Predicated region
    $region26: #{tpu_custom_call.1} parent=1 // pred_check
      _
    $region27: #{tpu_custom_call.1} parent=1 // pred_check_branch
      %48 = sbr.rel (0) target = $region29
    $region28: #{tpu_custom_call.1} parent=1 // pred_region
      _
    $region29: #{tpu_custom_call.1} parent=1 // pred_fallthru
      _
    // Predicated region
    $region30: #{tpu_custom_call.1} parent=1 // pred_check
      _
    $region31: #{tpu_custom_call.1} parent=1 // pred_check_branch
      %50 = sbr.rel (0) target = $region33
    $region32: #{tpu_custom_call.1} parent=1 // pred_region
      %51 = dma.done [#allocation3], 8192
    $region33: #{tpu_custom_call.1} parent=1 // pred_fallthru
      _
    // Predicated region
    $region34: #{tpu_custom_call.1} parent=1 // pred_check
      _
    $region35: #{tpu_custom_call.1} parent=1 // pred_check_branch
      %53 = sbr.rel (0) target = $region37
    $region36: #{tpu_custom_call.1} parent=1 // pred_region
      %54 = dma.done [#allocation6], 16384
    $region37: #{tpu_custom_call.1} parent=1 // pred_fallthru
      _
    %v55 = vld [vmem:[%s0] sm:$0xff]
    %v56 = vld [vmem:[%s0 + $0x8] sm:$0xff]
    %v57 = vld [vmem:[%s0 + $0x10] sm:$0xff]
    %v58 = vld [vmem:[%s0 + $0x18] sm:$0xff]
    %v59 = vld [vmem:[%s0 + $0x20] sm:$0xff]
    %v60 = vld [vmem:[%s0 + $0x28] sm:$0xff]
    %v61 = vld [vmem:[%s0 + $0x30] sm:$0xff]
    %v62 = vld [vmem:[%s0 + $0x38] sm:$0xff]
    %v63 = vld [vmem:[%s2] sm:$0x77]
    %v64 = vld [vmem:[%s1] sm:$0x77]
    %66 = vset.pattern.permute.xlu0 0
    %67 = vperm.xlu0 %66, %v55
    %v68 = vpop.permute.xlu0 %67
    %71 = vset.pattern.permute.xlu0 0
    %72 = vperm.xlu0 %71, %v56
    %v73 = vpop.permute.xlu0 %72
    %76 = vset.pattern.permute.xlu0 0
    %77 = vperm.xlu0 %76, %v57
    %v78 = vpop.permute.xlu0 %77
    %81 = vset.pattern.permute.xlu0 0
    %82 = vperm.xlu0 %81, %v58
    %v83 = vpop.permute.xlu0 %82
    %86 = vset.pattern.permute.xlu0 0
    %87 = vperm.xlu0 %86, %v59
    %v88 = vpop.permute.xlu0 %87
    %91 = vset.pattern.permute.xlu0 0
    %92 = vperm.xlu0 %91, %v60
    %v93 = vpop.permute.xlu0 %92
    %96 = vset.pattern.permute.xlu0 0
    %97 = vperm.xlu0 %96, %v61
    %v98 = vpop.permute.xlu0 %97
    %101 = vset.pattern.permute.xlu0 0
    %102 = vperm.xlu0 %101, %v62
    %v103 = vpop.permute.xlu0 %102
    %v106 = vlaneseq
    %v107 = vshrl.u32 %v106, 7
    %v108 = vsub.s32 0, %v107
    %v109 = vrot.slane %v64, %v108
    %v110 = vlaneseq
    %v111 = vshrl.u32 %v110, 7
    %v112 = vsub.s32 4, %v111
    %v113 = vrot.slane %v64, %v112
    %v116 = vlaneseq
    %v117 = vshrl.u32 %v116, 7
    %v118 = vsub.s32 0, %v117
    %v119 = vrot.slane %v109, %v118
    %v120 = vlaneseq
    %v121 = vshrl.u32 %v120, 7
    %v122 = vsub.s32 0, %v121
    %v123 = vrot.slane %v113, %v122
    %v124 = vmul.f32 %v68, %v119
    %v125 = vmul.f32 %v68, %v123
    %v126 = vmul.f32 %v73, %v119
    %v127 = vmul.f32 %v73, %v123
    %v128 = vmul.f32 %v78, %v119
    %v129 = vmul.f32 %v78, %v123
    %v130 = vmul.f32 %v83, %v119
    %v131 = vmul.f32 %v83, %v123
    %v132 = vmul.f32 %v88, %v119
    %v133 = vmul.f32 %v88, %v123
    %v134 = vmul.f32 %v93, %v119
    %v135 = vmul.f32 %v93, %v123
    %v136 = vmul.f32 %v98, %v119
    %v137 = vmul.f32 %v98, %v123
    %v138 = vmul.f32 %v103, %v119
    %v139 = vmul.f32 %v103, %v123
    %v141 = vlaneseq
    %v142 = vshrl.u32 %v141, 7
    %v143 = vsub.s32 0, %v142
    %v144 = vrot.slane %v63, %v143
    %v145 = vlaneseq
    %v146 = vshrl.u32 %v145, 7
    %v147 = vsub.s32 4, %v146
    %v148 = vrot.slane %v63, %v147
    %v151 = vlaneseq
    %v152 = vshrl.u32 %v151, 7
    %v153 = vsub.s32 0, %v152
    %v154 = vrot.slane %v144, %v153
    %v155 = vlaneseq
    %v156 = vshrl.u32 %v155, 7
    %v157 = vsub.s32 0, %v156
    %v158 = vrot.slane %v148, %v157
    %v159 = vadd.f32 %v154, %v124
    %v160 = vadd.f32 %v158, %v125
    %v161 = vadd.f32 %v154, %v126
    %v162 = vadd.f32 %v158, %v127
    %v163 = vadd.f32 %v154, %v128
    %v164 = vadd.f32 %v158, %v129
    %v165 = vadd.f32 %v154, %v130
    %v166 = vadd.f32 %v158, %v131
    %v167 = vadd.f32 %v154, %v132
    %v168 = vadd.f32 %v158, %v133
    %v169 = vadd.f32 %v154, %v134
    %v170 = vadd.f32 %v158, %v135
    %v171 = vadd.f32 %v154, %v136
    %v172 = vadd.f32 %v158, %v137
    %v173 = vadd.f32 %v154, %v138
    %v174 = vadd.f32 %v158, %v139
    %175 = vset.pattern.permute.xlu0 1
    %176 = vperm.xlu0 %175, %v55
    %v177 = vpop.permute.xlu0 %176
    %179 = vset.pattern.permute.xlu0 1
    %180 = vperm.xlu0 %179, %v56
    %v181 = vpop.permute.xlu0 %180
    %183 = vset.pattern.permute.xlu0 1
    %184 = vperm.xlu0 %183, %v57
    %v185 = vpop.permute.xlu0 %184
    %187 = vset.pattern.permute.xlu0 1
    %188 = vperm.xlu0 %187, %v58
    %v189 = vpop.permute.xlu0 %188
    %191 = vset.pattern.permute.xlu0 1
    %192 = vperm.xlu0 %191, %v59
    %v193 = vpop.permute.xlu0 %192
    %195 = vset.pattern.permute.xlu0 1
    %196 = vperm.xlu0 %195, %v60
    %v197 = vpop.permute.xlu0 %196
    %199 = vset.pattern.permute.xlu0 1
    %200 = vperm.xlu0 %199, %v61
    %v201 = vpop.permute.xlu0 %200
    %203 = vset.pattern.permute.xlu0 1
    %204 = vperm.xlu0 %203, %v62
    %v205 = vpop.permute.xlu0 %204
    %v207 = vlaneseq
    %v208 = vshrl.u32 %v207, 7
    %v209 = vsub.s32 1, %v208
    %v210 = vrot.slane %v64, %v209
    %v211 = vlaneseq
    %v212 = vshrl.u32 %v211, 7
    %v213 = vsub.s32 5, %v212
    %v214 = vrot.slane %v64, %v213
    %v217 = vlaneseq
    %v218 = vshrl.u32 %v217, 7
    %v219 = vsub.s32 1, %v218
    %v220 = vrot.slane %v210, %v219
    %v221 = vlaneseq
    %v222 = vshrl.u32 %v221, 7
    %v223 = vsub.s32 1, %v222
    %v224 = vrot.slane %v214, %v223
    %v225 = vmul.f32 %v177, %v220
    %v226 = vmul.f32 %v177, %v224
    %v227 = vmul.f32 %v181, %v220
    %v228 = vmul.f32 %v181, %v224
    %v229 = vmul.f32 %v185, %v220
    %v230 = vmul.f32 %v185, %v224
    %v231 = vmul.f32 %v189, %v220
    %v232 = vmul.f32 %v189, %v224
    %v233 = vmul.f32 %v193, %v220
    %v234 = vmul.f32 %v193, %v224
    %v235 = vmul.f32 %v197, %v220
    %v236 = vmul.f32 %v197, %v224
    %v237 = vmul.f32 %v201, %v220
    %v238 = vmul.f32 %v201, %v224
    %v239 = vmul.f32 %v205, %v220
    %v240 = vmul.f32 %v205, %v224
    %v241 = vadd.f32 %v159, %v225
    %v242 = vadd.f32 %v160, %v226
    %v243 = vadd.f32 %v161, %v227
    %v244 = vadd.f32 %v162, %v228
    %v245 = vadd.f32 %v163, %v229
    %v246 = vadd.f32 %v164, %v230
    %v247 = vadd.f32 %v165, %v231
    %v248 = vadd.f32 %v166, %v232
    %v249 = vadd.f32 %v167, %v233
    %v250 = vadd.f32 %v168, %v234
    %v251 = vadd.f32 %v169, %v235
    %v252 = vadd.f32 %v170, %v236
    %v253 = vadd.f32 %v171, %v237
    %v254 = vadd.f32 %v172, %v238
    %v255 = vadd.f32 %v173, %v239
    %v256 = vadd.f32 %v174, %v240
    %257 = vset.pattern.permute.xlu0 2
    %258 = vperm.xlu0 %257, %v55
    %v259 = vpop.permute.xlu0 %258
    %261 = vset.pattern.permute.xlu0 2
    %262 = vperm.xlu0 %261, %v56
    %v263 = vpop.permute.xlu0 %262
    %265 = vset.pattern.permute.xlu0 2
    %266 = vperm.xlu0 %265, %v57
    %v267 = vpop.permute.xlu0 %266
    %269 = vset.pattern.permute.xlu0 2
    %270 = vperm.xlu0 %269, %v58
    %v271 = vpop.permute.xlu0 %270
    %273 = vset.pattern.permute.xlu0 2
    %274 = vperm.xlu0 %273, %v59
    %v275 = vpop.permute.xlu0 %274
    %277 = vset.pattern.permute.xlu0 2
    %278 = vperm.xlu0 %277, %v60
    %v279 = vpop.permute.xlu0 %278
    %281 = vset.pattern.permute.xlu0 2
    %282 = vperm.xlu0 %281, %v61
    %v283 = vpop.permute.xlu0 %282
    %285 = vset.pattern.permute.xlu0 2
    %286 = vperm.xlu0 %285, %v62
    %v287 = vpop.permute.xlu0 %286
    %v289 = vlaneseq
    %v290 = vshrl.u32 %v289, 7
    %v291 = vsub.s32 2, %v290
    %v292 = vrot.slane %v64, %v291
    %v293 = vlaneseq
    %v294 = vshrl.u32 %v293, 7
    %v295 = vsub.s32 6, %v294
    %v296 = vrot.slane %v64, %v295
    %v299 = vlaneseq
    %v300 = vshrl.u32 %v299, 7
    %v301 = vsub.s32 2, %v300
    %v302 = vrot.slane %v292, %v301
    %v303 = vlaneseq
    %v304 = vshrl.u32 %v303, 7
    %v305 = vsub.s32 2, %v304
    %v306 = vrot.slane %v296, %v305
    %v307 = vmul.f32 %v259, %v302
    %v308 = vmul.f32 %v259, %v306
    %v309 = vmul.f32 %v263, %v302
    %v310 = vmul.f32 %v263, %v306
    %v311 = vmul.f32 %v267, %v302
    %v312 = vmul.f32 %v267, %v306
    %v313 = vmul.f32 %v271, %v302
    %v314 = vmul.f32 %v271, %v306
    %v315 = vmul.f32 %v275, %v302
    %v316 = vmul.f32 %v275, %v306
    %v317 = vmul.f32 %v279, %v302
    %v318 = vmul.f32 %v279, %v306
    %v319 = vmul.f32 %v283, %v302
    %v320 = vmul.f32 %v283, %v306
    %v321 = vmul.f32 %v287, %v302
    %v322 = vmul.f32 %v287, %v306
    %v323 = vadd.f32 %v241, %v307
    %v324 = vadd.f32 %v242, %v308
    %v325 = vadd.f32 %v243, %v309
    %v326 = vadd.f32 %v244, %v310
    %v327 = vadd.f32 %v245, %v311
    %v328 = vadd.f32 %v246, %v312
    %v329 = vadd.f32 %v247, %v313
    %v330 = vadd.f32 %v248, %v314
    %v331 = vadd.f32 %v249, %v315
    %v332 = vadd.f32 %v250, %v316
    %v333 = vadd.f32 %v251, %v317
    %v334 = vadd.f32 %v252, %v318
    %v335 = vadd.f32 %v253, %v319
    %v336 = vadd.f32 %v254, %v320
    %v337 = vadd.f32 %v255, %v321
    %v338 = vadd.f32 %v256, %v322
    %v339 = vadd.f32 %v323, %v324
    %340 = vadd.xlane.f32.xlu0 %v339
    %v341 = vpop.xlane.xlu0 %340
    %v342 = vadd.f32 %v325, %v326
    %343 = vadd.xlane.f32.xlu0 %v342
    %v344 = vpop.xlane.xlu0 %343
    %v345 = vadd.f32 %v327, %v328
    %346 = vadd.xlane.f32.xlu0 %v345
    %v347 = vpop.xlane.xlu0 %346
    %v348 = vadd.f32 %v329, %v330
    %349 = vadd.xlane.f32.xlu0 %v348
    %v350 = vpop.xlane.xlu0 %349
    %v351 = vadd.f32 %v331, %v332
    %352 = vadd.xlane.f32.xlu0 %v351
    %v353 = vpop.xlane.xlu0 %352
    %v354 = vadd.f32 %v333, %v334
    %355 = vadd.xlane.f32.xlu0 %v354
    %v356 = vpop.xlane.xlu0 %355
    %v357 = vadd.f32 %v335, %v336
    %358 = vadd.xlane.f32.xlu0 %v357
    %v359 = vpop.xlane.xlu0 %358
    %v360 = vadd.f32 %v337, %v338
    %361 = vadd.xlane.f32.xlu0 %v360
    %v362 = vpop.xlane.xlu0 %361
    %v363 = vrcp.pop 256.0
    %v364 = vmul.f32 %v341, %v363
    %v365 = vmul.f32 %v344, %v363
    %v366 = vmul.f32 %v347, %v363
    %v367 = vmul.f32 %v350, %v363
    %v368 = vmul.f32 %v353, %v363
    %v369 = vmul.f32 %v356, %v363
    %v370 = vmul.f32 %v359, %v363
    %v371 = vmul.f32 %v362, %v363
    %v372 = vsub.f32 %v323, %v364
    %v373 = vsub.f32 %v324, %v364
    %v374 = vsub.f32 %v325, %v365
    %v375 = vsub.f32 %v326, %v365
    %v376 = vsub.f32 %v327, %v366
    %v377 = vsub.f32 %v328, %v366
    %v378 = vsub.f32 %v329, %v367
    %v379 = vsub.f32 %v330, %v367
    %v380 = vsub.f32 %v331, %v368
    %v381 = vsub.f32 %v332, %v368
    %v382 = vsub.f32 %v333, %v369
    %v383 = vsub.f32 %v334, %v369
    %v384 = vsub.f32 %v335, %v370
    %v385 = vsub.f32 %v336, %v370
    %v386 = vsub.f32 %v337, %v371
    %v387 = vsub.f32 %v338, %v371
    %v388 = vmul.f32 %v372, %v372
    %v389 = vmul.f32 %v373, %v373
    %v390 = vmul.f32 %v374, %v374
    %v391 = vmul.f32 %v375, %v375
    %v392 = vmul.f32 %v376, %v376
    %v393 = vmul.f32 %v377, %v377
    %v394 = vmul.f32 %v378, %v378
    %v395 = vmul.f32 %v379, %v379
    %v396 = vmul.f32 %v380, %v380
    %v397 = vmul.f32 %v381, %v381
    %v398 = vmul.f32 %v382, %v382
    %v399 = vmul.f32 %v383, %v383
    %v400 = vmul.f32 %v384, %v384
    %v401 = vmul.f32 %v385, %v385
    %v402 = vmul.f32 %v386, %v386
    %v403 = vmul.f32 %v387, %v387
    %v404 = vadd.f32 %v388, %v389
    %405 = vadd.xlane.f32.xlu0 %v404
    %v406 = vpop.xlane.xlu0 %405
    %v407 = vadd.f32 %v390, %v391
    %408 = vadd.xlane.f32.xlu0 %v407
    %v409 = vpop.xlane.xlu0 %408
    %v410 = vadd.f32 %v392, %v393
    %411 = vadd.xlane.f32.xlu0 %v410
    %v412 = vpop.xlane.xlu0 %411
    %v413 = vadd.f32 %v394, %v395
    %414 = vadd.xlane.f32.xlu0 %v413
    %v415 = vpop.xlane.xlu0 %414
    %v416 = vadd.f32 %v396, %v397
    %417 = vadd.xlane.f32.xlu0 %v416
    %v418 = vpop.xlane.xlu0 %417
    %v419 = vadd.f32 %v398, %v399
    %420 = vadd.xlane.f32.xlu0 %v419
    %v421 = vpop.xlane.xlu0 %420
    %v422 = vadd.f32 %v400, %v401
    %423 = vadd.xlane.f32.xlu0 %v422
    %v424 = vpop.xlane.xlu0 %423
    %v425 = vadd.f32 %v402, %v403
    %426 = vadd.xlane.f32.xlu0 %v425
    %v427 = vpop.xlane.xlu0 %426
    %v428 = vmul.f32 %v406, %v363
    %v429 = vmul.f32 %v409, %v363
    %v430 = vmul.f32 %v412, %v363
    %v431 = vmul.f32 %v415, %v363
    %v432 = vmul.f32 %v418, %v363
    %v433 = vmul.f32 %v421, %v363
    %v434 = vmul.f32 %v424, %v363
    %v435 = vmul.f32 %v427, %v363
    %v436 = vadd.f32 %v428, 1e-05
    %v437 = vadd.f32 %v429, 1e-05
    %v438 = vadd.f32 %v430, 1e-05
    %v439 = vadd.f32 %v431, 1e-05
    %v440 = vadd.f32 %v432, 1e-05
    %v441 = vadd.f32 %v433, 1e-05
    %v442 = vadd.f32 %v434, 1e-05
    %v443 = vadd.f32 %v435, 1e-05
    %v444 = vrsqrt.pop %v436
    %v445 = vrsqrt.pop %v437
    %v446 = vrsqrt.pop %v438
    %v447 = vrsqrt.pop %v439
    %v448 = vrsqrt.pop %v440
    %v449 = vrsqrt.pop %v441
    %v450 = vrsqrt.pop %v442
    %v451 = vrsqrt.pop %v443
    %v452 = vmul.f32 %v372, %v444
    %v453 = vmul.f32 %v373, %v444
    %v454 = vmul.f32 %v374, %v445
    %v455 = vmul.f32 %v375, %v445
    %v456 = vmul.f32 %v376, %v446
    %v457 = vmul.f32 %v377, %v446
    %v458 = vmul.f32 %v378, %v447
    %v459 = vmul.f32 %v379, %v447
    %v460 = vmul.f32 %v380, %v448
    %v461 = vmul.f32 %v381, %v448
    %v462 = vmul.f32 %v382, %v449
    %v463 = vmul.f32 %v383, %v449
    %v464 = vmul.f32 %v384, %v450
    %v465 = vmul.f32 %v385, %v450
    %v466 = vmul.f32 %v386, %v451
    %v467 = vmul.f32 %v387, %v451
    %v468 = vlaneseq
    %v469 = vshrl.u32 %v468, 7
    %v470 = vsub.s32 1, %v469
    %v471 = vrot.slane %v63, %v470
    %v472 = vlaneseq
    %v473 = vshrl.u32 %v472, 7
    %v474 = vsub.s32 5, %v473
    %v475 = vrot.slane %v63, %v474
    %v478 = vlaneseq
    %v479 = vshrl.u32 %v478, 7
    %v480 = vsub.s32 1, %v479
    %v481 = vrot.slane %v471, %v480
    %v482 = vlaneseq
    %v483 = vshrl.u32 %v482, 7
    %v484 = vsub.s32 1, %v483
    %v485 = vrot.slane %v475, %v484
    %v486 = vmul.f32 %v452, %v481
    %v487 = vmul.f32 %v453, %v485
    %v488 = vmul.f32 %v454, %v481
    %v489 = vmul.f32 %v455, %v485
    %v490 = vmul.f32 %v456, %v481
    %v491 = vmul.f32 %v457, %v485
    %v492 = vmul.f32 %v458, %v481
    %v493 = vmul.f32 %v459, %v485
    %v494 = vmul.f32 %v460, %v481
    %v495 = vmul.f32 %v461, %v485
    %v496 = vmul.f32 %v462, %v481
    %v497 = vmul.f32 %v463, %v485
    %v498 = vmul.f32 %v464, %v481
    %v499 = vmul.f32 %v465, %v485
    %v500 = vmul.f32 %v466, %v481
    %v501 = vmul.f32 %v467, %v485
    %v502 = vlaneseq
    %v503 = vshrl.u32 %v502, 7
    %v504 = vsub.s32 2, %v503
    %v505 = vrot.slane %v63, %v504
    %v506 = vlaneseq
    %v507 = vshrl.u32 %v506, 7
    %v508 = vsub.s32 6, %v507
    %v509 = vrot.slane %v63, %v508
    %v512 = vlaneseq
    %v513 = vshrl.u32 %v512, 7
    %v514 = vsub.s32 2, %v513
    %v515 = vrot.slane %v505, %v514
    %v516 = vlaneseq
    %v517 = vshrl.u32 %v516, 7
    %v518 = vsub.s32 2, %v517
    %v519 = vrot.slane %v509, %v518
    %v520 = vadd.f32 %v486, %v515
    %v521 = vadd.f32 %v487, %v519
    %v522 = vadd.f32 %v488, %v515
    %v523 = vadd.f32 %v489, %v519
    %v524 = vadd.f32 %v490, %v515
    %v525 = vadd.f32 %v491, %v519
    %v526 = vadd.f32 %v492, %v515
    %v527 = vadd.f32 %v493, %v519
    %v528 = vadd.f32 %v494, %v515
    %v529 = vadd.f32 %v495, %v519
    %v530 = vadd.f32 %v496, %v515
    %v531 = vadd.f32 %v497, %v519
    %v532 = vadd.f32 %v498, %v515
    %v533 = vadd.f32 %v499, %v519
    %v534 = vadd.f32 %v500, %v515
    %v535 = vadd.f32 %v501, %v519
    %v536 = vtanh.pop %v520
    %v537 = vtanh.pop %v521
    %v538 = vtanh.pop %v522
    %v539 = vtanh.pop %v523
    %v540 = vtanh.pop %v524
    %v541 = vtanh.pop %v525
    %v542 = vtanh.pop %v526
    %v543 = vtanh.pop %v527
    %v544 = vtanh.pop %v528
    %v545 = vtanh.pop %v529
    %v546 = vtanh.pop %v530
    %v547 = vtanh.pop %v531
    %v548 = vtanh.pop %v532
    %v549 = vtanh.pop %v533
    %v550 = vtanh.pop %v534
    %v551 = vtanh.pop %v535
    %v552 = vld [vmem:[%s4] sm:$0x77]
    %v553 = vld [vmem:[%s4 + $0x8] sm:$0x77]
    %v554 = vpack.c.bf16 %v538, %v536
    %v555 = vpack.c.bf16 %v539, %v537
    %v556 = vpack.c.bf16 %v542, %v540
    %v557 = vpack.c.bf16 %v543, %v541
    %v558 = vpack.c.bf16 %v546, %v544
    %v559 = vpack.c.bf16 %v547, %v545
    %v560 = vpack.c.bf16 %v550, %v548
    %v561 = vpack.c.bf16 %v551, %v549
    %v562 = vld [vmem:[#allocation2] sm:$0xff]
    %v563 = vld [vmem:[#allocation2 + $0x8] sm:$0xff]
    %v564 = vld [vmem:[#allocation2 + $0x10] sm:$0xff]
    %v565 = vld [vmem:[#allocation2 + $0x18] sm:$0xff]
    %v566 = vld [vmem:[#allocation2 + $0x20] sm:$0xff]
    %v567 = vld [vmem:[#allocation2 + $0x28] sm:$0xff]
    %v568 = vld [vmem:[#allocation2 + $0x30] sm:$0xff]
    %v569 = vld [vmem:[#allocation2 + $0x38] sm:$0xff]
    %v570 = vld [vmem:[#allocation2 + $0x40] sm:$0xff]
    %v571 = vld [vmem:[#allocation2 + $0x48] sm:$0xff]
    %v572 = vld [vmem:[#allocation2 + $0x50] sm:$0xff]
    %v573 = vld [vmem:[#allocation2 + $0x58] sm:$0xff]
    %v574 = vld [vmem:[#allocation2 + $0x60] sm:$0xff]
    %v575 = vld [vmem:[#allocation2 + $0x68] sm:$0xff]
    %v576 = vld [vmem:[#allocation2 + $0x70] sm:$0xff]
    %v577 = vld [vmem:[#allocation2 + $0x78] sm:$0xff]
    %v578 = vld [vmem:[#allocation2 + $0x80] sm:$0xff]
    %v579 = vld [vmem:[#allocation2 + $0x88] sm:$0xff]
    %v580 = vld [vmem:[#allocation2 + $0x90] sm:$0xff]
    %v581 = vld [vmem:[#allocation2 + $0x98] sm:$0xff]
    %v582 = vld [vmem:[#allocation2 + $0xa0] sm:$0xff]
    %v583 = vld [vmem:[#allocation2 + $0xa8] sm:$0xff]
    %v584 = vld [vmem:[#allocation2 + $0xb0] sm:$0xff]
    %v585 = vld [vmem:[#allocation2 + $0xb8] sm:$0xff]
    %v586 = vld [vmem:[#allocation2 + $0xc0] sm:$0xff]
    %v587 = vld [vmem:[#allocation2 + $0xc8] sm:$0xff]
    %v588 = vld [vmem:[#allocation2 + $0xd0] sm:$0xff]
    %v589 = vld [vmem:[#allocation2 + $0xd8] sm:$0xff]
    %v590 = vld [vmem:[#allocation2 + $0xe0] sm:$0xff]
    %v591 = vld [vmem:[#allocation2 + $0xe8] sm:$0xff]
    %v592 = vld [vmem:[#allocation2 + $0xf0] sm:$0xff]
    %v593 = vld [vmem:[#allocation2 + $0xf8] sm:$0xff]
    %v594 = vld [vmem:[#allocation2 + $0x100] sm:$0xff]
    %v595 = vld [vmem:[#allocation2 + $0x108] sm:$0xff]
    %v596 = vld [vmem:[#allocation2 + $0x110] sm:$0xff]
    %v597 = vld [vmem:[#allocation2 + $0x118] sm:$0xff]
    %v598 = vld [vmem:[#allocation2 + $0x120] sm:$0xff]
    %v599 = vld [vmem:[#allocation2 + $0x128] sm:$0xff]
    %v600 = vld [vmem:[#allocation2 + $0x130] sm:$0xff]
    %v601 = vld [vmem:[#allocation2 + $0x138] sm:$0xff]
    %v602 = vld [vmem:[#allocation2 + $0x140] sm:$0xff]
    %v603 = vld [vmem:[#allocation2 + $0x148] sm:$0xff]
    %v604 = vld [vmem:[#allocation2 + $0x150] sm:$0xff]
    %v605 = vld [vmem:[#allocation2 + $0x158] sm:$0xff]
    %v606 = vld [vmem:[#allocation2 + $0x160] sm:$0xff]
    %v607 = vld [vmem:[#allocation2 + $0x168] sm:$0xff]
    %v608 = vld [vmem:[#allocation2 + $0x170] sm:$0xff]
    %v609 = vld [vmem:[#allocation2 + $0x178] sm:$0xff]
    %v610 = vld [vmem:[#allocation2 + $0x180] sm:$0xff]
    %v611 = vld [vmem:[#allocation2 + $0x188] sm:$0xff]
    %v612 = vld [vmem:[#allocation2 + $0x190] sm:$0xff]
    %v613 = vld [vmem:[#allocation2 + $0x198] sm:$0xff]
    %v614 = vld [vmem:[#allocation2 + $0x1a0] sm:$0xff]
    %v615 = vld [vmem:[#allocation2 + $0x1a8] sm:$0xff]
    %v616 = vld [vmem:[#allocation2 + $0x1b0] sm:$0xff]
    %v617 = vld [vmem:[#allocation2 + $0x1b8] sm:$0xff]
    %v618 = vld [vmem:[#allocation2 + $0x1c0] sm:$0xff]
    %v619 = vld [vmem:[#allocation2 + $0x1c8] sm:$0xff]
    %v620 = vld [vmem:[#allocation2 + $0x1d0] sm:$0xff]
    %v621 = vld [vmem:[#allocation2 + $0x1d8] sm:$0xff]
    %v622 = vld [vmem:[#allocation2 + $0x1e0] sm:$0xff]
    %v623 = vld [vmem:[#allocation2 + $0x1e8] sm:$0xff]
    %v624 = vld [vmem:[#allocation2 + $0x1f0] sm:$0xff]
    %v625 = vld [vmem:[#allocation2 + $0x1f8] sm:$0xff]
    %v628 = vlaneseq
    %v629 = vshrl.u32 %v628, 7
    %v630 = vsub.s32 0, %v629
    %v631 = vrot.slane %v552, %v630
    %v632 = vlaneseq
    %v633 = vshrl.u32 %v632, 7
    %v634 = vsub.s32 4, %v633
    %v635 = vrot.slane %v552, %v634
    %v636 = vlaneseq
    %v637 = vshrl.u32 %v636, 7
    %v638 = vsub.s32 0, %v637
    %v639 = vrot.slane %v553, %v638
    %v640 = vlaneseq
    %v641 = vshrl.u32 %v640, 7
    %v642 = vsub.s32 4, %v641
    %v643 = vrot.slane %v553, %v642
    %v648 = vlaneseq
    %v649 = vshrl.u32 %v648, 7
    %v650 = vsub.s32 0, %v649
    %v651 = vrot.slane %v631, %v650
    %v652 = vlaneseq
    %v653 = vshrl.u32 %v652, 7
    %v654 = vsub.s32 0, %v653
    %v655 = vrot.slane %v635, %v654
    %v656 = vlaneseq
    %v657 = vshrl.u32 %v656, 7
    %v658 = vsub.s32 0, %v657
    %v659 = vrot.slane %v639, %v658
    %v660 = vlaneseq
    %v661 = vshrl.u32 %v660, 7
    %v662 = vsub.s32 0, %v661
    %v663 = vrot.slane %v643, %v662
    %v728 = vunpack.c.l.b16 %v562
    %v729 = vunpack.c.h.b16 %v562
    %v730 = vunpack.c.l.b16 %v563
    %v731 = vunpack.c.h.b16 %v563
    %v732 = vunpack.c.l.b16 %v564
    %v733 = vunpack.c.h.b16 %v564
    %v734 = vunpack.c.l.b16 %v565
    %v735 = vunpack.c.h.b16 %v565
    %v736 = vunpack.c.l.b16 %v566
    %v737 = vunpack.c.h.b16 %v566
    %v738 = vunpack.c.l.b16 %v567
    %v739 = vunpack.c.h.b16 %v567
    %v740 = vunpack.c.l.b16 %v568
    %v741 = vunpack.c.h.b16 %v568
    %v742 = vunpack.c.l.b16 %v569
    %v743 = vunpack.c.h.b16 %v569
    %v744 = vunpack.c.l.b16 %v570
    %v745 = vunpack.c.h.b16 %v570
    %v746 = vunpack.c.l.b16 %v571
    %v747 = vunpack.c.h.b16 %v571
    %v748 = vunpack.c.l.b16 %v572
    %v749 = vunpack.c.h.b16 %v572
    %v750 = vunpack.c.l.b16 %v573
    %v751 = vunpack.c.h.b16 %v573
    %v752 = vunpack.c.l.b16 %v574
    %v753 = vunpack.c.h.b16 %v574
    %v754 = vunpack.c.l.b16 %v575
    %v755 = vunpack.c.h.b16 %v575
    %v756 = vunpack.c.l.b16 %v576
    %v757 = vunpack.c.h.b16 %v576
    %v758 = vunpack.c.l.b16 %v577
    %v759 = vunpack.c.h.b16 %v577
    %v760 = vunpack.c.l.b16 %v578
    %v761 = vunpack.c.h.b16 %v578
    %v762 = vunpack.c.l.b16 %v579
    %v763 = vunpack.c.h.b16 %v579
    %v764 = vunpack.c.l.b16 %v580
    %v765 = vunpack.c.h.b16 %v580
    %v766 = vunpack.c.l.b16 %v581
    %v767 = vunpack.c.h.b16 %v581
    %v768 = vunpack.c.l.b16 %v582
    %v769 = vunpack.c.h.b16 %v582
    %v770 = vunpack.c.l.b16 %v583
    %v771 = vunpack.c.h.b16 %v583
    %v772 = vunpack.c.l.b16 %v584
    %v773 = vunpack.c.h.b16 %v584
    %v774 = vunpack.c.l.b16 %v585
    %v775 = vunpack.c.h.b16 %v585
    %v776 = vunpack.c.l.b16 %v586
    %v777 = vunpack.c.h.b16 %v586
    %v778 = vunpack.c.l.b16 %v587
    %v779 = vunpack.c.h.b16 %v587
    %v780 = vunpack.c.l.b16 %v588
    %v781 = vunpack.c.h.b16 %v588
    %v782 = vunpack.c.l.b16 %v589
    %v783 = vunpack.c.h.b16 %v589
    %v784 = vunpack.c.l.b16 %v590
    %v785 = vunpack.c.h.b16 %v590
    %v786 = vunpack.c.l.b16 %v591
    %v787 = vunpack.c.h.b16 %v591
    %v788 = vunpack.c.l.b16 %v592
    %v789 = vunpack.c.h.b16 %v592
    %v790 = vunpack.c.l.b16 %v593
    %v791 = vunpack.c.h.b16 %v593
    %v792 = vunpack.c.l.b16 %v594
    %v793 = vunpack.c.h.b16 %v594
    %v794 = vunpack.c.l.b16 %v595
    %v795 = vunpack.c.h.b16 %v595
    %v796 = vunpack.c.l.b16 %v596
    %v797 = vunpack.c.h.b16 %v596
    %v798 = vunpack.c.l.b16 %v597
    %v799 = vunpack.c.h.b16 %v597
    %v800 = vunpack.c.l.b16 %v598
    %v801 = vunpack.c.h.b16 %v598
    %v802 = vunpack.c.l.b16 %v599
    %v803 = vunpack.c.h.b16 %v599
    %v804 = vunpack.c.l.b16 %v600
    %v805 = vunpack.c.h.b16 %v600
    %v806 = vunpack.c.l.b16 %v601
    %v807 = vunpack.c.h.b16 %v601
    %v808 = vunpack.c.l.b16 %v602
    %v809 = vunpack.c.h.b16 %v602
    %v810 = vunpack.c.l.b16 %v603
    %v811 = vunpack.c.h.b16 %v603
    %v812 = vunpack.c.l.b16 %v604
    %v813 = vunpack.c.h.b16 %v604
    %v814 = vunpack.c.l.b16 %v605
    %v815 = vunpack.c.h.b16 %v605
    %v816 = vunpack.c.l.b16 %v606
    %v817 = vunpack.c.h.b16 %v606
    %v818 = vunpack.c.l.b16 %v607
    %v819 = vunpack.c.h.b16 %v607
    %v820 = vunpack.c.l.b16 %v608
    %v821 = vunpack.c.h.b16 %v608
    %v822 = vunpack.c.l.b16 %v609
    %v823 = vunpack.c.h.b16 %v609
    %v824 = vunpack.c.l.b16 %v610
    %v825 = vunpack.c.h.b16 %v610
    %v826 = vunpack.c.l.b16 %v611
    %v827 = vunpack.c.h.b16 %v611
    %v828 = vunpack.c.l.b16 %v612
    %v829 = vunpack.c.h.b16 %v612
    %v830 = vunpack.c.l.b16 %v613
    %v831 = vunpack.c.h.b16 %v613
    %v832 = vunpack.c.l.b16 %v614
    %v833 = vunpack.c.h.b16 %v614
    %v834 = vunpack.c.l.b16 %v615
    %v835 = vunpack.c.h.b16 %v615
    %v836 = vunpack.c.l.b16 %v616
    %v837 = vunpack.c.h.b16 %v616
    %v838 = vunpack.c.l.b16 %v617
    %v839 = vunpack.c.h.b16 %v617
    %v840 = vunpack.c.l.b16 %v618
    %v841 = vunpack.c.h.b16 %v618
    %v842 = vunpack.c.l.b16 %v619
    %v843 = vunpack.c.h.b16 %v619
    %v844 = vunpack.c.l.b16 %v620
    %v845 = vunpack.c.h.b16 %v620
    %v846 = vunpack.c.l.b16 %v621
    %v847 = vunpack.c.h.b16 %v621
    %v848 = vunpack.c.l.b16 %v622
    %v849 = vunpack.c.h.b16 %v622
    %v850 = vunpack.c.l.b16 %v623
    %v851 = vunpack.c.h.b16 %v623
    %v852 = vunpack.c.l.b16 %v624
    %v853 = vunpack.c.h.b16 %v624
    %v854 = vunpack.c.l.b16 %v625
    %v855 = vunpack.c.h.b16 %v625
    %v856 = vpack.c.b16 %v732, %v728
    %v857 = vpack.c.b16 %v733, %v729
    %v858 = vpack.c.b16 %v734, %v730
    %v859 = vpack.c.b16 %v735, %v731
    %v860 = vpack.c.b16 %v740, %v736
    %v861 = vpack.c.b16 %v741, %v737
    %v862 = vpack.c.b16 %v742, %v738
    %v863 = vpack.c.b16 %v743, %v739
    %v864 = vpack.c.b16 %v748, %v744
    %v865 = vpack.c.b16 %v749, %v745
    %v866 = vpack.c.b16 %v750, %v746
    %v867 = vpack.c.b16 %v751, %v747
    %v868 = vpack.c.b16 %v756, %v752
    %v869 = vpack.c.b16 %v757, %v753
    %v870 = vpack.c.b16 %v758, %v754
    %v871 = vpack.c.b16 %v759, %v755
    %v872 = vpack.c.b16 %v764, %v760
    %v873 = vpack.c.b16 %v765, %v761
    %v874 = vpack.c.b16 %v766, %v762
    %v875 = vpack.c.b16 %v767, %v763
    %v876 = vpack.c.b16 %v772, %v768
    %v877 = vpack.c.b16 %v773, %v769
    %v878 = vpack.c.b16 %v774, %v770
    %v879 = vpack.c.b16 %v775, %v771
    %v880 = vpack.c.b16 %v780, %v776
    %v881 = vpack.c.b16 %v781, %v777
    %v882 = vpack.c.b16 %v782, %v778
    %v883 = vpack.c.b16 %v783, %v779
    %v884 = vpack.c.b16 %v788, %v784
    %v885 = vpack.c.b16 %v789, %v785
    %v886 = vpack.c.b16 %v790, %v786
    %v887 = vpack.c.b16 %v791, %v787
    %v888 = vpack.c.b16 %v796, %v792
    %v889 = vpack.c.b16 %v797, %v793
    %v890 = vpack.c.b16 %v798, %v794
    %v891 = vpack.c.b16 %v799, %v795
    %v892 = vpack.c.b16 %v804, %v800
    %v893 = vpack.c.b16 %v805, %v801
    %v894 = vpack.c.b16 %v806, %v802
    %v895 = vpack.c.b16 %v807, %v803
    %v896 = vpack.c.b16 %v812, %v808
    %v897 = vpack.c.b16 %v813, %v809
    %v898 = vpack.c.b16 %v814, %v810
    %v899 = vpack.c.b16 %v815, %v811
    %v900 = vpack.c.b16 %v820, %v816
    %v901 = vpack.c.b16 %v821, %v817
    %v902 = vpack.c.b16 %v822, %v818
    %v903 = vpack.c.b16 %v823, %v819
    %v904 = vpack.c.b16 %v828, %v824
    %v905 = vpack.c.b16 %v829, %v825
    %v906 = vpack.c.b16 %v830, %v826
    %v907 = vpack.c.b16 %v831, %v827
    %v908 = vpack.c.b16 %v836, %v832
    %v909 = vpack.c.b16 %v837, %v833
    %v910 = vpack.c.b16 %v838, %v834
    %v911 = vpack.c.b16 %v839, %v835
    %v912 = vpack.c.b16 %v844, %v840
    %v913 = vpack.c.b16 %v845, %v841
    %v914 = vpack.c.b16 %v846, %v842
    %v915 = vpack.c.b16 %v847, %v843
    %v916 = vpack.c.b16 %v852, %v848
    %v917 = vpack.c.b16 %v853, %v849
    %v918 = vpack.c.b16 %v854, %v850
    %v919 = vpack.c.b16 %v855, %v851
    %984 = vmatprep.subr.bf16.mxu0 %v857
    %985 = vmatpush1.bf16.msra.mxu0 %v856
    %986 = vmatprep.subr.bf16.mxu0 %v861
    %987 = vmatpush1.bf16.msra.mxu0 %v860
    %988 = vmatprep.subr.bf16.mxu0 %v865
    %989 = vmatpush1.bf16.msra.mxu0 %v864
    %990 = vmatprep.subr.bf16.mxu0 %v869
    %991 = vmatpush1.bf16.msra.mxu0 %v868
    %992 = vmatprep.subr.bf16.mxu0 %v873
    %993 = vmatpush1.bf16.msra.mxu0 %v872
    %994 = vmatprep.subr.bf16.mxu0 %v877
    %995 = vmatpush1.bf16.msra.mxu0 %v876
    %996 = vmatprep.subr.bf16.mxu0 %v881
    %997 = vmatpush1.bf16.msra.mxu0 %v880
    %998 = vmatprep.subr.bf16.mxu0 %v885
    %999 = vmatpush1.bf16.msra.mxu0 %v884
    %1000 = vmatprep.subr.bf16.mxu0 %v889
    %1001 = vmatpush1.bf16.msra.mxu0 %v888
    %1002 = vmatprep.subr.bf16.mxu0 %v893
    %1003 = vmatpush1.bf16.msra.mxu0 %v892
    %1004 = vmatprep.subr.bf16.mxu0 %v897
    %1005 = vmatpush1.bf16.msra.mxu0 %v896
    %1006 = vmatprep.subr.bf16.mxu0 %v901
    %1007 = vmatpush1.bf16.msra.mxu0 %v900
    %1008 = vmatprep.subr.bf16.mxu0 %v905
    %1009 = vmatpush1.bf16.msra.mxu0 %v904
    %1010 = vmatprep.subr.bf16.mxu0 %v909
    %1011 = vmatpush1.bf16.msra.mxu0 %v908
    %1012 = vmatprep.subr.bf16.mxu0 %v913
    %1013 = vmatpush1.bf16.msra.mxu0 %v912
    %1014 = vmatprep.subr.bf16.mxu0 %v917
    %1015 = vmatpush1.bf16.msra.mxu0 %v916
    %1016 = vmatprep.mubr.bf16.mxu0 %v555
    %1017 = vmatmul.mubr.bf16.gmra.mrb[0].mxu0 %v554
    %v1018 = vpop.f32.mrb[0].mxu0
    %v1019 = vadd.f32 %v651, %v1018
    %v1020 = vpop.f32.mrb[0].mxu0
    %v1021 = vadd.f32 %v655, %v1020
    %v1022 = vpop.f32.mrb[0].mxu0
    %v1023 = vadd.f32 %v651, %v1022
    %v1024 = vpop.f32.mrb[0].mxu0
    %v1025 = vadd.f32 %v655, %v1024
    %1026 = vmatprep.mubr.bf16.mxu0 %v557
    %1027 = vmatmul.mubr.bf16.gmra.mrb[0].mxu0 %v556
    %v1028 = vpop.f32.mrb[0].mxu0
    %v1029 = vadd.f32 %v651, %v1028
    %v1030 = vpop.f32.mrb[0].mxu0
    %v1031 = vadd.f32 %v655, %v1030
    %v1032 = vpop.f32.mrb[0].mxu0
    %v1033 = vadd.f32 %v651, %v1032
    %v1034 = vpop.f32.mrb[0].mxu0
    %v1035 = vadd.f32 %v655, %v1034
    %1036 = vmatprep.mubr.bf16.mxu0 %v559
    %1037 = vmatmul.mubr.bf16.gmra.mrb[0].mxu0 %v558
    %v1038 = vpop.f32.mrb[0].mxu0
    %v1039 = vadd.f32 %v651, %v1038
    %v1040 = vpop.f32.mrb[0].mxu0
    %v1041 = vadd.f32 %v655, %v1040
    %v1042 = vpop.f32.mrb[0].mxu0
    %v1043 = vadd.f32 %v651, %v1042
    %v1044 = vpop.f32.mrb[0].mxu0
    %v1045 = vadd.f32 %v655, %v1044
    %1046 = vmatprep.mubr.bf16.mxu0 %v561
    %1047 = vmatmul.mubr.bf16.gmra.mrb[0].mxu0 %v560
    %v1048 = vpop.f32.mrb[0].mxu0
    %v1049 = vadd.f32 %v651, %v1048
    %v1050 = vpop.f32.mrb[0].mxu0
    %v1051 = vadd.f32 %v655, %v1050
    %v1052 = vpop.f32.mrb[0].mxu0
    %v1053 = vadd.f32 %v651, %v1052
    %v1054 = vpop.f32.mrb[0].mxu0
    %v1055 = vadd.f32 %v655, %v1054
    %1056 = vdwg.mxu0
    %1057 = vmatprep.subr.bf16.mxu0 %v859
    %1058 = vmatpush1.bf16.msra.mxu0 %v858
    %1059 = vmatprep.subr.bf16.mxu0 %v863
    %1060 = vmatpush1.bf16.msra.mxu0 %v862
    %1061 = vmatprep.subr.bf16.mxu0 %v867
    %1062 = vmatpush1.bf16.msra.mxu0 %v866
    %1063 = vmatprep.subr.bf16.mxu0 %v871
    %1064 = vmatpush1.bf16.msra.mxu0 %v870
    %1065 = vmatprep.subr.bf16.mxu0 %v875
    %1066 = vmatpush1.bf16.msra.mxu0 %v874
    %1067 = vmatprep.subr.bf16.mxu0 %v879
    %1068 = vmatpush1.bf16.msra.mxu0 %v878
    %1069 = vmatprep.subr.bf16.mxu0 %v883
    %1070 = vmatpush1.bf16.msra.mxu0 %v882
    %1071 = vmatprep.subr.bf16.mxu0 %v887
    %1072 = vmatpush1.bf16.msra.mxu0 %v886
    %1073 = vmatprep.subr.bf16.mxu0 %v891
    %1074 = vmatpush1.bf16.msra.mxu0 %v890
    %1075 = vmatprep.subr.bf16.mxu0 %v895
    %1076 = vmatpush1.bf16.msra.mxu0 %v894
    %1077 = vmatprep.subr.bf16.mxu0 %v899
    %1078 = vmatpush1.bf16.msra.mxu0 %v898
    %1079 = vmatprep.subr.bf16.mxu0 %v903
    %1080 = vmatpush1.bf16.msra.mxu0 %v902
    %1081 = vmatprep.subr.bf16.mxu0 %v907
    %1082 = vmatpush1.bf16.msra.mxu0 %v906
    %1083 = vmatprep.subr.bf16.mxu0 %v911
    %1084 = vmatpush1.bf16.msra.mxu0 %v910
    %1085 = vmatprep.subr.bf16.mxu0 %v915
    %1086 = vmatpush1.bf16.msra.mxu0 %v914
    %1087 = vmatprep.subr.bf16.mxu0 %v919
    %1088 = vmatpush1.bf16.msra.mxu0 %v918
    %1089 = vmatprep.mubr.bf16.mxu0 %v555
    %1090 = vmatmul.mubr.bf16.gmra.mrb[0].mxu0 %v554
    %v1091 = vpop.f32.mrb[0].mxu0
    %v1092 = vadd.f32 %v659, %v1091
    %v1093 = vpop.f32.mrb[0].mxu0
    %v1094 = vadd.f32 %v663, %v1093
    %v1095 = vpop.f32.mrb[0].mxu0
    %v1096 = vadd.f32 %v659, %v1095
    %v1097 = vpop.f32.mrb[0].mxu0
    %v1098 = vadd.f32 %v663, %v1097
    %1099 = vmatprep.mubr.bf16.mxu0 %v557
    %1100 = vmatmul.mubr.bf16.gmra.mrb[0].mxu0 %v556
    %v1101 = vpop.f32.mrb[0].mxu0
    %v1102 = vadd.f32 %v659, %v1101
    %v1103 = vpop.f32.mrb[0].mxu0
    %v1104 = vadd.f32 %v663, %v1103
    %v1105 = vpop.f32.mrb[0].mxu0
    %v1106 = vadd.f32 %v659, %v1105
    %v1107 = vpop.f32.mrb[0].mxu0
    %v1108 = vadd.f32 %v663, %v1107
    %1109 = vmatprep.mubr.bf16.mxu0 %v559
    %1110 = vmatmul.mubr.bf16.gmra.mrb[0].mxu0 %v558
    %v1111 = vpop.f32.mrb[0].mxu0
    %v1112 = vadd.f32 %v659, %v1111
    %v1113 = vpop.f32.mrb[0].mxu0
    %v1114 = vadd.f32 %v663, %v1113
    %v1115 = vpop.f32.mrb[0].mxu0
    %v1116 = vadd.f32 %v659, %v1115
    %v1117 = vpop.f32.mrb[0].mxu0
    %v1118 = vadd.f32 %v663, %v1117
    %1119 = vmatprep.mubr.bf16.mxu0 %v561
    %1120 = vmatmul.mubr.bf16.gmra.mrb[0].mxu0 %v560
    %v1121 = vpop.f32.mrb[0].mxu0
    %v1122 = vadd.f32 %v659, %v1121
    %v1123 = vpop.f32.mrb[0].mxu0
    %v1124 = vadd.f32 %v663, %v1123
    %v1125 = vpop.f32.mrb[0].mxu0
    %v1126 = vadd.f32 %v659, %v1125
    %v1127 = vpop.f32.mrb[0].mxu0
    %v1128 = vadd.f32 %v663, %v1127
    %1129 = vdwg.mxu0
    %v1130 = vadd.f32 %v1019, %v1021
    %v1131 = vadd.f32 %v1130, %v1092
    %v1132 = vadd.f32 %v1131, %v1094
    %1133 = vadd.xlane.f32.xlu0 %v1132
    %v1134 = vpop.xlane.xlu0 %1133
    %v1135 = vadd.f32 %v1023, %v1025
    %v1136 = vadd.f32 %v1135, %v1096
    %v1137 = vadd.f32 %v1136, %v1098
    %1138 = vadd.xlane.f32.xlu0 %v1137
    %v1139 = vpop.xlane.xlu0 %1138
    %v1140 = vadd.f32 %v1029, %v1031
    %v1141 = vadd.f32 %v1140, %v1102
    %v1142 = vadd.f32 %v1141, %v1104
    %1143 = vadd.xlane.f32.xlu0 %v1142
    %v1144 = vpop.xlane.xlu0 %1143
    %v1145 = vadd.f32 %v1033, %v1035
    %v1146 = vadd.f32 %v1145, %v1106
    %v1147 = vadd.f32 %v1146, %v1108
    %1148 = vadd.xlane.f32.xlu0 %v1147
    %v1149 = vpop.xlane.xlu0 %1148
    %v1150 = vadd.f32 %v1039, %v1041
    %v1151 = vadd.f32 %v1150, %v1112
    %v1152 = vadd.f32 %v1151, %v1114
    %1153 = vadd.xlane.f32.xlu0 %v1152
    %v1154 = vpop.xlane.xlu0 %1153
    %v1155 = vadd.f32 %v1043, %v1045
    %v1156 = vadd.f32 %v1155, %v1116
    %v1157 = vadd.f32 %v1156, %v1118
    %1158 = vadd.xlane.f32.xlu0 %v1157
    %v1159 = vpop.xlane.xlu0 %1158
    %v1160 = vadd.f32 %v1049, %v1051
    %v1161 = vadd.f32 %v1160, %v1122
    %v1162 = vadd.f32 %v1161, %v1124
    %1163 = vadd.xlane.f32.xlu0 %v1162
    %v1164 = vpop.xlane.xlu0 %1163
    %v1165 = vadd.f32 %v1053, %v1055
    %v1166 = vadd.f32 %v1165, %v1126
    %v1167 = vadd.f32 %v1166, %v1128
    %1168 = vadd.xlane.f32.xlu0 %v1167
    %v1169 = vpop.xlane.xlu0 %1168
    %v1170 = vrcp.pop 512.0
    %v1171 = vmul.f32 %v1134, %v1170
    %v1172 = vmul.f32 %v1139, %v1170
    %v1173 = vmul.f32 %v1144, %v1170
    %v1174 = vmul.f32 %v1149, %v1170
    %v1175 = vmul.f32 %v1154, %v1170
    %v1176 = vmul.f32 %v1159, %v1170
    %v1177 = vmul.f32 %v1164, %v1170
    %v1178 = vmul.f32 %v1169, %v1170
    %v1179 = vsub.f32 %v1019, %v1171
    %v1180 = vsub.f32 %v1021, %v1171
    %v1181 = vsub.f32 %v1092, %v1171
    %v1182 = vsub.f32 %v1094, %v1171
    %v1183 = vsub.f32 %v1023, %v1172
    %v1184 = vsub.f32 %v1025, %v1172
    %v1185 = vsub.f32 %v1096, %v1172
    %v1186 = vsub.f32 %v1098, %v1172
    %v1187 = vsub.f32 %v1029, %v1173
    %v1188 = vsub.f32 %v1031, %v1173
    %v1189 = vsub.f32 %v1102, %v1173
    %v1190 = vsub.f32 %v1104, %v1173
    %v1191 = vsub.f32 %v1033, %v1174
    %v1192 = vsub.f32 %v1035, %v1174
    %v1193 = vsub.f32 %v1106, %v1174
    %v1194 = vsub.f32 %v1108, %v1174
    %v1195 = vsub.f32 %v1039, %v1175
    %v1196 = vsub.f32 %v1041, %v1175
    %v1197 = vsub.f32 %v1112, %v1175
    %v1198 = vsub.f32 %v1114, %v1175
    %v1199 = vsub.f32 %v1043, %v1176
    %v1200 = vsub.f32 %v1045, %v1176
    %v1201 = vsub.f32 %v1116, %v1176
    %v1202 = vsub.f32 %v1118, %v1176
    %v1203 = vsub.f32 %v1049, %v1177
    %v1204 = vsub.f32 %v1051, %v1177
    %v1205 = vsub.f32 %v1122, %v1177
    %v1206 = vsub.f32 %v1124, %v1177
    %v1207 = vsub.f32 %v1053, %v1178
    %v1208 = vsub.f32 %v1055, %v1178
    %v1209 = vsub.f32 %v1126, %v1178
    %v1210 = vsub.f32 %v1128, %v1178
    %v1211 = vmul.f32 %v1179, %v1179
    %v1212 = vmul.f32 %v1180, %v1180
    %v1213 = vmul.f32 %v1181, %v1181
    %v1214 = vmul.f32 %v1182, %v1182
    %v1215 = vmul.f32 %v1183, %v1183
    %v1216 = vmul.f32 %v1184, %v1184
    %v1217 = vmul.f32 %v1185, %v1185
    %v1218 = vmul.f32 %v1186, %v1186
    %v1219 = vmul.f32 %v1187, %v1187
    %v1220 = vmul.f32 %v1188, %v1188
    %v1221 = vmul.f32 %v1189, %v1189
    %v1222 = vmul.f32 %v1190, %v1190
    %v1223 = vmul.f32 %v1191, %v1191
    %v1224 = vmul.f32 %v1192, %v1192
    %v1225 = vmul.f32 %v1193, %v1193
    %v1226 = vmul.f32 %v1194, %v1194
    %v1227 = vmul.f32 %v1195, %v1195
    %v1228 = vmul.f32 %v1196, %v1196
    %v1229 = vmul.f32 %v1197, %v1197
    %v1230 = vmul.f32 %v1198, %v1198
    %v1231 = vmul.f32 %v1199, %v1199
    %v1232 = vmul.f32 %v1200, %v1200
    %v1233 = vmul.f32 %v1201, %v1201
    %v1234 = vmul.f32 %v1202, %v1202
    %v1235 = vmul.f32 %v1203, %v1203
    %v1236 = vmul.f32 %v1204, %v1204
    %v1237 = vmul.f32 %v1205, %v1205
    %v1238 = vmul.f32 %v1206, %v1206
    %v1239 = vmul.f32 %v1207, %v1207
    %v1240 = vmul.f32 %v1208, %v1208
    %v1241 = vmul.f32 %v1209, %v1209
    %v1242 = vmul.f32 %v1210, %v1210
    %v1243 = vadd.f32 %v1211, %v1212
    %v1244 = vadd.f32 %v1243, %v1213
    %v1245 = vadd.f32 %v1244, %v1214
    %1246 = vadd.xlane.f32.xlu0 %v1245
    %v1247 = vpop.xlane.xlu0 %1246
    %v1248 = vadd.f32 %v1215, %v1216
    %v1249 = vadd.f32 %v1248, %v1217
    %v1250 = vadd.f32 %v1249, %v1218
    %1251 = vadd.xlane.f32.xlu0 %v1250
    %v1252 = vpop.xlane.xlu0 %1251
    %v1253 = vadd.f32 %v1219, %v1220
    %v1254 = vadd.f32 %v1253, %v1221
    %v1255 = vadd.f32 %v1254, %v1222
    %1256 = vadd.xlane.f32.xlu0 %v1255
    %v1257 = vpop.xlane.xlu0 %1256
    %v1258 = vadd.f32 %v1223, %v1224
    %v1259 = vadd.f32 %v1258, %v1225
    %v1260 = vadd.f32 %v1259, %v1226
    %1261 = vadd.xlane.f32.xlu0 %v1260
    %v1262 = vpop.xlane.xlu0 %1261
    %v1263 = vadd.f32 %v1227, %v1228
    %v1264 = vadd.f32 %v1263, %v1229
    %v1265 = vadd.f32 %v1264, %v1230
    %1266 = vadd.xlane.f32.xlu0 %v1265
    %v1267 = vpop.xlane.xlu0 %1266
    %v1268 = vadd.f32 %v1231, %v1232
    %v1269 = vadd.f32 %v1268, %v1233
    %v1270 = vadd.f32 %v1269, %v1234
    %1271 = vadd.xlane.f32.xlu0 %v1270
    %v1272 = vpop.xlane.xlu0 %1271
    %v1273 = vadd.f32 %v1235, %v1236
    %v1274 = vadd.f32 %v1273, %v1237
    %v1275 = vadd.f32 %v1274, %v1238
    %1276 = vadd.xlane.f32.xlu0 %v1275
    %v1277 = vpop.xlane.xlu0 %1276
    %v1278 = vadd.f32 %v1239, %v1240
    %v1279 = vadd.f32 %v1278, %v1241
    %v1280 = vadd.f32 %v1279, %v1242
    %1281 = vadd.xlane.f32.xlu0 %v1280
    %v1282 = vpop.xlane.xlu0 %1281
    %v1283 = vmul.f32 %v1247, %v1170
    %v1284 = vmul.f32 %v1252, %v1170
    %v1285 = vmul.f32 %v1257, %v1170
    %v1286 = vmul.f32 %v1262, %v1170
    %v1287 = vmul.f32 %v1267, %v1170
    %v1288 = vmul.f32 %v1272, %v1170
    %v1289 = vmul.f32 %v1277, %v1170
    %v1290 = vmul.f32 %v1282, %v1170
    %v1291 = vadd.f32 %v1283, 1e-05
    %v1292 = vadd.f32 %v1284, 1e-05
    %v1293 = vadd.f32 %v1285, 1e-05
    %v1294 = vadd.f32 %v1286, 1e-05
    %v1295 = vadd.f32 %v1287, 1e-05
    %v1296 = vadd.f32 %v1288, 1e-05
    %v1297 = vadd.f32 %v1289, 1e-05
    %v1298 = vadd.f32 %v1290, 1e-05
    %v1299 = vrsqrt.pop %v1291
    %v1300 = vrsqrt.pop %v1292
    %v1301 = vrsqrt.pop %v1293
    %v1302 = vrsqrt.pop %v1294
    %v1303 = vrsqrt.pop %v1295
    %v1304 = vrsqrt.pop %v1296
    %v1305 = vrsqrt.pop %v1297
    %v1306 = vrsqrt.pop %v1298
    %v1307 = vmul.f32 %v1179, %v1299
    %v1308 = vmul.f32 %v1180, %v1299
    %v1309 = vmul.f32 %v1181, %v1299
    %v1310 = vmul.f32 %v1182, %v1299
    %v1311 = vmul.f32 %v1183, %v1300
    %v1312 = vmul.f32 %v1184, %v1300
    %v1313 = vmul.f32 %v1185, %v1300
    %v1314 = vmul.f32 %v1186, %v1300
    %v1315 = vmul.f32 %v1187, %v1301
    %v1316 = vmul.f32 %v1188, %v1301
    %v1317 = vmul.f32 %v1189, %v1301
    %v1318 = vmul.f32 %v1190, %v1301
    %v1319 = vmul.f32 %v1191, %v1302
    %v1320 = vmul.f32 %v1192, %v1302
    %v1321 = vmul.f32 %v1193, %v1302
    %v1322 = vmul.f32 %v1194, %v1302
    %v1323 = vmul.f32 %v1195, %v1303
    %v1324 = vmul.f32 %v1196, %v1303
    %v1325 = vmul.f32 %v1197, %v1303
    %v1326 = vmul.f32 %v1198, %v1303
    %v1327 = vmul.f32 %v1199, %v1304
    %v1328 = vmul.f32 %v1200, %v1304
    %v1329 = vmul.f32 %v1201, %v1304
    %v1330 = vmul.f32 %v1202, %v1304
    %v1331 = vmul.f32 %v1203, %v1305
    %v1332 = vmul.f32 %v1204, %v1305
    %v1333 = vmul.f32 %v1205, %v1305
    %v1334 = vmul.f32 %v1206, %v1305
    %v1335 = vmul.f32 %v1207, %v1306
    %v1336 = vmul.f32 %v1208, %v1306
    %v1337 = vmul.f32 %v1209, %v1306
    %v1338 = vmul.f32 %v1210, %v1306
    %v1339 = vlaneseq
    %v1340 = vshrl.u32 %v1339, 7
    %v1341 = vsub.s32 1, %v1340
    %v1342 = vrot.slane %v552, %v1341
    %v1343 = vlaneseq
    %v1344 = vshrl.u32 %v1343, 7
    %v1345 = vsub.s32 5, %v1344
    %v1346 = vrot.slane %v552, %v1345
    %v1347 = vlaneseq
    %v1348 = vshrl.u32 %v1347, 7
    %v1349 = vsub.s32 1, %v1348
    %v1350 = vrot.slane %v553, %v1349
    %v1351 = vlaneseq
    %v1352 = vshrl.u32 %v1351, 7
    %v1353 = vsub.s32 5, %v1352
    %v1354 = vrot.slane %v553, %v1353
    %v1359 = vlaneseq
    %v1360 = vshrl.u32 %v1359, 7
    %v1361 = vsub.s32 1, %v1360
    %v1362 = vrot.slane %v1342, %v1361
    %v1363 = vlaneseq
    %v1364 = vshrl.u32 %v1363, 7
    %v1365 = vsub.s32 1, %v1364
    %v1366 = vrot.slane %v1346, %v1365
    %v1367 = vlaneseq
    %v1368 = vshrl.u32 %v1367, 7
    %v1369 = vsub.s32 1, %v1368
    %v1370 = vrot.slane %v1350, %v1369
    %v1371 = vlaneseq
    %v1372 = vshrl.u32 %v1371, 7
    %v1373 = vsub.s32 1, %v1372
    %v1374 = vrot.slane %v1354, %v1373
    %v1375 = vmul.f32 %v1307, %v1362
    %v1376 = vmul.f32 %v1308, %v1366
    %v1377 = vmul.f32 %v1309, %v1370
    %v1378 = vmul.f32 %v1310, %v1374
    %v1379 = vmul.f32 %v1311, %v1362
    %v1380 = vmul.f32 %v1312, %v1366
    %v1381 = vmul.f32 %v1313, %v1370
    %v1382 = vmul.f32 %v1314, %v1374
    %v1383 = vmul.f32 %v1315, %v1362
    %v1384 = vmul.f32 %v1316, %v1366
    %v1385 = vmul.f32 %v1317, %v1370
    %v1386 = vmul.f32 %v1318, %v1374
    %v1387 = vmul.f32 %v1319, %v1362
    %v1388 = vmul.f32 %v1320, %v1366
    %v1389 = vmul.f32 %v1321, %v1370
    %v1390 = vmul.f32 %v1322, %v1374
    %v1391 = vmul.f32 %v1323, %v1362
    %v1392 = vmul.f32 %v1324, %v1366
    %v1393 = vmul.f32 %v1325, %v1370
    %v1394 = vmul.f32 %v1326, %v1374
    %v1395 = vmul.f32 %v1327, %v1362
    %v1396 = vmul.f32 %v1328, %v1366
    %v1397 = vmul.f32 %v1329, %v1370
    %v1398 = vmul.f32 %v1330, %v1374
    %v1399 = vmul.f32 %v1331, %v1362
    %v1400 = vmul.f32 %v1332, %v1366
    %v1401 = vmul.f32 %v1333, %v1370
    %v1402 = vmul.f32 %v1334, %v1374
    %v1403 = vmul.f32 %v1335, %v1362
    %v1404 = vmul.f32 %v1336, %v1366
    %v1405 = vmul.f32 %v1337, %v1370
    %v1406 = vmul.f32 %v1338, %v1374
    %v1407 = vlaneseq
    %v1408 = vshrl.u32 %v1407, 7
    %v1409 = vsub.s32 2, %v1408
    %v1410 = vrot.slane %v552, %v1409
    %v1411 = vlaneseq
    %v1412 = vshrl.u32 %v1411, 7
    %v1413 = vsub.s32 6, %v1412
    %v1414 = vrot.slane %v552, %v1413
    %v1415 = vlaneseq
    %v1416 = vshrl.u32 %v1415, 7
    %v1417 = vsub.s32 2, %v1416
    %v1418 = vrot.slane %v553, %v1417
    %v1419 = vlaneseq
    %v1420 = vshrl.u32 %v1419, 7
    %v1421 = vsub.s32 6, %v1420
    %v1422 = vrot.slane %v553, %v1421
    %v1427 = vlaneseq
    %v1428 = vshrl.u32 %v1427, 7
    %v1429 = vsub.s32 2, %v1428
    %v1430 = vrot.slane %v1410, %v1429
    %v1431 = vlaneseq
    %v1432 = vshrl.u32 %v1431, 7
    %v1433 = vsub.s32 2, %v1432
    %v1434 = vrot.slane %v1414, %v1433
    %v1435 = vlaneseq
    %v1436 = vshrl.u32 %v1435, 7
    %v1437 = vsub.s32 2, %v1436
    %v1438 = vrot.slane %v1418, %v1437
    %v1439 = vlaneseq
    %v1440 = vshrl.u32 %v1439, 7
    %v1441 = vsub.s32 2, %v1440
    %v1442 = vrot.slane %v1422, %v1441
    %v1443 = vadd.f32 %v1375, %v1430
    %v1444 = vadd.f32 %v1376, %v1434
    %v1445 = vadd.f32 %v1377, %v1438
    %v1446 = vadd.f32 %v1378, %v1442
    %v1447 = vadd.f32 %v1379, %v1430
    %v1448 = vadd.f32 %v1380, %v1434
    %v1449 = vadd.f32 %v1381, %v1438
    %v1450 = vadd.f32 %v1382, %v1442
    %v1451 = vadd.f32 %v1383, %v1430
    %v1452 = vadd.f32 %v1384, %v1434
    %v1453 = vadd.f32 %v1385, %v1438
    %v1454 = vadd.f32 %v1386, %v1442
    %v1455 = vadd.f32 %v1387, %v1430
    %v1456 = vadd.f32 %v1388, %v1434
    %v1457 = vadd.f32 %v1389, %v1438
    %v1458 = vadd.f32 %v1390, %v1442
    %v1459 = vadd.f32 %v1391, %v1430
    %v1460 = vadd.f32 %v1392, %v1434
    %v1461 = vadd.f32 %v1393, %v1438
    %v1462 = vadd.f32 %v1394, %v1442
    %v1463 = vadd.f32 %v1395, %v1430
    %v1464 = vadd.f32 %v1396, %v1434
    %v1465 = vadd.f32 %v1397, %v1438
    %v1466 = vadd.f32 %v1398, %v1442
    %v1467 = vadd.f32 %v1399, %v1430
    %v1468 = vadd.f32 %v1400, %v1434
    %v1469 = vadd.f32 %v1401, %v1438
    %v1470 = vadd.f32 %v1402, %v1442
    %v1471 = vadd.f32 %v1403, %v1430
    %v1472 = vadd.f32 %v1404, %v1434
    %v1473 = vadd.f32 %v1405, %v1438
    %v1474 = vadd.f32 %v1406, %v1442
    %v1475 = vtanh.pop %v1443
    %v1476 = vtanh.pop %v1444
    %v1477 = vtanh.pop %v1445
    %v1478 = vtanh.pop %v1446
    %v1479 = vtanh.pop %v1447
    %v1480 = vtanh.pop %v1448
    %v1481 = vtanh.pop %v1449
    %v1482 = vtanh.pop %v1450
    %v1483 = vtanh.pop %v1451
    %v1484 = vtanh.pop %v1452
    %v1485 = vtanh.pop %v1453
    %v1486 = vtanh.pop %v1454
    %v1487 = vtanh.pop %v1455
    %v1488 = vtanh.pop %v1456
    %v1489 = vtanh.pop %v1457
    %v1490 = vtanh.pop %v1458
    %v1491 = vtanh.pop %v1459
    %v1492 = vtanh.pop %v1460
    %v1493 = vtanh.pop %v1461
    %v1494 = vtanh.pop %v1462
    %v1495 = vtanh.pop %v1463
    %v1496 = vtanh.pop %v1464
    %v1497 = vtanh.pop %v1465
    %v1498 = vtanh.pop %v1466
    %v1499 = vtanh.pop %v1467
    %v1500 = vtanh.pop %v1468
    %v1501 = vtanh.pop %v1469
    %v1502 = vtanh.pop %v1470
    %v1503 = vtanh.pop %v1471
    %v1504 = vtanh.pop %v1472
    %v1505 = vtanh.pop %v1473
    %v1506 = vtanh.pop %v1474
    %v1507 = vld [vmem:[%s6] sm:$0x77]
    %v1508 = vld [vmem:[%s6 + $0x8] sm:$0x77]
    %v1509 = vpack.c.bf16 %v1479, %v1475
    %v1510 = vpack.c.bf16 %v1480, %v1476
    %v1511 = vpack.c.bf16 %v1481, %v1477
    %v1512 = vpack.c.bf16 %v1482, %v1478
    %v1513 = vpack.c.bf16 %v1487, %v1483
    %v1514 = vpack.c.bf16 %v1488, %v1484
    %v1515 = vpack.c.bf16 %v1489, %v1485
    %v1516 = vpack.c.bf16 %v1490, %v1486
    %v1517 = vpack.c.bf16 %v1495, %v1491
    %v1518 = vpack.c.bf16 %v1496, %v1492
    %v1519 = vpack.c.bf16 %v1497, %v1493
    %v1520 = vpack.c.bf16 %v1498, %v1494
    %v1521 = vpack.c.bf16 %v1503, %v1499
    %v1522 = vpack.c.bf16 %v1504, %v1500
    %v1523 = vpack.c.bf16 %v1505, %v1501
    %v1524 = vpack.c.bf16 %v1506, %v1502
    %v1525 = vld [vmem:[#allocation5] sm:$0xff]
    %v1526 = vld [vmem:[#allocation5 + $0x8] sm:$0xff]
    %v1527 = vld [vmem:[#allocation5 + $0x10] sm:$0xff]
    %v1528 = vld [vmem:[#allocation5 + $0x18] sm:$0xff]
    %v1529 = vld [vmem:[#allocation5 + $0x20] sm:$0xff]
    %v1530 = vld [vmem:[#allocation5 + $0x28] sm:$0xff]
    %v1531 = vld [vmem:[#allocation5 + $0x30] sm:$0xff]
    %v1532 = vld [vmem:[#allocation5 + $0x38] sm:$0xff]
    %v1533 = vld [vmem:[#allocation5 + $0x40] sm:$0xff]
    %v1534 = vld [vmem:[#allocation5 + $0x48] sm:$0xff]
    %v1535 = vld [vmem:[#allocation5 + $0x50] sm:$0xff]
    %v1536 = vld [vmem:[#allocation5 + $0x58] sm:$0xff]
    %v1537 = vld [vmem:[#allocation5 + $0x60] sm:$0xff]
    %v1538 = vld [vmem:[#allocation5 + $0x68] sm:$0xff]
    %v1539 = vld [vmem:[#allocation5 + $0x70] sm:$0xff]
    %v1540 = vld [vmem:[#allocation5 + $0x78] sm:$0xff]
    %v1541 = vld [vmem:[#allocation5 + $0x80] sm:$0xff]
    %v1542 = vld [vmem:[#allocation5 + $0x88] sm:$0xff]
    %v1543 = vld [vmem:[#allocation5 + $0x90] sm:$0xff]
    %v1544 = vld [vmem:[#allocation5 + $0x98] sm:$0xff]
    %v1545 = vld [vmem:[#allocation5 + $0xa0] sm:$0xff]
    %v1546 = vld [vmem:[#allocation5 + $0xa8] sm:$0xff]
    %v1547 = vld [vmem:[#allocation5 + $0xb0] sm:$0xff]
    %v1548 = vld [vmem:[#allocation5 + $0xb8] sm:$0xff]
    %v1549 = vld [vmem:[#allocation5 + $0xc0] sm:$0xff]
    %v1550 = vld [vmem:[#allocation5 + $0xc8] sm:$0xff]
    %v1551 = vld [vmem:[#allocation5 + $0xd0] sm:$0xff]
    %v1552 = vld [vmem:[#allocation5 + $0xd8] sm:$0xff]
    %v1553 = vld [vmem:[#allocation5 + $0xe0] sm:$0xff]
    %v1554 = vld [vmem:[#allocation5 + $0xe8] sm:$0xff]
    %v1555 = vld [vmem:[#allocation5 + $0xf0] sm:$0xff]
    %v1556 = vld [vmem:[#allocation5 + $0xf8] sm:$0xff]
    %v1557 = vld [vmem:[#allocation5 + $0x100] sm:$0xff]
    %v1558 = vld [vmem:[#allocation5 + $0x108] sm:$0xff]
    %v1559 = vld [vmem:[#allocation5 + $0x110] sm:$0xff]
    %v1560 = vld [vmem:[#allocation5 + $0x118] sm:$0xff]
    %v1561 = vld [vmem:[#allocation5 + $0x120] sm:$0xff]
    %v1562 = vld [vmem:[#allocation5 + $0x128] sm:$0xff]
    %v1563 = vld [vmem:[#allocation5 + $0x130] sm:$0xff]
    %v1564 = vld [vmem:[#allocation5 + $0x138] sm:$0xff]
    %v1565 = vld [vmem:[#allocation5 + $0x140] sm:$0xff]
    %v1566 = vld [vmem:[#allocation5 + $0x148] sm:$0xff]
    %v1567 = vld [vmem:[#allocation5 + $0x150] sm:$0xff]
    %v1568 = vld [vmem:[#allocation5 + $0x158] sm:$0xff]
    %v1569 = vld [vmem:[#allocation5 + $0x160] sm:$0xff]
    %v1570 = vld [vmem:[#allocation5 + $0x168] sm:$0xff]
    %v1571 = vld [vmem:[#allocation5 + $0x170] sm:$0xff]
    %v1572 = vld [vmem:[#allocation5 + $0x178] sm:$0xff]
    %v1573 = vld [vmem:[#allocation5 + $0x180] sm:$0xff]
    %v1574 = vld [vmem:[#allocation5 + $0x188] sm:$0xff]
    %v1575 = vld [vmem:[#allocation5 + $0x190] sm:$0xff]
    %v1576 = vld [vmem:[#allocation5 + $0x198] sm:$0xff]
    %v1577 = vld [vmem:[#allocation5 + $0x1a0] sm:$0xff]
    %v1578 = vld [vmem:[#allocation5 + $0x1a8] sm:$0xff]
    %v1579 = vld [vmem:[#allocation5 + $0x1b0] sm:$0xff]
    %v1580 = vld [vmem:[#allocation5 + $0x1b8] sm:$0xff]
    %v1581 = vld [vmem:[#allocation5 + $0x1c0] sm:$0xff]
    %v1582 = vld [vmem:[#allocation5 + $0x1c8] sm:$0xff]
    %v1583 = vld [vmem:[#allocation5 + $0x1d0] sm:$0xff]
    %v1584 = vld [vmem:[#allocation5 + $0x1d8] sm:$0xff]
    %v1585 = vld [vmem:[#allocation5 + $0x1e0] sm:$0xff]
    %v1586 = vld [vmem:[#allocation5 + $0x1e8] sm:$0xff]
    %v1587 = vld [vmem:[#allocation5 + $0x1f0] sm:$0xff]
    %v1588 = vld [vmem:[#allocation5 + $0x1f8] sm:$0xff]
    %v1589 = vld [vmem:[#allocation5 + $0x200] sm:$0xff]
    %v1590 = vld [vmem:[#allocation5 + $0x208] sm:$0xff]
    %v1591 = vld [vmem:[#allocation5 + $0x210] sm:$0xff]
    %v1592 = vld [vmem:[#allocation5 + $0x218] sm:$0xff]
    %v1593 = vld [vmem:[#allocation5 + $0x220] sm:$0xff]
    %v1594 = vld [vmem:[#allocation5 + $0x228] sm:$0xff]
    %v1595 = vld [vmem:[#allocation5 + $0x230] sm:$0xff]
    %v1596 = vld [vmem:[#allocation5 + $0x238] sm:$0xff]
    %v1597 = vld [vmem:[#allocation5 + $0x240] sm:$0xff]
    %v1598 = vld [vmem:[#allocation5 + $0x248] sm:$0xff]
    %v1599 = vld [vmem:[#allocation5 + $0x250] sm:$0xff]
    %v1600 = vld [vmem:[#allocation5 + $0x258] sm:$0xff]
    %v1601 = vld [vmem:[#allocation5 + $0x260] sm:$0xff]
    %v1602 = vld [vmem:[#allocation5 + $0x268] sm:$0xff]
    %v1603 = vld [vmem:[#allocation5 + $0x270] sm:$0xff]
    %v1604 = vld [vmem:[#allocation5 + $0x278] sm:$0xff]
    %v1605 = vld [vmem:[#allocation5 + $0x280] sm:$0xff]
    %v1606 = vld [vmem:[#allocation5 + $0x288] sm:$0xff]
    %v1607 = vld [vmem:[#allocation5 + $0x290] sm:$0xff]
    %v1608 = vld [vmem:[#allocation5 + $0x298] sm:$0xff]
    %v1609 = vld [vmem:[#allocation5 + $0x2a0] sm:$0xff]
    %v1610 = vld [vmem:[#allocation5 + $0x2a8] sm:$0xff]
    %v1611 = vld [vmem:[#allocation5 + $0x2b0] sm:$0xff]
    %v1612 = vld [vmem:[#allocation5 + $0x2b8] sm:$0xff]
    %v1613 = vld [vmem:[#allocation5 + $0x2c0] sm:$0xff]
    %v1614 = vld [vmem:[#allocation5 + $0x2c8] sm:$0xff]
    %v1615 = vld [vmem:[#allocation5 + $0x2d0] sm:$0xff]
    %v1616 = vld [vmem:[#allocation5 + $0x2d8] sm:$0xff]
    %v1617 = vld [vmem:[#allocation5 + $0x2e0] sm:$0xff]
    %v1618 = vld [vmem:[#allocation5 + $0x2e8] sm:$0xff]
    %v1619 = vld [vmem:[#allocation5 + $0x2f0] sm:$0xff]
    %v1620 = vld [vmem:[#allocation5 + $0x2f8] sm:$0xff]
    %v1621 = vld [vmem:[#allocation5 + $0x300] sm:$0xff]
    %v1622 = vld [vmem:[#allocation5 + $0x308] sm:$0xff]
    %v1623 = vld [vmem:[#allocation5 + $0x310] sm:$0xff]
    %v1624 = vld [vmem:[#allocation5 + $0x318] sm:$0xff]
    %v1625 = vld [vmem:[#allocation5 + $0x320] sm:$0xff]
    %v1626 = vld [vmem:[#allocation5 + $0x328] sm:$0xff]
    %v1627 = vld [vmem:[#allocation5 + $0x330] sm:$0xff]
    %v1628 = vld [vmem:[#allocation5 + $0x338] sm:$0xff]
    %v1629 = vld [vmem:[#allocation5 + $0x340] sm:$0xff]
    %v1630 = vld [vmem:[#allocation5 + $0x348] sm:$0xff]
    %v1631 = vld [vmem:[#allocation5 + $0x350] sm:$0xff]
    %v1632 = vld [vmem:[#allocation5 + $0x358] sm:$0xff]
    %v1633 = vld [vmem:[#allocation5 + $0x360] sm:$0xff]
    %v1634 = vld [vmem:[#allocation5 + $0x368] sm:$0xff]
    %v1635 = vld [vmem:[#allocation5 + $0x370] sm:$0xff]
    %v1636 = vld [vmem:[#allocation5 + $0x378] sm:$0xff]
    %v1637 = vld [vmem:[#allocation5 + $0x380] sm:$0xff]
    %v1638 = vld [vmem:[#allocation5 + $0x388] sm:$0xff]
    %v1639 = vld [vmem:[#allocation5 + $0x390] sm:$0xff]
    %v1640 = vld [vmem:[#allocation5 + $0x398] sm:$0xff]
    %v1641 = vld [vmem:[#allocation5 + $0x3a0] sm:$0xff]
    %v1642 = vld [vmem:[#allocation5 + $0x3a8] sm:$0xff]
    %v1643 = vld [vmem:[#allocation5 + $0x3b0] sm:$0xff]
    %v1644 = vld [vmem:[#allocation5 + $0x3b8] sm:$0xff]
    %v1645 = vld [vmem:[#allocation5 + $0x3c0] sm:$0xff]
    %v1646 = vld [vmem:[#allocation5 + $0x3c8] sm:$0xff]
    %v1647 = vld [vmem:[#allocation5 + $0x3d0] sm:$0xff]
    %v1648 = vld [vmem:[#allocation5 + $0x3d8] sm:$0xff]
    %v1649 = vld [vmem:[#allocation5 + $0x3e0] sm:$0xff]
    %v1650 = vld [vmem:[#allocation5 + $0x3e8] sm:$0xff]
    %v1651 = vld [vmem:[#allocation5 + $0x3f0] sm:$0xff]
    %v1652 = vld [vmem:[#allocation5 + $0x3f8] sm:$0xff]
    %v1655 = vlaneseq
    %v1656 = vshrl.u32 %v1655, 7
    %v1657 = vsub.s32 0, %v1656
    %v1658 = vrot.slane %v1507, %v1657
    %v1659 = vlaneseq
    %v1660 = vshrl.u32 %v1659, 7
    %v1661 = vsub.s32 4, %v1660
    %v1662 = vrot.slane %v1507, %v1661
    %v1663 = vlaneseq
    %v1664 = vshrl.u32 %v1663, 7
    %v1665 = vsub.s32 0, %v1664
    %v1666 = vrot.slane %v1508, %v1665
    %v1667 = vlaneseq
    %v1668 = vshrl.u32 %v1667, 7
    %v1669 = vsub.s32 4, %v1668
    %v1670 = vrot.slane %v1508, %v1669
    %v1675 = vlaneseq
    %v1676 = vshrl.u32 %v1675, 7
    %v1677 = vsub.s32 0, %v1676
    %v1678 = vrot.slane %v1658, %v1677
    %v1679 = vlaneseq
    %v1680 = vshrl.u32 %v1679, 7
    %v1681 = vsub.s32 0, %v1680
    %v1682 = vrot.slane %v1662, %v1681
    %v1683 = vlaneseq
    %v1684 = vshrl.u32 %v1683, 7
    %v1685 = vsub.s32 0, %v1684
    %v1686 = vrot.slane %v1666, %v1685
    %v1687 = vlaneseq
    %v1688 = vshrl.u32 %v1687, 7
    %v1689 = vsub.s32 0, %v1688
    %v1690 = vrot.slane %v1670, %v1689
    %v1819 = vunpack.c.l.b16 %v1525
    %v1820 = vunpack.c.h.b16 %v1525
    %v1821 = vunpack.c.l.b16 %v1526
    %v1822 = vunpack.c.h.b16 %v1526
    %v1823 = vunpack.c.l.b16 %v1527
    %v1824 = vunpack.c.h.b16 %v1527
    %v1825 = vunpack.c.l.b16 %v1528
    %v1826 = vunpack.c.h.b16 %v1528
    %v1827 = vunpack.c.l.b16 %v1529
    %v1828 = vunpack.c.h.b16 %v1529
    %v1829 = vunpack.c.l.b16 %v1530
    %v1830 = vunpack.c.h.b16 %v1530
    %v1831 = vunpack.c.l.b16 %v1531
    %v1832 = vunpack.c.h.b16 %v1531
    %v1833 = vunpack.c.l.b16 %v1532
    %v1834 = vunpack.c.h.b16 %v1532
    %v1835 = vunpack.c.l.b16 %v1533
    %v1836 = vunpack.c.h.b16 %v1533
    %v1837 = vunpack.c.l.b16 %v1534
    %v1838 = vunpack.c.h.b16 %v1534
    %v1839 = vunpack.c.l.b16 %v1535
    %v1840 = vunpack.c.h.b16 %v1535
    %v1841 = vunpack.c.l.b16 %v1536
    %v1842 = vunpack.c.h.b16 %v1536
    %v1843 = vunpack.c.l.b16 %v1537
    %v1844 = vunpack.c.h.b16 %v1537
    %v1845 = vunpack.c.l.b16 %v1538
    %v1846 = vunpack.c.h.b16 %v1538
    %v1847 = vunpack.c.l.b16 %v1539
    %v1848 = vunpack.c.h.b16 %v1539
    %v1849 = vunpack.c.l.b16 %v1540
    %v1850 = vunpack.c.h.b16 %v1540
    %v1851 = vunpack.c.l.b16 %v1541
    %v1852 = vunpack.c.h.b16 %v1541
    %v1853 = vunpack.c.l.b16 %v1542
    %v1854 = vunpack.c.h.b16 %v1542
    %v1855 = vunpack.c.l.b16 %v1543
    %v1856 = vunpack.c.h.b16 %v1543
    %v1857 = vunpack.c.l.b16 %v1544
    %v1858 = vunpack.c.h.b16 %v1544
    %v1859 = vunpack.c.l.b16 %v1545
    %v1860 = vunpack.c.h.b16 %v1545
    %v1861 = vunpack.c.l.b16 %v1546
    %v1862 = vunpack.c.h.b16 %v1546
    %v1863 = vunpack.c.l.b16 %v1547
    %v1864 = vunpack.c.h.b16 %v1547
    %v1865 = vunpack.c.l.b16 %v1548
    %v1866 = vunpack.c.h.b16 %v1548
    %v1867 = vunpack.c.l.b16 %v1549
    %v1868 = vunpack.c.h.b16 %v1549
    %v1869 = vunpack.c.l.b16 %v1550
    %v1870 = vunpack.c.h.b16 %v1550
    %v1871 = vunpack.c.l.b16 %v1551
    %v1872 = vunpack.c.h.b16 %v1551
    %v1873 = vunpack.c.l.b16 %v1552
    %v1874 = vunpack.c.h.b16 %v1552
    %v1875 = vunpack.c.l.b16 %v1553
    %v1876 = vunpack.c.h.b16 %v1553
    %v1877 = vunpack.c.l.b16 %v1554
    %v1878 = vunpack.c.h.b16 %v1554
    %v1879 = vunpack.c.l.b16 %v1555
    %v1880 = vunpack.c.h.b16 %v1555
    %v1881 = vunpack.c.l.b16 %v1556
    %v1882 = vunpack.c.h.b16 %v1556
    %v1883 = vunpack.c.l.b16 %v1557
    %v1884 = vunpack.c.h.b16 %v1557
    %v1885 = vunpack.c.l.b16 %v1558
    %v1886 = vunpack.c.h.b16 %v1558
    %v1887 = vunpack.c.l.b16 %v1559
    %v1888 = vunpack.c.h.b16 %v1559
    %v1889 = vunpack.c.l.b16 %v1560
    %v1890 = vunpack.c.h.b16 %v1560
    %v1891 = vunpack.c.l.b16 %v1561
    %v1892 = vunpack.c.h.b16 %v1561
    %v1893 = vunpack.c.l.b16 %v1562
    %v1894 = vunpack.c.h.b16 %v1562
    %v1895 = vunpack.c.l.b16 %v1563
    %v1896 = vunpack.c.h.b16 %v1563
    %v1897 = vunpack.c.l.b16 %v1564
    %v1898 = vunpack.c.h.b16 %v1564
    %v1899 = vunpack.c.l.b16 %v1565
    %v1900 = vunpack.c.h.b16 %v1565
    %v1901 = vunpack.c.l.b16 %v1566
    %v1902 = vunpack.c.h.b16 %v1566
    %v1903 = vunpack.c.l.b16 %v1567
    %v1904 = vunpack.c.h.b16 %v1567
    %v1905 = vunpack.c.l.b16 %v1568
    %v1906 = vunpack.c.h.b16 %v1568
    %v1907 = vunpack.c.l.b16 %v1569
    %v1908 = vunpack.c.h.b16 %v1569
    %v1909 = vunpack.c.l.b16 %v1570
    %v1910 = vunpack.c.h.b16 %v1570
    %v1911 = vunpack.c.l.b16 %v1571
    %v1912 = vunpack.c.h.b16 %v1571
    %v1913 = vunpack.c.l.b16 %v1572
    %v1914 = vunpack.c.h.b16 %v1572
    %v1915 = vunpack.c.l.b16 %v1573
    %v1916 = vunpack.c.h.b16 %v1573
    %v1917 = vunpack.c.l.b16 %v1574
    %v1918 = vunpack.c.h.b16 %v1574
    %v1919 = vunpack.c.l.b16 %v1575
    %v1920 = vunpack.c.h.b16 %v1575
    %v1921 = vunpack.c.l.b16 %v1576
    %v1922 = vunpack.c.h.b16 %v1576
    %v1923 = vunpack.c.l.b16 %v1577
    %v1924 = vunpack.c.h.b16 %v1577
    %v1925 = vunpack.c.l.b16 %v1578
    %v1926 = vunpack.c.h.b16 %v1578
    %v1927 = vunpack.c.l.b16 %v1579
    %v1928 = vunpack.c.h.b16 %v1579
    %v1929 = vunpack.c.l.b16 %v1580
    %v1930 = vunpack.c.h.b16 %v1580
    %v1931 = vunpack.c.l.b16 %v1581
    %v1932 = vunpack.c.h.b16 %v1581
    %v1933 = vunpack.c.l.b16 %v1582
    %v1934 = vunpack.c.h.b16 %v1582
    %v1935 = vunpack.c.l.b16 %v1583
    %v1936 = vunpack.c.h.b16 %v1583
    %v1937 = vunpack.c.l.b16 %v1584
    %v1938 = vunpack.c.h.b16 %v1584
    %v1939 = vunpack.c.l.b16 %v1585
    %v1940 = vunpack.c.h.b16 %v1585
    %v1941 = vunpack.c.l.b16 %v1586
    %v1942 = vunpack.c.h.b16 %v1586
    %v1943 = vunpack.c.l.b16 %v1587
    %v1944 = vunpack.c.h.b16 %v1587
    %v1945 = vunpack.c.l.b16 %v1588
    %v1946 = vunpack.c.h.b16 %v1588
    %v1947 = vunpack.c.l.b16 %v1589
    %v1948 = vunpack.c.h.b16 %v1589
    %v1949 = vunpack.c.l.b16 %v1590
    %v1950 = vunpack.c.h.b16 %v1590
    %v1951 = vunpack.c.l.b16 %v1591
    %v1952 = vunpack.c.h.b16 %v1591
    %v1953 = vunpack.c.l.b16 %v1592
    %v1954 = vunpack.c.h.b16 %v1592
    %v1955 = vunpack.c.l.b16 %v1593
    %v1956 = vunpack.c.h.b16 %v1593
    %v1957 = vunpack.c.l.b16 %v1594
    %v1958 = vunpack.c.h.b16 %v1594
    %v1959 = vunpack.c.l.b16 %v1595
    %v1960 = vunpack.c.h.b16 %v1595
    %v1961 = vunpack.c.l.b16 %v1596
    %v1962 = vunpack.c.h.b16 %v1596
    %v1963 = vunpack.c.l.b16 %v1597
    %v1964 = vunpack.c.h.b16 %v1597
    %v1965 = vunpack.c.l.b16 %v1598
    %v1966 = vunpack.c.h.b16 %v1598
    %v1967 = vunpack.c.l.b16 %v1599
    %v1968 = vunpack.c.h.b16 %v1599
    %v1969 = vunpack.c.l.b16 %v1600
    %v1970 = vunpack.c.h.b16 %v1600
    %v1971 = vunpack.c.l.b16 %v1601
    %v1972 = vunpack.c.h.b16 %v1601
    %v1973 = vunpack.c.l.b16 %v1602
    %v1974 = vunpack.c.h.b16 %v1602
    %v1975 = vunpack.c.l.b16 %v1603
    %v1976 = vunpack.c.h.b16 %v1603
    %v1977 = vunpack.c.l.b16 %v1604
    %v1978 = vunpack.c.h.b16 %v1604
    %v1979 = vunpack.c.l.b16 %v1605
    %v1980 = vunpack.c.h.b16 %v1605
    %v1981 = vunpack.c.l.b16 %v1606
    %v1982 = vunpack.c.h.b16 %v1606
    %v1983 = vunpack.c.l.b16 %v1607
    %v1984 = vunpack.c.h.b16 %v1607
    %v1985 = vunpack.c.l.b16 %v1608
    %v1986 = vunpack.c.h.b16 %v1608
    %v1987 = vunpack.c.l.b16 %v1609
    %v1988 = vunpack.c.h.b16 %v1609
    %v1989 = vunpack.c.l.b16 %v1610
    %v1990 = vunpack.c.h.b16 %v1610
    %v1991 = vunpack.c.l.b16 %v1611
    %v1992 = vunpack.c.h.b16 %v1611
    %v1993 = vunpack.c.l.b16 %v1612
    %v1994 = vunpack.c.h.b16 %v1612
    %v1995 = vunpack.c.l.b16 %v1613
    %v1996 = vunpack.c.h.b16 %v1613
    %v1997 = vunpack.c.l.b16 %v1614
    %v1998 = vunpack.c.h.b16 %v1614
    %v1999 = vunpack.c.l.b16 %v1615
    %v2000 = vunpack.c.h.b16 %v1615
    %v2001 = vunpack.c.l.b16 %v1616
    %v2002 = vunpack.c.h.b16 %v1616
    %v2003 = vunpack.c.l.b16 %v1617
    %v2004 = vunpack.c.h.b16 %v1617
    %v2005 = vunpack.c.l.b16 %v1618
    %v2006 = vunpack.c.h.b16 %v1618
    %v2007 = vunpack.c.l.b16 %v1619
    %v2008 = vunpack.c.h.b16 %v1619
    %v2009 = vunpack.c.l.b16 %v1620
    %v2010 = vunpack.c.h.b16 %v1620
    %v2011 = vunpack.c.l.b16 %v1621
    %v2012 = vunpack.c.h.b16 %v1621
    %v2013 = vunpack.c.l.b16 %v1622
    %v2014 = vunpack.c.h.b16 %v1622
    %v2015 = vunpack.c.l.b16 %v1623
    %v2016 = vunpack.c.h.b16 %v1623
    %v2017 = vunpack.c.l.b16 %v1624
    %v2018 = vunpack.c.h.b16 %v1624
    %v2019 = vunpack.c.l.b16 %v1625
    %v2020 = vunpack.c.h.b16 %v1625
    %v2021 = vunpack.c.l.b16 %v1626
    %v2022 = vunpack.c.h.b16 %v1626
    %v2023 = vunpack.c.l.b16 %v1627
    %v2024 = vunpack.c.h.b16 %v1627
    %v2025 = vunpack.c.l.b16 %v1628
    %v2026 = vunpack.c.h.b16 %v1628
    %v2027 = vunpack.c.l.b16 %v1629
    %v2028 = vunpack.c.h.b16 %v1629
    %v2029 = vunpack.c.l.b16 %v1630
    %v2030 = vunpack.c.h.b16 %v1630
    %v2031 = vunpack.c.l.b16 %v1631
    %v2032 = vunpack.c.h.b16 %v1631
    %v2033 = vunpack.c.l.b16 %v1632
    %v2034 = vunpack.c.h.b16 %v1632
    %v2035 = vunpack.c.l.b16 %v1633
    %v2036 = vunpack.c.h.b16 %v1633
    %v2037 = vunpack.c.l.b16 %v1634
    %v2038 = vunpack.c.h.b16 %v1634
    %v2039 = vunpack.c.l.b16 %v1635
    %v2040 = vunpack.c.h.b16 %v1635
    %v2041 = vunpack.c.l.b16 %v1636
    %v2042 = vunpack.c.h.b16 %v1636
    %v2043 = vunpack.c.l.b16 %v1637
    %v2044 = vunpack.c.h.b16 %v1637
    %v2045 = vunpack.c.l.b16 %v1638
    %v2046 = vunpack.c.h.b16 %v1638
    %v2047 = vunpack.c.l.b16 %v1639
    %v2048 = vunpack.c.h.b16 %v1639
    %v2049 = vunpack.c.l.b16 %v1640
    %v2050 = vunpack.c.h.b16 %v1640
    %v2051 = vunpack.c.l.b16 %v1641
    %v2052 = vunpack.c.h.b16 %v1641
    %v2053 = vunpack.c.l.b16 %v1642
    %v2054 = vunpack.c.h.b16 %v1642
    %v2055 = vunpack.c.l.b16 %v1643
    %v2056 = vunpack.c.h.b16 %v1643
    %v2057 = vunpack.c.l.b16 %v1644
    %v2058 = vunpack.c.h.b16 %v1644
    %v2059 = vunpack.c.l.b16 %v1645
    %v2060 = vunpack.c.h.b16 %v1645
    %v2061 = vunpack.c.l.b16 %v1646
    %v2062 = vunpack.c.h.b16 %v1646
    %v2063 = vunpack.c.l.b16 %v1647
    %v2064 = vunpack.c.h.b16 %v1647
    %v2065 = vunpack.c.l.b16 %v1648
    %v2066 = vunpack.c.h.b16 %v1648
    %v2067 = vunpack.c.l.b16 %v1649
    %v2068 = vunpack.c.h.b16 %v1649
    %v2069 = vunpack.c.l.b16 %v1650
    %v2070 = vunpack.c.h.b16 %v1650
    %v2071 = vunpack.c.l.b16 %v1651
    %v2072 = vunpack.c.h.b16 %v1651
    %v2073 = vunpack.c.l.b16 %v1652
    %v2074 = vunpack.c.h.b16 %v1652
    %v2075 = vpack.c.b16 %v1823, %v1819
    %v2076 = vpack.c.b16 %v1824, %v1820
    %v2077 = vpack.c.b16 %v1825, %v1821
    %v2078 = vpack.c.b16 %v1826, %v1822
    %v2079 = vpack.c.b16 %v1831, %v1827
    %v2080 = vpack.c.b16 %v1832, %v1828
    %v2081 = vpack.c.b16 %v1833, %v1829
    %v2082 = vpack.c.b16 %v1834, %v1830
    %v2083 = vpack.c.b16 %v1839, %v1835
    %v2084 = vpack.c.b16 %v1840, %v1836
    %v2085 = vpack.c.b16 %v1841, %v1837
    %v2086 = vpack.c.b16 %v1842, %v1838
    %v2087 = vpack.c.b16 %v1847, %v1843
    %v2088 = vpack.c.b16 %v1848, %v1844
    %v2089 = vpack.c.b16 %v1849, %v1845
    %v2090 = vpack.c.b16 %v1850, %v1846
    %v2091 = vpack.c.b16 %v1855, %v1851
    %v2092 = vpack.c.b16 %v1856, %v1852
    %v2093 = vpack.c.b16 %v1857, %v1853
    %v2094 = vpack.c.b16 %v1858, %v1854
    %v2095 = vpack.c.b16 %v1863, %v1859
    %v2096 = vpack.c.b16 %v1864, %v1860
    %v2097 = vpack.c.b16 %v1865, %v1861
    %v2098 = vpack.c.b16 %v1866, %v1862
    %v2099 = vpack.c.b16 %v1871, %v1867
    %v2100 = vpack.c.b16 %v1872, %v1868
    %v2101 = vpack.c.b16 %v1873, %v1869
    %v2102 = vpack.c.b16 %v1874, %v1870
    %v2103 = vpack.c.b16 %v1879, %v1875
    %v2104 = vpack.c.b16 %v1880, %v1876
    %v2105 = vpack.c.b16 %v1881, %v1877
    %v2106 = vpack.c.b16 %v1882, %v1878
    %v2107 = vpack.c.b16 %v1887, %v1883
    %v2108 = vpack.c.b16 %v1888, %v1884
    %v2109 = vpack.c.b16 %v1889, %v1885
    %v2110 = vpack.c.b16 %v1890, %v1886
    %v2111 = vpack.c.b16 %v1895, %v1891
    %v2112 = vpack.c.b16 %v1896, %v1892
    %v2113 = vpack.c.b16 %v1897, %v1893
    %v2114 = vpack.c.b16 %v1898, %v1894
    %v2115 = vpack.c.b16 %v1903, %v1899
    %v2116 = vpack.c.b16 %v1904, %v1900
    %v2117 = vpack.c.b16 %v1905, %v1901
    %v2118 = vpack.c.b16 %v1906, %v1902
    %v2119 = vpack.c.b16 %v1911, %v1907
    %v2120 = vpack.c.b16 %v1912, %v1908
    %v2121 = vpack.c.b16 %v1913, %v1909
    %v2122 = vpack.c.b16 %v1914, %v1910
    %v2123 = vpack.c.b16 %v1919, %v1915
    %v2124 = vpack.c.b16 %v1920, %v1916
    %v2125 = vpack.c.b16 %v1921, %v1917
    %v2126 = vpack.c.b16 %v1922, %v1918
    %v2127 = vpack.c.b16 %v1927, %v1923
    %v2128 = vpack.c.b16 %v1928, %v1924
    %v2129 = vpack.c.b16 %v1929, %v1925
    %v2130 = vpack.c.b16 %v1930, %v1926
    %v2131 = vpack.c.b16 %v1935, %v1931
    %v2132 = vpack.c.b16 %v1936, %v1932
    %v2133 = vpack.c.b16 %v1937, %v1933
    %v2134 = vpack.c.b16 %v1938, %v1934
    %v2135 = vpack.c.b16 %v1943, %v1939
    %v2136 = vpack.c.b16 %v1944, %v1940
    %v2137 = vpack.c.b16 %v1945, %v1941
    %v2138 = vpack.c.b16 %v1946, %v1942
    %v2139 = vpack.c.b16 %v1951, %v1947
    %v2140 = vpack.c.b16 %v1952, %v1948
    %v2141 = vpack.c.b16 %v1953, %v1949
    %v2142 = vpack.c.b16 %v1954, %v1950
    %v2143 = vpack.c.b16 %v1959, %v1955
    %v2144 = vpack.c.b16 %v1960, %v1956
    %v2145 = vpack.c.b16 %v1961, %v1957
    %v2146 = vpack.c.b16 %v1962, %v1958
    %v2147 = vpack.c.b16 %v1967, %v1963
    %v2148 = vpack.c.b16 %v1968, %v1964
    %v2149 = vpack.c.b16 %v1969, %v1965
    %v2150 = vpack.c.b16 %v1970, %v1966
    %v2151 = vpack.c.b16 %v1975, %v1971
    %v2152 = vpack.c.b16 %v1976, %v1972
    %v2153 = vpack.c.b16 %v1977, %v1973
    %v2154 = vpack.c.b16 %v1978, %v1974
    %v2155 = vpack.c.b16 %v1983, %v1979
    %v2156 = vpack.c.b16 %v1984, %v1980
    %v2157 = vpack.c.b16 %v1985, %v1981
    %v2158 = vpack.c.b16 %v1986, %v1982
    %v2159 = vpack.c.b16 %v1991, %v1987
    %v2160 = vpack.c.b16 %v1992, %v1988
    %v2161 = vpack.c.b16 %v1993, %v1989
    %v2162 = vpack.c.b16 %v1994, %v1990
    %v2163 = vpack.c.b16 %v1999, %v1995
    %v2164 = vpack.c.b16 %v2000, %v1996
    %v2165 = vpack.c.b16 %v2001, %v1997
    %v2166 = vpack.c.b16 %v2002, %v1998
    %v2167 = vpack.c.b16 %v2007, %v2003
    %v2168 = vpack.c.b16 %v2008, %v2004
    %v2169 = vpack.c.b16 %v2009, %v2005
    %v2170 = vpack.c.b16 %v2010, %v2006
    %v2171 = vpack.c.b16 %v2015, %v2011
    %v2172 = vpack.c.b16 %v2016, %v2012
    %v2173 = vpack.c.b16 %v2017, %v2013
    %v2174 = vpack.c.b16 %v2018, %v2014
    %v2175 = vpack.c.b16 %v2023, %v2019
    %v2176 = vpack.c.b16 %v2024, %v2020
    %v2177 = vpack.c.b16 %v2025, %v2021
    %v2178 = vpack.c.b16 %v2026, %v2022
    %v2179 = vpack.c.b16 %v2031, %v2027
    %v2180 = vpack.c.b16 %v2032, %v2028
    %v2181 = vpack.c.b16 %v2033, %v2029
    %v2182 = vpack.c.b16 %v2034, %v2030
    %v2183 = vpack.c.b16 %v2039, %v2035
    %v2184 = vpack.c.b16 %v2040, %v2036
    %v2185 = vpack.c.b16 %v2041, %v2037
    %v2186 = vpack.c.b16 %v2042, %v2038
    %v2187 = vpack.c.b16 %v2047, %v2043
    %v2188 = vpack.c.b16 %v2048, %v2044
    %v2189 = vpack.c.b16 %v2049, %v2045
    %v2190 = vpack.c.b16 %v2050, %v2046
    %v2191 = vpack.c.b16 %v2055, %v2051
    %v2192 = vpack.c.b16 %v2056, %v2052
    %v2193 = vpack.c.b16 %v2057, %v2053
    %v2194 = vpack.c.b16 %v2058, %v2054
    %v2195 = vpack.c.b16 %v2063, %v2059
    %v2196 = vpack.c.b16 %v2064, %v2060
    %v2197 = vpack.c.b16 %v2065, %v2061
    %v2198 = vpack.c.b16 %v2066, %v2062
    %v2199 = vpack.c.b16 %v2071, %v2067
    %v2200 = vpack.c.b16 %v2072, %v2068
    %v2201 = vpack.c.b16 %v2073, %v2069
    %v2202 = vpack.c.b16 %v2074, %v2070
    %2331 = vmatprep.subr.bf16.mxu0 %v2076
    %2332 = vmatpush1.bf16.msra.mxu0 %v2075
    %2333 = vmatprep.subr.bf16.mxu0 %v2080
    %2334 = vmatpush1.bf16.msra.mxu0 %v2079
    %2335 = vmatprep.subr.bf16.mxu0 %v2084
    %2336 = vmatpush1.bf16.msra.mxu0 %v2083
    %2337 = vmatprep.subr.bf16.mxu0 %v2088
    %2338 = vmatpush1.bf16.msra.mxu0 %v2087
    %2339 = vmatprep.subr.bf16.mxu0 %v2092
    %2340 = vmatpush1.bf16.msra.mxu0 %v2091
    %2341 = vmatprep.subr.bf16.mxu0 %v2096
    %2342 = vmatpush1.bf16.msra.mxu0 %v2095
    %2343 = vmatprep.subr.bf16.mxu0 %v2100
    %2344 = vmatpush1.bf16.msra.mxu0 %v2099
    %2345 = vmatprep.subr.bf16.mxu0 %v2104
    %2346 = vmatpush1.bf16.msra.mxu0 %v2103
    %2347 = vmatprep.subr.bf16.mxu0 %v2108
    %2348 = vmatpush1.bf16.msra.mxu0 %v2107
    %2349 = vmatprep.subr.bf16.mxu0 %v2112
    %2350 = vmatpush1.bf16.msra.mxu0 %v2111
    %2351 = vmatprep.subr.bf16.mxu0 %v2116
    %2352 = vmatpush1.bf16.msra.mxu0 %v2115
    %2353 = vmatprep.subr.bf16.mxu0 %v2120
    %2354 = vmatpush1.bf16.msra.mxu0 %v2119
    %2355 = vmatprep.subr.bf16.mxu0 %v2124
    %2356 = vmatpush1.bf16.msra.mxu0 %v2123
    %2357 = vmatprep.subr.bf16.mxu0 %v2128
    %2358 = vmatpush1.bf16.msra.mxu0 %v2127
    %2359 = vmatprep.subr.bf16.mxu0 %v2132
    %2360 = vmatpush1.bf16.msra.mxu0 %v2131
    %2361 = vmatprep.subr.bf16.mxu0 %v2136
    %2362 = vmatpush1.bf16.msra.mxu0 %v2135
    %2363 = vmatprep.mubr.bf16.mxu0 %v1510
    %2364 = vmatmul.mubr.bf16.gmra.mrb[0].mxu0 %v1509
    %v2365 = vpop.f32.mrb[0].mxu0
    %v2366 = vadd.f32 %v1678, %v2365
    %v2367 = vpop.f32.mrb[0].mxu0
    %v2368 = vadd.f32 %v1682, %v2367
    %v2369 = vpop.f32.mrb[0].mxu0
    %v2370 = vadd.f32 %v1678, %v2369
    %v2371 = vpop.f32.mrb[0].mxu0
    %v2372 = vadd.f32 %v1682, %v2371
    %2373 = vmatprep.mubr.bf16.mxu0 %v1514
    %2374 = vmatmul.mubr.bf16.gmra.mrb[0].mxu0 %v1513
    %v2375 = vpop.f32.mrb[0].mxu0
    %v2376 = vadd.f32 %v1678, %v2375
    %v2377 = vpop.f32.mrb[0].mxu0
    %v2378 = vadd.f32 %v1682, %v2377
    %v2379 = vpop.f32.mrb[0].mxu0
    %v2380 = vadd.f32 %v1678, %v2379
    %v2381 = vpop.f32.mrb[0].mxu0
    %v2382 = vadd.f32 %v1682, %v2381
    %2383 = vmatprep.mubr.bf16.mxu0 %v1518
    %2384 = vmatmul.mubr.bf16.gmra.mrb[0].mxu0 %v1517
    %v2385 = vpop.f32.mrb[0].mxu0
    %v2386 = vadd.f32 %v1678, %v2385
    %v2387 = vpop.f32.mrb[0].mxu0
    %v2388 = vadd.f32 %v1682, %v2387
    %v2389 = vpop.f32.mrb[0].mxu0
    %v2390 = vadd.f32 %v1678, %v2389
    %v2391 = vpop.f32.mrb[0].mxu0
    %v2392 = vadd.f32 %v1682, %v2391
    %2393 = vmatprep.mubr.bf16.mxu0 %v1522
    %2394 = vmatmul.mubr.bf16.gmra.mrb[0].mxu0 %v1521
    %v2395 = vpop.f32.mrb[0].mxu0
    %v2396 = vadd.f32 %v1678, %v2395
    %v2397 = vpop.f32.mrb[0].mxu0
    %v2398 = vadd.f32 %v1682, %v2397
    %v2399 = vpop.f32.mrb[0].mxu0
    %v2400 = vadd.f32 %v1678, %v2399
    %v2401 = vpop.f32.mrb[0].mxu0
    %v2402 = vadd.f32 %v1682, %v2401
    %2403 = vdwg.mxu0
    %2404 = vmatprep.subr.bf16.mxu0 %v2140
    %2405 = vmatpush1.bf16.msra.mxu0 %v2139
    %2406 = vmatprep.subr.bf16.mxu0 %v2144
    %2407 = vmatpush1.bf16.msra.mxu0 %v2143
    %2408 = vmatprep.subr.bf16.mxu0 %v2148
    %2409 = vmatpush1.bf16.msra.mxu0 %v2147
    %2410 = vmatprep.subr.bf16.mxu0 %v2152
    %2411 = vmatpush1.bf16.msra.mxu0 %v2151
    %2412 = vmatprep.subr.bf16.mxu0 %v2156
    %2413 = vmatpush1.bf16.msra.mxu0 %v2155
    %2414 = vmatprep.subr.bf16.mxu0 %v2160
    %2415 = vmatpush1.bf16.msra.mxu0 %v2159
    %2416 = vmatprep.subr.bf16.mxu0 %v2164
    %2417 = vmatpush1.bf16.msra.mxu0 %v2163
    %2418 = vmatprep.subr.bf16.mxu0 %v2168
    %2419 = vmatpush1.bf16.msra.mxu0 %v2167
    %2420 = vmatprep.subr.bf16.mxu0 %v2172
    %2421 = vmatpush1.bf16.msra.mxu0 %v2171
    %2422 = vmatprep.subr.bf16.mxu0 %v2176
    %2423 = vmatpush1.bf16.msra.mxu0 %v2175
    %2424 = vmatprep.subr.bf16.mxu0 %v2180
    %2425 = vmatpush1.bf16.msra.mxu0 %v2179
    %2426 = vmatprep.subr.bf16.mxu0 %v2184
    %2427 = vmatpush1.bf16.msra.mxu0 %v2183
    %2428 = vmatprep.subr.bf16.mxu0 %v2188
    %2429 = vmatpush1.bf16.msra.mxu0 %v2187
    %2430 = vmatprep.subr.bf16.mxu0 %v2192
    %2431 = vmatpush1.bf16.msra.mxu0 %v2191
    %2432 = vmatprep.subr.bf16.mxu0 %v2196
    %2433 = vmatpush1.bf16.msra.mxu0 %v2195
    %2434 = vmatprep.subr.bf16.mxu0 %v2200
    %2435 = vmatpush1.bf16.msra.mxu0 %v2199
    %2436 = vmatprep.mubr.bf16.mxu0 %v1512
    %2437 = vmatmul.mubr.bf16.gmra.mrb[0].mxu0 %v1511
    %v2438 = vpop.f32.mrb[0].mxu0
    %v2439 = vadd.f32 %v2366, %v2438
    %v2440 = vpop.f32.mrb[0].mxu0
    %v2441 = vadd.f32 %v2368, %v2440
    %v2442 = vpop.f32.mrb[0].mxu0
    %v2443 = vadd.f32 %v2370, %v2442
    %v2444 = vpop.f32.mrb[0].mxu0
    %v2445 = vadd.f32 %v2372, %v2444
    %2446 = vmatprep.mubr.bf16.mxu0 %v1516
    %2447 = vmatmul.mubr.bf16.gmra.mrb[0].mxu0 %v1515
    %v2448 = vpop.f32.mrb[0].mxu0
    %v2449 = vadd.f32 %v2376, %v2448
    %v2450 = vpop.f32.mrb[0].mxu0
    %v2451 = vadd.f32 %v2378, %v2450
    %v2452 = vpop.f32.mrb[0].mxu0
    %v2453 = vadd.f32 %v2380, %v2452
    %v2454 = vpop.f32.mrb[0].mxu0
    %v2455 = vadd.f32 %v2382, %v2454
    %2456 = vmatprep.mubr.bf16.mxu0 %v1520
    %2457 = vmatmul.mubr.bf16.gmra.mrb[0].mxu0 %v1519
    %v2458 = vpop.f32.mrb[0].mxu0
    %v2459 = vadd.f32 %v2386, %v2458
    %v2460 = vpop.f32.mrb[0].mxu0
    %v2461 = vadd.f32 %v2388, %v2460
    %v2462 = vpop.f32.mrb[0].mxu0
    %v2463 = vadd.f32 %v2390, %v2462
    %v2464 = vpop.f32.mrb[0].mxu0
    %v2465 = vadd.f32 %v2392, %v2464
    %2466 = vmatprep.mubr.bf16.mxu0 %v1524
    %2467 = vmatmul.mubr.bf16.gmra.mrb[0].mxu0 %v1523
    %v2468 = vpop.f32.mrb[0].mxu0
    %v2469 = vadd.f32 %v2396, %v2468
    %v2470 = vpop.f32.mrb[0].mxu0
    %v2471 = vadd.f32 %v2398, %v2470
    %v2472 = vpop.f32.mrb[0].mxu0
    %v2473 = vadd.f32 %v2400, %v2472
    %v2474 = vpop.f32.mrb[0].mxu0
    %v2475 = vadd.f32 %v2402, %v2474
    %2476 = vdwg.mxu0
    %2477 = vmatprep.subr.bf16.mxu0 %v2078
    %2478 = vmatpush1.bf16.msra.mxu0 %v2077
    %2479 = vmatprep.subr.bf16.mxu0 %v2082
    %2480 = vmatpush1.bf16.msra.mxu0 %v2081
    %2481 = vmatprep.subr.bf16.mxu0 %v2086
    %2482 = vmatpush1.bf16.msra.mxu0 %v2085
    %2483 = vmatprep.subr.bf16.mxu0 %v2090
    %2484 = vmatpush1.bf16.msra.mxu0 %v2089
    %2485 = vmatprep.subr.bf16.mxu0 %v2094
    %2486 = vmatpush1.bf16.msra.mxu0 %v2093
    %2487 = vmatprep.subr.bf16.mxu0 %v2098
    %2488 = vmatpush1.bf16.msra.mxu0 %v2097
    %2489 = vmatprep.subr.bf16.mxu0 %v2102
    %2490 = vmatpush1.bf16.msra.mxu0 %v2101
    %2491 = vmatprep.subr.bf16.mxu0 %v2106
    %2492 = vmatpush1.bf16.msra.mxu0 %v2105
    %2493 = vmatprep.subr.bf16.mxu0 %v2110
    %2494 = vmatpush1.bf16.msra.mxu0 %v2109
    %2495 = vmatprep.subr.bf16.mxu0 %v2114
    %2496 = vmatpush1.bf16.msra.mxu0 %v2113
    %2497 = vmatprep.subr.bf16.mxu0 %v2118
    %2498 = vmatpush1.bf16.msra.mxu0 %v2117
    %2499 = vmatprep.subr.bf16.mxu0 %v2122
    %2500 = vmatpush1.bf16.msra.mxu0 %v2121
    %2501 = vmatprep.subr.bf16.mxu0 %v2126
    %2502 = vmatpush1.bf16.msra.mxu0 %v2125
    %2503 = vmatprep.subr.bf16.mxu0 %v2130
    %2504 = vmatpush1.bf16.msra.mxu0 %v2129
    %2505 = vmatprep.subr.bf16.mxu0 %v2134
    %2506 = vmatpush1.bf16.msra.mxu0 %v2133
    %2507 = vmatprep.subr.bf16.mxu0 %v2138
    %2508 = vmatpush1.bf16.msra.mxu0 %v2137
    %2509 = vmatprep.mubr.bf16.mxu0 %v1510
    %2510 = vmatmul.mubr.bf16.gmra.mrb[0].mxu0 %v1509
    %v2511 = vpop.f32.mrb[0].mxu0
    %v2512 = vadd.f32 %v1686, %v2511
    %v2513 = vpop.f32.mrb[0].mxu0
    %v2514 = vadd.f32 %v1690, %v2513
    %v2515 = vpop.f32.mrb[0].mxu0
    %v2516 = vadd.f32 %v1686, %v2515
    %v2517 = vpop.f32.mrb[0].mxu0
    %v2518 = vadd.f32 %v1690, %v2517
    %2519 = vmatprep.mubr.bf16.mxu0 %v1514
    %2520 = vmatmul.mubr.bf16.gmra.mrb[0].mxu0 %v1513
    %v2521 = vpop.f32.mrb[0].mxu0
    %v2522 = vadd.f32 %v1686, %v2521
    %v2523 = vpop.f32.mrb[0].mxu0
    %v2524 = vadd.f32 %v1690, %v2523
    %v2525 = vpop.f32.mrb[0].mxu0
    %v2526 = vadd.f32 %v1686, %v2525
    %v2527 = vpop.f32.mrb[0].mxu0
    %v2528 = vadd.f32 %v1690, %v2527
    %2529 = vmatprep.mubr.bf16.mxu0 %v1518
    %2530 = vmatmul.mubr.bf16.gmra.mrb[0].mxu0 %v1517
    %v2531 = vpop.f32.mrb[0].mxu0
    %v2532 = vadd.f32 %v1686, %v2531
    %v2533 = vpop.f32.mrb[0].mxu0
    %v2534 = vadd.f32 %v1690, %v2533
    %v2535 = vpop.f32.mrb[0].mxu0
    %v2536 = vadd.f32 %v1686, %v2535
    %v2537 = vpop.f32.mrb[0].mxu0
    %v2538 = vadd.f32 %v1690, %v2537
    %2539 = vmatprep.mubr.bf16.mxu0 %v1522
    %2540 = vmatmul.mubr.bf16.gmra.mrb[0].mxu0 %v1521
    %v2541 = vpop.f32.mrb[0].mxu0
    %v2542 = vadd.f32 %v1686, %v2541
    %v2543 = vpop.f32.mrb[0].mxu0
    %v2544 = vadd.f32 %v1690, %v2543
    %v2545 = vpop.f32.mrb[0].mxu0
    %v2546 = vadd.f32 %v1686, %v2545
    %v2547 = vpop.f32.mrb[0].mxu0
    %v2548 = vadd.f32 %v1690, %v2547
    %2549 = vdwg.mxu0
    %2550 = vmatprep.subr.bf16.mxu0 %v2142
    %2551 = vmatpush1.bf16.msra.mxu0 %v2141
    %2552 = vmatprep.subr.bf16.mxu0 %v2146
    %2553 = vmatpush1.bf16.msra.mxu0 %v2145
    %2554 = vmatprep.subr.bf16.mxu0 %v2150
    %2555 = vmatpush1.bf16.msra.mxu0 %v2149
    %2556 = vmatprep.subr.bf16.mxu0 %v2154
    %2557 = vmatpush1.bf16.msra.mxu0 %v2153
    %2558 = vmatprep.subr.bf16.mxu0 %v2158
    %2559 = vmatpush1.bf16.msra.mxu0 %v2157
    %2560 = vmatprep.subr.bf16.mxu0 %v2162
    %2561 = vmatpush1.bf16.msra.mxu0 %v2161
    %2562 = vmatprep.subr.bf16.mxu0 %v2166
    %2563 = vmatpush1.bf16.msra.mxu0 %v2165
    %2564 = vmatprep.subr.bf16.mxu0 %v2170
    %2565 = vmatpush1.bf16.msra.mxu0 %v2169
    %2566 = vmatprep.subr.bf16.mxu0 %v2174
    %2567 = vmatpush1.bf16.msra.mxu0 %v2173
    %2568 = vmatprep.subr.bf16.mxu0 %v2178
    %2569 = vmatpush1.bf16.msra.mxu0 %v2177
    %2570 = vmatprep.subr.bf16.mxu0 %v2182
    %2571 = vmatpush1.bf16.msra.mxu0 %v2181
    %2572 = vmatprep.subr.bf16.mxu0 %v2186
    %2573 = vmatpush1.bf16.msra.mxu0 %v2185
    %2574 = vmatprep.subr.bf16.mxu0 %v2190
    %2575 = vmatpush1.bf16.msra.mxu0 %v2189
    %2576 = vmatprep.subr.bf16.mxu0 %v2194
    %2577 = vmatpush1.bf16.msra.mxu0 %v2193
    %2578 = vmatprep.subr.bf16.mxu0 %v2198
    %2579 = vmatpush1.bf16.msra.mxu0 %v2197
    %2580 = vmatprep.subr.bf16.mxu0 %v2202
    %2581 = vmatpush1.bf16.msra.mxu0 %v2201
    %2582 = vmatprep.mubr.bf16.mxu0 %v1512
    %2583 = vmatmul.mubr.bf16.gmra.mrb[0].mxu0 %v1511
    %v2584 = vpop.f32.mrb[0].mxu0
    %v2585 = vadd.f32 %v2512, %v2584
    %v2586 = vpop.f32.mrb[0].mxu0
    %v2587 = vadd.f32 %v2514, %v2586
    %v2588 = vpop.f32.mrb[0].mxu0
    %v2589 = vadd.f32 %v2516, %v2588
    %v2590 = vpop.f32.mrb[0].mxu0
    %v2591 = vadd.f32 %v2518, %v2590
    %2592 = vmatprep.mubr.bf16.mxu0 %v1516
    %2593 = vmatmul.mubr.bf16.gmra.mrb[0].mxu0 %v1515
    %v2594 = vpop.f32.mrb[0].mxu0
    %v2595 = vadd.f32 %v2522, %v2594
    %v2596 = vpop.f32.mrb[0].mxu0
    %v2597 = vadd.f32 %v2524, %v2596
    %v2598 = vpop.f32.mrb[0].mxu0
    %v2599 = vadd.f32 %v2526, %v2598
    %v2600 = vpop.f32.mrb[0].mxu0
    %v2601 = vadd.f32 %v2528, %v2600
    %2602 = vmatprep.mubr.bf16.mxu0 %v1520
    %2603 = vmatmul.mubr.bf16.gmra.mrb[0].mxu0 %v1519
    %v2604 = vpop.f32.mrb[0].mxu0
    %v2605 = vadd.f32 %v2532, %v2604
    %v2606 = vpop.f32.mrb[0].mxu0
    %v2607 = vadd.f32 %v2534, %v2606
    %v2608 = vpop.f32.mrb[0].mxu0
    %v2609 = vadd.f32 %v2536, %v2608
    %v2610 = vpop.f32.mrb[0].mxu0
    %v2611 = vadd.f32 %v2538, %v2610
    %2612 = vmatprep.mubr.bf16.mxu0 %v1524
    %2613 = vmatmul.mubr.bf16.gmra.mrb[0].mxu0 %v1523
    %v2614 = vpop.f32.mrb[0].mxu0
    %v2615 = vadd.f32 %v2542, %v2614
    %v2616 = vpop.f32.mrb[0].mxu0
    %v2617 = vadd.f32 %v2544, %v2616
    %v2618 = vpop.f32.mrb[0].mxu0
    %v2619 = vadd.f32 %v2546, %v2618
    %v2620 = vpop.f32.mrb[0].mxu0
    %v2621 = vadd.f32 %v2548, %v2620
    %2622 = vdwg.mxu0
    %v2623 = vadd.f32 %v2439, %v2441
    %v2624 = vadd.f32 %v2623, %v2585
    %v2625 = vadd.f32 %v2624, %v2587
    %2626 = vadd.xlane.f32.xlu0 %v2625
    %v2627 = vpop.xlane.xlu0 %2626
    %v2628 = vadd.f32 %v2443, %v2445
    %v2629 = vadd.f32 %v2628, %v2589
    %v2630 = vadd.f32 %v2629, %v2591
    %2631 = vadd.xlane.f32.xlu0 %v2630
    %v2632 = vpop.xlane.xlu0 %2631
    %v2633 = vadd.f32 %v2449, %v2451
    %v2634 = vadd.f32 %v2633, %v2595
    %v2635 = vadd.f32 %v2634, %v2597
    %2636 = vadd.xlane.f32.xlu0 %v2635
    %v2637 = vpop.xlane.xlu0 %2636
    %v2638 = vadd.f32 %v2453, %v2455
    %v2639 = vadd.f32 %v2638, %v2599
    %v2640 = vadd.f32 %v2639, %v2601
    %2641 = vadd.xlane.f32.xlu0 %v2640
    %v2642 = vpop.xlane.xlu0 %2641
    %v2643 = vadd.f32 %v2459, %v2461
    %v2644 = vadd.f32 %v2643, %v2605
    %v2645 = vadd.f32 %v2644, %v2607
    %2646 = vadd.xlane.f32.xlu0 %v2645
    %v2647 = vpop.xlane.xlu0 %2646
    %v2648 = vadd.f32 %v2463, %v2465
    %v2649 = vadd.f32 %v2648, %v2609
    %v2650 = vadd.f32 %v2649, %v2611
    %2651 = vadd.xlane.f32.xlu0 %v2650
    %v2652 = vpop.xlane.xlu0 %2651
    %v2653 = vadd.f32 %v2469, %v2471
    %v2654 = vadd.f32 %v2653, %v2615
    %v2655 = vadd.f32 %v2654, %v2617
    %2656 = vadd.xlane.f32.xlu0 %v2655
    %v2657 = vpop.xlane.xlu0 %2656
    %v2658 = vadd.f32 %v2473, %v2475
    %v2659 = vadd.f32 %v2658, %v2619
    %v2660 = vadd.f32 %v2659, %v2621
    %2661 = vadd.xlane.f32.xlu0 %v2660
    %v2662 = vpop.xlane.xlu0 %2661
    %v2663 = vmul.f32 %v2627, %v1170
    %v2664 = vmul.f32 %v2632, %v1170
    %v2665 = vmul.f32 %v2637, %v1170
    %v2666 = vmul.f32 %v2642, %v1170
    %v2667 = vmul.f32 %v2647, %v1170
    %v2668 = vmul.f32 %v2652, %v1170
    %v2669 = vmul.f32 %v2657, %v1170
    %v2670 = vmul.f32 %v2662, %v1170
    %v2671 = vsub.f32 %v2439, %v2663
    %v2672 = vsub.f32 %v2441, %v2663
    %v2673 = vsub.f32 %v2585, %v2663
    %v2674 = vsub.f32 %v2587, %v2663
    %v2675 = vsub.f32 %v2443, %v2664
    %v2676 = vsub.f32 %v2445, %v2664
    %v2677 = vsub.f32 %v2589, %v2664
    %v2678 = vsub.f32 %v2591, %v2664
    %v2679 = vsub.f32 %v2449, %v2665
    %v2680 = vsub.f32 %v2451, %v2665
    %v2681 = vsub.f32 %v2595, %v2665
    %v2682 = vsub.f32 %v2597, %v2665
    %v2683 = vsub.f32 %v2453, %v2666
    %v2684 = vsub.f32 %v2455, %v2666
    %v2685 = vsub.f32 %v2599, %v2666
    %v2686 = vsub.f32 %v2601, %v2666
    %v2687 = vsub.f32 %v2459, %v2667
    %v2688 = vsub.f32 %v2461, %v2667
    %v2689 = vsub.f32 %v2605, %v2667
    %v2690 = vsub.f32 %v2607, %v2667
    %v2691 = vsub.f32 %v2463, %v2668
    %v2692 = vsub.f32 %v2465, %v2668
    %v2693 = vsub.f32 %v2609, %v2668
    %v2694 = vsub.f32 %v2611, %v2668
    %v2695 = vsub.f32 %v2469, %v2669
    %v2696 = vsub.f32 %v2471, %v2669
    %v2697 = vsub.f32 %v2615, %v2669
    %v2698 = vsub.f32 %v2617, %v2669
    %v2699 = vsub.f32 %v2473, %v2670
    %v2700 = vsub.f32 %v2475, %v2670
    %v2701 = vsub.f32 %v2619, %v2670
    %v2702 = vsub.f32 %v2621, %v2670
    %v2703 = vmul.f32 %v2671, %v2671
    %v2704 = vmul.f32 %v2672, %v2672
    %v2705 = vmul.f32 %v2673, %v2673
    %v2706 = vmul.f32 %v2674, %v2674
    %v2707 = vmul.f32 %v2675, %v2675
    %v2708 = vmul.f32 %v2676, %v2676
    %v2709 = vmul.f32 %v2677, %v2677
    %v2710 = vmul.f32 %v2678, %v2678
    %v2711 = vmul.f32 %v2679, %v2679
    %v2712 = vmul.f32 %v2680, %v2680
    %v2713 = vmul.f32 %v2681, %v2681
    %v2714 = vmul.f32 %v2682, %v2682
    %v2715 = vmul.f32 %v2683, %v2683
    %v2716 = vmul.f32 %v2684, %v2684
    %v2717 = vmul.f32 %v2685, %v2685
    %v2718 = vmul.f32 %v2686, %v2686
    %v2719 = vmul.f32 %v2687, %v2687
    %v2720 = vmul.f32 %v2688, %v2688
    %v2721 = vmul.f32 %v2689, %v2689
    %v2722 = vmul.f32 %v2690, %v2690
    %v2723 = vmul.f32 %v2691, %v2691
    %v2724 = vmul.f32 %v2692, %v2692
    %v2725 = vmul.f32 %v2693, %v2693
    %v2726 = vmul.f32 %v2694, %v2694
    %v2727 = vmul.f32 %v2695, %v2695
    %v2728 = vmul.f32 %v2696, %v2696
    %v2729 = vmul.f32 %v2697, %v2697
    %v2730 = vmul.f32 %v2698, %v2698
    %v2731 = vmul.f32 %v2699, %v2699
    %v2732 = vmul.f32 %v2700, %v2700
    %v2733 = vmul.f32 %v2701, %v2701
    %v2734 = vmul.f32 %v2702, %v2702
    %v2735 = vadd.f32 %v2703, %v2704
    %v2736 = vadd.f32 %v2735, %v2705
    %v2737 = vadd.f32 %v2736, %v2706
    %2738 = vadd.xlane.f32.xlu0 %v2737
    %v2739 = vpop.xlane.xlu0 %2738
    %v2740 = vadd.f32 %v2707, %v2708
    %v2741 = vadd.f32 %v2740, %v2709
    %v2742 = vadd.f32 %v2741, %v2710
    %2743 = vadd.xlane.f32.xlu0 %v2742
    %v2744 = vpop.xlane.xlu0 %2743
    %v2745 = vadd.f32 %v2711, %v2712
    %v2746 = vadd.f32 %v2745, %v2713
    %v2747 = vadd.f32 %v2746, %v2714
    %2748 = vadd.xlane.f32.xlu0 %v2747
    %v2749 = vpop.xlane.xlu0 %2748
    %v2750 = vadd.f32 %v2715, %v2716
    %v2751 = vadd.f32 %v2750, %v2717
    %v2752 = vadd.f32 %v2751, %v2718
    %2753 = vadd.xlane.f32.xlu0 %v2752
    %v2754 = vpop.xlane.xlu0 %2753
    %v2755 = vadd.f32 %v2719, %v2720
    %v2756 = vadd.f32 %v2755, %v2721
    %v2757 = vadd.f32 %v2756, %v2722
    %2758 = vadd.xlane.f32.xlu0 %v2757
    %v2759 = vpop.xlane.xlu0 %2758
    %v2760 = vadd.f32 %v2723, %v2724
    %v2761 = vadd.f32 %v2760, %v2725
    %v2762 = vadd.f32 %v2761, %v2726
    %2763 = vadd.xlane.f32.xlu0 %v2762
    %v2764 = vpop.xlane.xlu0 %2763
    %v2765 = vadd.f32 %v2727, %v2728
    %v2766 = vadd.f32 %v2765, %v2729
    %v2767 = vadd.f32 %v2766, %v2730
    %2768 = vadd.xlane.f32.xlu0 %v2767
    %v2769 = vpop.xlane.xlu0 %2768
    %v2770 = vadd.f32 %v2731, %v2732
    %v2771 = vadd.f32 %v2770, %v2733
    %v2772 = vadd.f32 %v2771, %v2734
    %2773 = vadd.xlane.f32.xlu0 %v2772
    %v2774 = vpop.xlane.xlu0 %2773
    %v2775 = vmul.f32 %v2739, %v1170
    %v2776 = vmul.f32 %v2744, %v1170
    %v2777 = vmul.f32 %v2749, %v1170
    %v2778 = vmul.f32 %v2754, %v1170
    %v2779 = vmul.f32 %v2759, %v1170
    %v2780 = vmul.f32 %v2764, %v1170
    %v2781 = vmul.f32 %v2769, %v1170
    %v2782 = vmul.f32 %v2774, %v1170
    %v2783 = vadd.f32 %v2775, 1e-05
    %v2784 = vadd.f32 %v2776, 1e-05
    %v2785 = vadd.f32 %v2777, 1e-05
    %v2786 = vadd.f32 %v2778, 1e-05
    %v2787 = vadd.f32 %v2779, 1e-05
    %v2788 = vadd.f32 %v2780, 1e-05
    %v2789 = vadd.f32 %v2781, 1e-05
    %v2790 = vadd.f32 %v2782, 1e-05
    %v2791 = vrsqrt.pop %v2783
    %v2792 = vrsqrt.pop %v2784
    %v2793 = vrsqrt.pop %v2785
    %v2794 = vrsqrt.pop %v2786
    %v2795 = vrsqrt.pop %v2787
    %v2796 = vrsqrt.pop %v2788
    %v2797 = vrsqrt.pop %v2789
    %v2798 = vrsqrt.pop %v2790
    %v2799 = vmul.f32 %v2671, %v2791
    %v2800 = vmul.f32 %v2672, %v2791
    %v2801 = vmul.f32 %v2673, %v2791
    %v2802 = vmul.f32 %v2674, %v2791
    %v2803 = vmul.f32 %v2675, %v2792
    %v2804 = vmul.f32 %v2676, %v2792
    %v2805 = vmul.f32 %v2677, %v2792
    %v2806 = vmul.f32 %v2678, %v2792
    %v2807 = vmul.f32 %v2679, %v2793
    %v2808 = vmul.f32 %v2680, %v2793
    %v2809 = vmul.f32 %v2681, %v2793
    %v2810 = vmul.f32 %v2682, %v2793
    %v2811 = vmul.f32 %v2683, %v2794
    %v2812 = vmul.f32 %v2684, %v2794
    %v2813 = vmul.f32 %v2685, %v2794
    %v2814 = vmul.f32 %v2686, %v2794
    %v2815 = vmul.f32 %v2687, %v2795
    %v2816 = vmul.f32 %v2688, %v2795
    %v2817 = vmul.f32 %v2689, %v2795
    %v2818 = vmul.f32 %v2690, %v2795
    %v2819 = vmul.f32 %v2691, %v2796
    %v2820 = vmul.f32 %v2692, %v2796
    %v2821 = vmul.f32 %v2693, %v2796
    %v2822 = vmul.f32 %v2694, %v2796
    %v2823 = vmul.f32 %v2695, %v2797
    %v2824 = vmul.f32 %v2696, %v2797
    %v2825 = vmul.f32 %v2697, %v2797
    %v2826 = vmul.f32 %v2698, %v2797
    %v2827 = vmul.f32 %v2699, %v2798
    %v2828 = vmul.f32 %v2700, %v2798
    %v2829 = vmul.f32 %v2701, %v2798
    %v2830 = vmul.f32 %v2702, %v2798
    %v2831 = vlaneseq
    %v2832 = vshrl.u32 %v2831, 7
    %v2833 = vsub.s32 1, %v2832
    %v2834 = vrot.slane %v1507, %v2833
    %v2835 = vlaneseq
    %v2836 = vshrl.u32 %v2835, 7
    %v2837 = vsub.s32 5, %v2836
    %v2838 = vrot.slane %v1507, %v2837
    %v2839 = vlaneseq
    %v2840 = vshrl.u32 %v2839, 7
    %v2841 = vsub.s32 1, %v2840
    %v2842 = vrot.slane %v1508, %v2841
    %v2843 = vlaneseq
    %v2844 = vshrl.u32 %v2843, 7
    %v2845 = vsub.s32 5, %v2844
    %v2846 = vrot.slane %v1508, %v2845
    %v2851 = vlaneseq
    %v2852 = vshrl.u32 %v2851, 7
    %v2853 = vsub.s32 1, %v2852
    %v2854 = vrot.slane %v2834, %v2853
    %v2855 = vlaneseq
    %v2856 = vshrl.u32 %v2855, 7
    %v2857 = vsub.s32 1, %v2856
    %v2858 = vrot.slane %v2838, %v2857
    %v2859 = vlaneseq
    %v2860 = vshrl.u32 %v2859, 7
    %v2861 = vsub.s32 1, %v2860
    %v2862 = vrot.slane %v2842, %v2861
    %v2863 = vlaneseq
    %v2864 = vshrl.u32 %v2863, 7
    %v2865 = vsub.s32 1, %v2864
    %v2866 = vrot.slane %v2846, %v2865
    %v2867 = vmul.f32 %v2799, %v2854
    %v2868 = vmul.f32 %v2800, %v2858
    %v2869 = vmul.f32 %v2801, %v2862
    %v2870 = vmul.f32 %v2802, %v2866
    %v2871 = vmul.f32 %v2803, %v2854
    %v2872 = vmul.f32 %v2804, %v2858
    %v2873 = vmul.f32 %v2805, %v2862
    %v2874 = vmul.f32 %v2806, %v2866
    %v2875 = vmul.f32 %v2807, %v2854
    %v2876 = vmul.f32 %v2808, %v2858
    %v2877 = vmul.f32 %v2809, %v2862
    %v2878 = vmul.f32 %v2810, %v2866
    %v2879 = vmul.f32 %v2811, %v2854
    %v2880 = vmul.f32 %v2812, %v2858
    %v2881 = vmul.f32 %v2813, %v2862
    %v2882 = vmul.f32 %v2814, %v2866
    %v2883 = vmul.f32 %v2815, %v2854
    %v2884 = vmul.f32 %v2816, %v2858
    %v2885 = vmul.f32 %v2817, %v2862
    %v2886 = vmul.f32 %v2818, %v2866
    %v2887 = vmul.f32 %v2819, %v2854
    %v2888 = vmul.f32 %v2820, %v2858
    %v2889 = vmul.f32 %v2821, %v2862
    %v2890 = vmul.f32 %v2822, %v2866
    %v2891 = vmul.f32 %v2823, %v2854
    %v2892 = vmul.f32 %v2824, %v2858
    %v2893 = vmul.f32 %v2825, %v2862
    %v2894 = vmul.f32 %v2826, %v2866
    %v2895 = vmul.f32 %v2827, %v2854
    %v2896 = vmul.f32 %v2828, %v2858
    %v2897 = vmul.f32 %v2829, %v2862
    %v2898 = vmul.f32 %v2830, %v2866
    %v2899 = vlaneseq
    %v2900 = vshrl.u32 %v2899, 7
    %v2901 = vsub.s32 2, %v2900
    %v2902 = vrot.slane %v1507, %v2901
    %v2903 = vlaneseq
    %v2904 = vshrl.u32 %v2903, 7
    %v2905 = vsub.s32 6, %v2904
    %v2906 = vrot.slane %v1507, %v2905
    %v2907 = vlaneseq
    %v2908 = vshrl.u32 %v2907, 7
    %v2909 = vsub.s32 2, %v2908
    %v2910 = vrot.slane %v1508, %v2909
    %v2911 = vlaneseq
    %v2912 = vshrl.u32 %v2911, 7
    %v2913 = vsub.s32 6, %v2912
    %v2914 = vrot.slane %v1508, %v2913
    %v2919 = vlaneseq
    %v2920 = vshrl.u32 %v2919, 7
    %v2921 = vsub.s32 2, %v2920
    %v2922 = vrot.slane %v2902, %v2921
    %v2923 = vlaneseq
    %v2924 = vshrl.u32 %v2923, 7
    %v2925 = vsub.s32 2, %v2924
    %v2926 = vrot.slane %v2906, %v2925
    %v2927 = vlaneseq
    %v2928 = vshrl.u32 %v2927, 7
    %v2929 = vsub.s32 2, %v2928
    %v2930 = vrot.slane %v2910, %v2929
    %v2931 = vlaneseq
    %v2932 = vshrl.u32 %v2931, 7
    %v2933 = vsub.s32 2, %v2932
    %v2934 = vrot.slane %v2914, %v2933
    %v2935 = vadd.f32 %v2867, %v2922
    %v2936 = vadd.f32 %v2868, %v2926
    %v2937 = vadd.f32 %v2869, %v2930
    %v2938 = vadd.f32 %v2870, %v2934
    %v2939 = vadd.f32 %v2871, %v2922
    %v2940 = vadd.f32 %v2872, %v2926
    %v2941 = vadd.f32 %v2873, %v2930
    %v2942 = vadd.f32 %v2874, %v2934
    %v2943 = vadd.f32 %v2875, %v2922
    %v2944 = vadd.f32 %v2876, %v2926
    %v2945 = vadd.f32 %v2877, %v2930
    %v2946 = vadd.f32 %v2878, %v2934
    %v2947 = vadd.f32 %v2879, %v2922
    %v2948 = vadd.f32 %v2880, %v2926
    %v2949 = vadd.f32 %v2881, %v2930
    %v2950 = vadd.f32 %v2882, %v2934
    %v2951 = vadd.f32 %v2883, %v2922
    %v2952 = vadd.f32 %v2884, %v2926
    %v2953 = vadd.f32 %v2885, %v2930
    %v2954 = vadd.f32 %v2886, %v2934
    %v2955 = vadd.f32 %v2887, %v2922
    %v2956 = vadd.f32 %v2888, %v2926
    %v2957 = vadd.f32 %v2889, %v2930
    %v2958 = vadd.f32 %v2890, %v2934
    %v2959 = vadd.f32 %v2891, %v2922
    %v2960 = vadd.f32 %v2892, %v2926
    %v2961 = vadd.f32 %v2893, %v2930
    %v2962 = vadd.f32 %v2894, %v2934
    %v2963 = vadd.f32 %v2895, %v2922
    %v2964 = vadd.f32 %v2896, %v2926
    %v2965 = vadd.f32 %v2897, %v2930
    %v2966 = vadd.f32 %v2898, %v2934
    %v2967 = vtanh.pop %v2935
    %v2968 = vtanh.pop %v2936
    %v2969 = vtanh.pop %v2937
    %v2970 = vtanh.pop %v2938
    %v2971 = vtanh.pop %v2939
    %v2972 = vtanh.pop %v2940
    %v2973 = vtanh.pop %v2941
    %v2974 = vtanh.pop %v2942
    %v2975 = vtanh.pop %v2943
    %v2976 = vtanh.pop %v2944
    %v2977 = vtanh.pop %v2945
    %v2978 = vtanh.pop %v2946
    %v2979 = vtanh.pop %v2947
    %v2980 = vtanh.pop %v2948
    %v2981 = vtanh.pop %v2949
    %v2982 = vtanh.pop %v2950
    %v2983 = vtanh.pop %v2951
    %v2984 = vtanh.pop %v2952
    %v2985 = vtanh.pop %v2953
    %v2986 = vtanh.pop %v2954
    %v2987 = vtanh.pop %v2955
    %v2988 = vtanh.pop %v2956
    %v2989 = vtanh.pop %v2957
    %v2990 = vtanh.pop %v2958
    %v2991 = vtanh.pop %v2959
    %v2992 = vtanh.pop %v2960
    %v2993 = vtanh.pop %v2961
    %v2994 = vtanh.pop %v2962
    %v2995 = vtanh.pop %v2963
    %v2996 = vtanh.pop %v2964
    %v2997 = vtanh.pop %v2965
    %v2998 = vtanh.pop %v2966
    %v2999 = vrot.slane %v2967, 4
    %v3000 = vmax.f32 %v2967, %v2999
    %v3001 = vrot.slane %v3000, 2
    %v3002 = vmax.f32 %v3000, %v3001
    %v3003 = vrot.slane %v3002, 1
    %v3004 = vmax.f32 %v3002, %v3003
    %v3005 = vrot.slane %v2968, 4
    %v3006 = vmax.f32 %v2968, %v3005
    %v3007 = vrot.slane %v3006, 2
    %v3008 = vmax.f32 %v3006, %v3007
    %v3009 = vrot.slane %v3008, 1
    %v3010 = vmax.f32 %v3008, %v3009
    %v3011 = vrot.slane %v2969, 4
    %v3012 = vmax.f32 %v2969, %v3011
    %v3013 = vrot.slane %v3012, 2
    %v3014 = vmax.f32 %v3012, %v3013
    %v3015 = vrot.slane %v3014, 1
    %v3016 = vmax.f32 %v3014, %v3015
    %v3017 = vrot.slane %v2970, 4
    %v3018 = vmax.f32 %v2970, %v3017
    %v3019 = vrot.slane %v3018, 2
    %v3020 = vmax.f32 %v3018, %v3019
    %v3021 = vrot.slane %v3020, 1
    %v3022 = vmax.f32 %v3020, %v3021
    %v3023 = vrot.slane %v2971, 4
    %v3024 = vmax.f32 %v2971, %v3023
    %v3025 = vrot.slane %v3024, 2
    %v3026 = vmax.f32 %v3024, %v3025
    %v3027 = vrot.slane %v3026, 1
    %v3028 = vmax.f32 %v3026, %v3027
    %v3029 = vrot.slane %v2972, 4
    %v3030 = vmax.f32 %v2972, %v3029
    %v3031 = vrot.slane %v3030, 2
    %v3032 = vmax.f32 %v3030, %v3031
    %v3033 = vrot.slane %v3032, 1
    %v3034 = vmax.f32 %v3032, %v3033
    %v3035 = vrot.slane %v2973, 4
    %v3036 = vmax.f32 %v2973, %v3035
    %v3037 = vrot.slane %v3036, 2
    %v3038 = vmax.f32 %v3036, %v3037
    %v3039 = vrot.slane %v3038, 1
    %v3040 = vmax.f32 %v3038, %v3039
    %v3041 = vrot.slane %v2974, 4
    %v3042 = vmax.f32 %v2974, %v3041
    %v3043 = vrot.slane %v3042, 2
    %v3044 = vmax.f32 %v3042, %v3043
    %v3045 = vrot.slane %v3044, 1
    %v3046 = vmax.f32 %v3044, %v3045
    %v3047 = vrot.slane %v2975, 4
    %v3048 = vmax.f32 %v2975, %v3047
    %v3049 = vrot.slane %v3048, 2
    %v3050 = vmax.f32 %v3048, %v3049
    %v3051 = vrot.slane %v3050, 1
    %v3052 = vmax.f32 %v3050, %v3051
    %v3053 = vrot.slane %v2976, 4
    %v3054 = vmax.f32 %v2976, %v3053
    %v3055 = vrot.slane %v3054, 2
    %v3056 = vmax.f32 %v3054, %v3055
    %v3057 = vrot.slane %v3056, 1
    %v3058 = vmax.f32 %v3056, %v3057
    %v3059 = vrot.slane %v2977, 4
    %v3060 = vmax.f32 %v2977, %v3059
    %v3061 = vrot.slane %v3060, 2
    %v3062 = vmax.f32 %v3060, %v3061
    %v3063 = vrot.slane %v3062, 1
    %v3064 = vmax.f32 %v3062, %v3063
    %v3065 = vrot.slane %v2978, 4
    %v3066 = vmax.f32 %v2978, %v3065
    %v3067 = vrot.slane %v3066, 2
    %v3068 = vmax.f32 %v3066, %v3067
    %v3069 = vrot.slane %v3068, 1
    %v3070 = vmax.f32 %v3068, %v3069
    %v3071 = vrot.slane %v2979, 4
    %v3072 = vmax.f32 %v2979, %v3071
    %v3073 = vrot.slane %v3072, 2
    %v3074 = vmax.f32 %v3072, %v3073
    %v3075 = vrot.slane %v3074, 1
    %v3076 = vmax.f32 %v3074, %v3075
    %v3077 = vrot.slane %v2980, 4
    %v3078 = vmax.f32 %v2980, %v3077
    %v3079 = vrot.slane %v3078, 2
    %v3080 = vmax.f32 %v3078, %v3079
    %v3081 = vrot.slane %v3080, 1
    %v3082 = vmax.f32 %v3080, %v3081
    %v3083 = vrot.slane %v2981, 4
    %v3084 = vmax.f32 %v2981, %v3083
    %v3085 = vrot.slane %v3084, 2
    %v3086 = vmax.f32 %v3084, %v3085
    %v3087 = vrot.slane %v3086, 1
    %v3088 = vmax.f32 %v3086, %v3087
    %v3089 = vrot.slane %v2982, 4
    %v3090 = vmax.f32 %v2982, %v3089
    %v3091 = vrot.slane %v3090, 2
    %v3092 = vmax.f32 %v3090, %v3091
    %v3093 = vrot.slane %v3092, 1
    %v3094 = vmax.f32 %v3092, %v3093
    %v3095 = vrot.slane %v2983, 4
    %v3096 = vmax.f32 %v2983, %v3095
    %v3097 = vrot.slane %v3096, 2
    %v3098 = vmax.f32 %v3096, %v3097
    %v3099 = vrot.slane %v3098, 1
    %v3100 = vmax.f32 %v3098, %v3099
    %v3101 = vrot.slane %v2984, 4
    %v3102 = vmax.f32 %v2984, %v3101
    %v3103 = vrot.slane %v3102, 2
    %v3104 = vmax.f32 %v3102, %v3103
    %v3105 = vrot.slane %v3104, 1
    %v3106 = vmax.f32 %v3104, %v3105
    %v3107 = vrot.slane %v2985, 4
    %v3108 = vmax.f32 %v2985, %v3107
    %v3109 = vrot.slane %v3108, 2
    %v3110 = vmax.f32 %v3108, %v3109
    %v3111 = vrot.slane %v3110, 1
    %v3112 = vmax.f32 %v3110, %v3111
    %v3113 = vrot.slane %v2986, 4
    %v3114 = vmax.f32 %v2986, %v3113
    %v3115 = vrot.slane %v3114, 2
    %v3116 = vmax.f32 %v3114, %v3115
    %v3117 = vrot.slane %v3116, 1
    %v3118 = vmax.f32 %v3116, %v3117
    %v3119 = vrot.slane %v2987, 4
    %v3120 = vmax.f32 %v2987, %v3119
    %v3121 = vrot.slane %v3120, 2
    %v3122 = vmax.f32 %v3120, %v3121
    %v3123 = vrot.slane %v3122, 1
    %v3124 = vmax.f32 %v3122, %v3123
    %v3125 = vrot.slane %v2988, 4
    %v3126 = vmax.f32 %v2988, %v3125
    %v3127 = vrot.slane %v3126, 2
    %v3128 = vmax.f32 %v3126, %v3127
    %v3129 = vrot.slane %v3128, 1
    %v3130 = vmax.f32 %v3128, %v3129
    %v3131 = vrot.slane %v2989, 4
    %v3132 = vmax.f32 %v2989, %v3131
    %v3133 = vrot.slane %v3132, 2
    %v3134 = vmax.f32 %v3132, %v3133
    %v3135 = vrot.slane %v3134, 1
    %v3136 = vmax.f32 %v3134, %v3135
    %v3137 = vrot.slane %v2990, 4
    %v3138 = vmax.f32 %v2990, %v3137
    %v3139 = vrot.slane %v3138, 2
    %v3140 = vmax.f32 %v3138, %v3139
    %v3141 = vrot.slane %v3140, 1
    %v3142 = vmax.f32 %v3140, %v3141
    %v3143 = vrot.slane %v2991, 4
    %v3144 = vmax.f32 %v2991, %v3143
    %v3145 = vrot.slane %v3144, 2
    %v3146 = vmax.f32 %v3144, %v3145
    %v3147 = vrot.slane %v3146, 1
    %v3148 = vmax.f32 %v3146, %v3147
    %v3149 = vrot.slane %v2992, 4
    %v3150 = vmax.f32 %v2992, %v3149
    %v3151 = vrot.slane %v3150, 2
    %v3152 = vmax.f32 %v3150, %v3151
    %v3153 = vrot.slane %v3152, 1
    %v3154 = vmax.f32 %v3152, %v3153
    %v3155 = vrot.slane %v2993, 4
    %v3156 = vmax.f32 %v2993, %v3155
    %v3157 = vrot.slane %v3156, 2
    %v3158 = vmax.f32 %v3156, %v3157
    %v3159 = vrot.slane %v3158, 1
    %v3160 = vmax.f32 %v3158, %v3159
    %v3161 = vrot.slane %v2994, 4
    %v3162 = vmax.f32 %v2994, %v3161
    %v3163 = vrot.slane %v3162, 2
    %v3164 = vmax.f32 %v3162, %v3163
    %v3165 = vrot.slane %v3164, 1
    %v3166 = vmax.f32 %v3164, %v3165
    %v3167 = vrot.slane %v2995, 4
    %v3168 = vmax.f32 %v2995, %v3167
    %v3169 = vrot.slane %v3168, 2
    %v3170 = vmax.f32 %v3168, %v3169
    %v3171 = vrot.slane %v3170, 1
    %v3172 = vmax.f32 %v3170, %v3171
    %v3173 = vrot.slane %v2996, 4
    %v3174 = vmax.f32 %v2996, %v3173
    %v3175 = vrot.slane %v3174, 2
    %v3176 = vmax.f32 %v3174, %v3175
    %v3177 = vrot.slane %v3176, 1
    %v3178 = vmax.f32 %v3176, %v3177
    %v3179 = vrot.slane %v2997, 4
    %v3180 = vmax.f32 %v2997, %v3179
    %v3181 = vrot.slane %v3180, 2
    %v3182 = vmax.f32 %v3180, %v3181
    %v3183 = vrot.slane %v3182, 1
    %v3184 = vmax.f32 %v3182, %v3183
    %v3185 = vrot.slane %v2998, 4
    %v3186 = vmax.f32 %v2998, %v3185
    %v3187 = vrot.slane %v3186, 2
    %v3188 = vmax.f32 %v3186, %v3187
    %v3189 = vrot.slane %v3188, 1
    %v3190 = vmax.f32 %v3188, %v3189
    %vm3223 = vcmask 1041409
    %v3224 = vsel %vm3223, %v3028, %v3004
    %vm3225 = vcmask 1042434
    %v3226 = vsel %vm3225, %v3052, %v3224
    %vm3227 = vcmask 1043459
    %v3228 = vsel %vm3227, %v3076, %v3226
    %vm3229 = vcmask 1044484
    %v3230 = vsel %vm3229, %v3100, %v3228
    %vm3231 = vcmask 1045509
    %v3232 = vsel %vm3231, %v3124, %v3230
    %vm3233 = vcmask 1046534
    %v3234 = vsel %vm3233, %v3148, %v3232
    %vm3235 = vcmask 1047559
    %v3236 = vsel %vm3235, %v3172, %v3234
    %v3237 = vsel %vm3223, %v3034, %v3010
    %v3238 = vsel %vm3225, %v3058, %v3237
    %v3239 = vsel %vm3227, %v3082, %v3238
    %v3240 = vsel %vm3229, %v3106, %v3239
    %v3241 = vsel %vm3231, %v3130, %v3240
    %v3242 = vsel %vm3233, %v3154, %v3241
    %v3243 = vsel %vm3235, %v3178, %v3242
    %v3244 = vsel %vm3223, %v3040, %v3016
    %v3245 = vsel %vm3225, %v3064, %v3244
    %v3246 = vsel %vm3227, %v3088, %v3245
    %v3247 = vsel %vm3229, %v3112, %v3246
    %v3248 = vsel %vm3231, %v3136, %v3247
    %v3249 = vsel %vm3233, %v3160, %v3248
    %v3250 = vsel %vm3235, %v3184, %v3249
    %v3251 = vsel %vm3223, %v3046, %v3022
    %v3252 = vsel %vm3225, %v3070, %v3251
    %v3253 = vsel %vm3227, %v3094, %v3252
    %v3254 = vsel %vm3229, %v3118, %v3253
    %v3255 = vsel %vm3231, %v3142, %v3254
    %v3256 = vsel %vm3233, %v3166, %v3255
    %v3257 = vsel %vm3235, %v3190, %v3256
    %3262 = vst [vmem:[#allocation7] sm:$0xff] %v3236
    %3263 = vst [vmem:[#allocation7 + $0x8] sm:$0xff] %v3243
    %3264 = vst [vmem:[#allocation7 + $0x10] sm:$0xff] %v3250
    %3265 = vst [vmem:[#allocation7 + $0x18] sm:$0xff] %v3257
    // Predicated region
    $region38: #{tpu_custom_call.1} parent=1 // pred_check
      _
    $region39: #{tpu_custom_call.1} parent=1 // pred_check_branch
      %3267 = sbr.rel (0) target = $region41
    $region40: #{tpu_custom_call.1} parent=1 // pred_region
      %s3269 = ssub.s32 512, 512
      %3270 = vsyncadd [#allocation4], %s3269
      %s3272 = sshll.u32 [#allocation7], 4
      %s3273 = int_to_ptr.vmem [resolvable:$true] %s3272
      %3275 = dma.vmem_to_hbm [thread:$0]  %s3273, 512, %s7, [#allocation4]
    $region41: #{tpu_custom_call.1} parent=1 // pred_fallthru
      _
    // Predicated region
    $region42: #{tpu_custom_call.1} parent=1 // pred_check
      _
    $region43: #{tpu_custom_call.1} parent=1 // pred_check_branch
      %3277 = sbr.rel (0) target = $region45
    $region44: #{tpu_custom_call.1} parent=1 // pred_region
      %3278 = dma.done [#allocation4], 512
    $region45: #{tpu_custom_call.1} parent=1 // pred_fallthru
      _
    %3279 = vsyncpa [#allocation3], 1
    %3280 = vsyncpa [#allocation6], 1
    %3281 = vsyncpa [#allocation4], 1

</llo_original>
